<compile_context>
chip_gen: v6e
topology: v6e:2x2x1
jax: 0.10.0
libtpu: 0.0.40
codegen_flags: <defaults>
</compile_context>

<pallas_src>
import functools

import jax
import jax.numpy as jnp
from jax import lax
from jax.experimental import pallas as pl
from jax.experimental.pallas import tpu as pltpu

COUT = 128  # both conv layers have 128 output channels (lane-dense)


# ------------------------- fused Pallas kernel -------------------------

def _encoder_kernel(p_ref, w1_ref, b1_ref, w2_ref, b2_ref, o_ref, act_ref,
                    *, Hu, Wu, P1h, P1w, P2h, P2w):
    f32 = jnp.float32

    # ---- conv1: dense im2col matmul (K padded to 128) + folded-BN bias + ReLU ----
    x = p_ref[...].reshape(Hu * Wu, COUT)                      # bf16, rows = h*Wu + w
    y1 = jnp.dot(x, w1_ref[...], preferred_element_type=f32) + b1_ref[...]
    y1 = jnp.maximum(y1, 0.0)                                  # (Hu*Wu, 128) f32

    # ---- 2x2 max-pool, written into a zero-bordered VMEM scratch (pad=1 for conv2) ----
    zcol = jnp.zeros((1, COUT), f32)
    zrow = jnp.zeros((P1w + 2, COUT), f32)
    act_ref[0, :, :] = zrow
    act_ref[P1h + 1, :, :] = zrow
    for ph in range(P1h):
        top = y1[(2 * ph) * Wu:(2 * ph) * Wu + Wu, :]
        bot = y1[(2 * ph + 1) * Wu:(2 * ph + 1) * Wu + Wu, :]
        r = jnp.maximum(top, bot)                              # (Wu, 128): max over row pair
        cols = [jnp.maximum(r[2 * m:2 * m + 1, :], r[2 * m + 1:2 * m + 2, :])
                for m in range(P1w)]                           # max over column pairs
        act_ref[ph + 1, :, :] = jnp.concatenate([zcol] + cols + [zcol], axis=0)

    # ---- conv2: 3x3 tap-accumulated matmuls (no im2col materialization) ----
    def tap(t):
        i, j = t // 3, t % 3
        xs = act_ref[i:i + P1h, j:j + P1w, :].reshape(P1h * P1w, COUT)
        return jnp.dot(xs.astype(jnp.bfloat16), w2_ref[t, :, :],
                       preferred_element_type=f32)

    acc = tap(0)
    for t in range(1, 9):
        acc = acc + tap(t)
    y2 = jnp.maximum(acc + b2_ref[...], 0.0)                   # (P1h*P1w, 128), rows = h*P1w + w

    # ---- 2x2 max-pool epilogue -> final output block ----
    for ph in range(P2h):
        top = y2[(2 * ph) * P1w:(2 * ph) * P1w + P1w, :]
        bot = y2[(2 * ph + 1) * P1w:(2 * ph + 1) * P1w + P1w, :]
        r = jnp.maximum(top, bot)                              # (P1w, 128)
        cols = [jnp.maximum(r[2 * m:2 * m + 1, :], r[2 * m + 1:2 * m + 2, :])
                for m in range(P2w)]
        o_ref[0, ph, :, :] = jnp.concatenate(cols, axis=0).astype(o_ref.dtype)


def encoder_pallas(patches, w1m, b1f, w2m, b2f, *, Hu, Wu, P1h, P1w, P2h, P2w):
    N = patches.shape[0]
    kernel = functools.partial(_encoder_kernel, Hu=Hu, Wu=Wu,
                               P1h=P1h, P1w=P1w, P2h=P2h, P2w=P2w)
    return pl.pallas_call(
        kernel,
        out_shape=jax.ShapeDtypeStruct((N, P2h, P2w, COUT), jnp.float32),
        grid_spec=pltpu.PrefetchScalarGridSpec(
            num_scalar_prefetch=0,
            grid=(N,),
            in_specs=[
                pl.BlockSpec((1, Hu, Wu, COUT), lambda n: (n, 0, 0, 0)),   # conv1 patches
                pl.BlockSpec((COUT, COUT), lambda n: (0, 0)),              # w1 (resident)
                pl.BlockSpec((1, COUT), lambda n: (0, 0)),                 # bias1
                pl.BlockSpec((9, COUT, COUT), lambda n: (0, 0, 0)),        # w2 taps (resident)
                pl.BlockSpec((1, COUT), lambda n: (0, 0)),                 # bias2
            ],
            out_specs=pl.BlockSpec((1, P2h, P2w, COUT), lambda n: (n, 0, 0, 0)),
            scratch_shapes=[pltpu.VMEM((P1h + 2, P1w + 2, COUT), jnp.float32)],
        ),
        compiler_params=pltpu.CompilerParams(
            dimension_semantics=("parallel",),          # megacore sharding on v7x
            vmem_limit_bytes=32 * 1024 * 1024,
        ),
    )(patches, w1m, b1f, w2m, b2f)


# ------------------------- glue (plain JAX, trace-time only) -------------------------

def _fold_bn(conv_b, gamma, beta, mean, var, eps=1e-5):
    scale = gamma / jnp.sqrt(var + eps)
    bias = (conv_b - mean) * scale + beta
    return scale, bias


def simple_encoder_forward(frame_nchw, p):
    N, Cin, H, W = frame_nchw.shape
    assert 4 * Cin <= COUT

    # Geometry: conv1(k=2,pad=1) -> (H+1, W+1); pool(2,2) floor only uses the first
    # Hu x Wu conv outputs; conv2(k=3,pad=1) preserves (P1h, P1w); final pool floors again.
    Hu, Wu = 2 * ((H + 1) // 2), 2 * ((W + 1) // 2)
    P1h, P1w = Hu // 2, Wu // 2
    P2h, P2w = P1h // 2, P1w // 2

    x = jnp.transpose(frame_nchw, (0, 2, 3, 1)).astype(jnp.float32)       # NCHW -> NHWC
    xp = jnp.pad(x, ((0, 0), (1, 1), (1, 1), (0, 0)))

    # conv1 im2col, feature order (kh, kw, cin), zero-padded to 128 lanes, bf16 MXU operand.
    taps = [xp[:, i:i + Hu, j:j + Wu, :] for i in range(2) for j in range(2)]
    patches = jnp.concatenate(taps, axis=-1)                              # (N, Hu, Wu, 4*Cin)
    patches = jnp.pad(patches, ((0, 0), (0, 0), (0, 0), (0, COUT - 4 * Cin)))
    patches = patches.astype(jnp.bfloat16)

    # Fold eval-mode BatchNorm into the conv weights / bias.
    s1, b1 = _fold_bn(p["b1"], p["g1"], p["beta1"], p["m1"], p["v1"])
    w1m = jnp.transpose(p["w1"], (2, 3, 1, 0)).reshape(4 * Cin, COUT) * s1[None, :]
    w1m = jnp.pad(w1m, ((0, COUT - 4 * Cin), (0, 0))).astype(jnp.bfloat16)
    b1f = b1.reshape(1, COUT).astype(jnp.float32)

    s2, b2 = _fold_bn(p["b2"], p["g2"], p["beta2"], p["m2"], p["v2"])
    w2m = jnp.transpose(p["w2"], (2, 3, 1, 0)).reshape(9, COUT, COUT) * s2[None, None, :]
    w2m = w2m.astype(jnp.bfloat16)
    b2f = b2.reshape(1, COUT).astype(jnp.float32)

    out = encoder_pallas(patches, w1m, b1f, w2m, b2f,
                         Hu=Hu, Wu=Wu, P1h=P1h, P1w=P1w, P2h=P2h, P2w=P2w)
    return jnp.transpose(out, (0, 3, 1, 2))                               # NHWC -> NCHW


# ------------------------- deterministic params -------------------------

def init_params(key):
    ks = jax.random.split(key, 12)
    p = {}
    p["w1"] = jax.random.normal(ks[0], (128, 3, 2, 2), jnp.float32) * 0.2
    p["b1"] = jax.random.normal(ks[1], (128,), jnp.float32) * 0.1
    p["g1"] = 1.0 + 0.1 * jax.random.normal(ks[2], (128,), jnp.float32)
    p["beta1"] = 0.1 * jax.random.normal(ks[3], (128,), jnp.float32)
    p["m1"] = 0.1 * jax.random.normal(ks[4], (128,), jnp.float32)
    p["v1"] = 1.0 + 0.1 * jnp.abs(jax.random.normal(ks[5], (128,), jnp.float32))
    p["w2"] = jax.random.normal(ks[6], (128, 128, 3, 3), jnp.float32) * 0.05
    p["b2"] = jax.random.normal(ks[7], (128,), jnp.float32) * 0.1
    p["g2"] = 1.0 + 0.1 * jax.random.normal(ks[8], (128,), jnp.float32)
    p["beta2"] = 0.1 * jax.random.normal(ks[9], (128,), jnp.float32)
    p["m2"] = 0.1 * jax.random.normal(ks[10], (128,), jnp.float32)
    p["v2"] = 1.0 + 0.1 * jnp.abs(jax.random.normal(ks[11], (128,), jnp.float32))
    return p


# ------------------------- pure-JAX reference (sanity check) -------------------------

def reference_forward(frame_nchw, p, eps=1e-5):
    def conv(x, w, b):
        y = lax.conv_general_dilated(x, w, (1, 1), ((1, 1), (1, 1)),
                                     dimension_numbers=("NCHW", "OIHW", "NCHW"))
        return y + b[None, :, None, None]

    def bn(x, g, beta, m, v):
        return ((x - m[None, :, None, None])
                / jnp.sqrt(v + eps)[None, :, None, None]
                * g[None, :, None, None] + beta[None, :, None, None])

    def pool(x):
        N, C, H, W = x.shape
        x = x[:, :, :H // 2 * 2, :W // 2 * 2]
        x = x.reshape(N, C, H // 2, 2, W // 2, 2)
        return x.max(axis=(3, 5))

    x = jnp.maximum(bn(conv(frame_nchw, p["w1"], p["b1"]),
                       p["g1"], p["beta1"], p["m1"], p["v1"]), 0.0)
    x = pool(x)
    x = jnp.maximum(bn(conv(x, p["w2"], p["b2"]),
                       p["g2"], p["beta2"], p["m2"], p["v2"]), 0.0)
    x = pool(x)
    return x


if __name__ == "__main__":
    key = jax.random.PRNGKey(0)
    pkey, xkey = jax.random.split(key)
    params = init_params(pkey)

    # Small input consistent with the module: NCHW, 3 input channels.
    frame = jax.random.normal(xkey, (2, 3, 16, 16), jnp.float32)

    fwd = jax.jit(simple_encoder_forward)
    out = jax.block_until_ready(fwd(frame, params))

    assert out.shape == (2, 128, 4, 4), out.shape
    ref = reference_forward(frame, params)
    max_err = jnp.max(jnp.abs(out - ref))
    # bf16 MXU operands (f32 accumulation/epilogue) -> slightly looser tolerance than pure f32.
    if not jnp.allclose(out, ref, rtol=3e-2, atol=3e-2):
        raise AssertionError(f"Pallas vs reference mismatch, max abs err = {max_err}")

    print("KERNEL_OK")
</pallas_src>

<mosaic_0001>
module attributes {stable_mosaic.version = 11 : i64} {
  func.func @_encoder_kernel(%arg0: i32, %arg1: memref<1x16x16x128xbf16, #tpu.memory_space<vmem>>, %arg2: memref<128x128xbf16, #tpu.memory_space<vmem>>, %arg3: memref<1x128xf32, #tpu.memory_space<vmem>>, %arg4: memref<9x128x128xbf16, #tpu.memory_space<vmem>>, %arg5: memref<1x128xf32, #tpu.memory_space<vmem>>, %arg6: memref<1x4x4x128xf32, #tpu.memory_space<vmem>>, %arg7: memref<10x10x128xf32, #tpu.memory_space<vmem>>) attributes {dimension_semantics = [#tpu.dimension_semantics<parallel>], iteration_bounds = array<i64: 2>, scalar_prefetch = 0 : i64, scratch_operands = 1 : i64, tpu.core_type = #tpu.core_type<tc>, window_params = [{transform_indices = @transform_0, window_bounds = array<i64: 1, 16, 16, 128>}, {pipeline_mode = #tpu.pipeline_mode<synchronous>, transform_indices = @transform_1, window_bounds = array<i64: 128, 128>}, {pipeline_mode = #tpu.pipeline_mode<synchronous>, transform_indices = @transform_2, window_bounds = array<i64: 1, 128>}, {pipeline_mode = #tpu.pipeline_mode<synchronous>, transform_indices = @transform_3, window_bounds = array<i64: 9, 128, 128>}, {pipeline_mode = #tpu.pipeline_mode<synchronous>, transform_indices = @transform_4, window_bounds = array<i64: 1, 128>}, {transform_indices = @transform_5, window_bounds = array<i64: 1, 4, 4, 128>}]} {
    %c0 = arith.constant 0 : index
    %c0_0 = arith.constant 0 : index
    %c0_1 = arith.constant 0 : index
    %c0_2 = arith.constant 0 : index
    %0 = vector.load %arg1[%c0, %c0_0, %c0_1, %c0_2] : memref<1x16x16x128xbf16, #tpu.memory_space<vmem>>, vector<1x16x16x128xbf16>
    %1 = vector.shape_cast %0 : vector<1x16x16x128xbf16> to vector<256x128xbf16>
    %c0_3 = arith.constant 0 : index
    %c0_4 = arith.constant 0 : index
    %2 = vector.load %arg2[%c0_3, %c0_4] : memref<128x128xbf16, #tpu.memory_space<vmem>>, vector<128x128xbf16>
    %cst = arith.constant dense<0.000000e+00> : vector<256x128xf32>
    %3 = tpu.matmul %1, %2, %cst {dimension_numbers = #tpu.dot_dimension_numbers<[1], [0], [0], [1], [0, 0, 1, 1], [], []>} : vector<256x128xbf16>, vector<128x128xbf16>, vector<256x128xf32> -> vector<256x128xf32>
    %c0_5 = arith.constant 0 : index
    %c0_6 = arith.constant 0 : index
    %4 = vector.load %arg3[%c0_5, %c0_6] : memref<1x128xf32, #tpu.memory_space<vmem>>, vector<1x128xf32>
    %5 = vector.broadcast %4 : vector<1x128xf32> to vector<256x128xf32>
    %6 = arith.addf %3, %5 : vector<256x128xf32>
    %cst_7 = arith.constant 0.000000e+00 : f32
    %7 = vector.broadcast %cst_7 : f32 to vector<256x128xf32>
    %8 = arith.maximumf %6, %7 : vector<256x128xf32>
    %cst_8 = arith.constant 0.000000e+00 : f32
    %9 = vector.broadcast %cst_8 : f32 to vector<1x128xf32>
    %cst_9 = arith.constant 0.000000e+00 : f32
    %10 = vector.broadcast %cst_9 : f32 to vector<10x128xf32>
    %c0_10 = arith.constant 0 : index
    %c0_11 = arith.constant 0 : index
    %c0_12 = arith.constant 0 : index
    %11 = vector.load %arg7[%c0_10, %c0_11, %c0_12] : memref<10x10x128xf32, #tpu.memory_space<vmem>>, vector<1x10x128xf32>
    %12 = vector.shape_cast %11 : vector<1x10x128xf32> to vector<10x128xf32>
    %13 = vector.shape_cast %10 : vector<10x128xf32> to vector<1x10x128xf32>
    tpu.vector_store %arg7[%c0_10, %c0_11, %c0_12], %13 {strides = array<i32>} : memref<10x10x128xf32, #tpu.memory_space<vmem>>, vector<1x10x128xf32>,
    %c9 = arith.constant 9 : index
    %c0_13 = arith.constant 0 : index
    %c0_14 = arith.constant 0 : index
    %14 = vector.load %arg7[%c9, %c0_13, %c0_14] : memref<10x10x128xf32, #tpu.memory_space<vmem>>, vector<1x10x128xf32>
    %15 = vector.shape_cast %14 : vector<1x10x128xf32> to vector<10x128xf32>
    %16 = vector.shape_cast %10 : vector<10x128xf32> to vector<1x10x128xf32>
    tpu.vector_store %arg7[%c9, %c0_13, %c0_14], %16 {strides = array<i32>} : memref<10x10x128xf32, #tpu.memory_space<vmem>>, vector<1x10x128xf32>,
    %17 = vector.extract_strided_slice %8 {offsets = [0, 0], sizes = [16, 128], strides = [1, 1]} : vector<256x128xf32> to vector<16x128xf32>
    %18 = vector.extract_strided_slice %8 {offsets = [16, 0], sizes = [16, 128], strides = [1, 1]} : vector<256x128xf32> to vector<16x128xf32>
    %19 = arith.maximumf %17, %18 : vector<16x128xf32>
    %20 = vector.extract_strided_slice %19 {offsets = [0, 0], sizes = [1, 128], strides = [1, 1]} : vector<16x128xf32> to vector<1x128xf32>
    %21 = vector.extract_strided_slice %19 {offsets = [1, 0], sizes = [1, 128], strides = [1, 1]} : vector<16x128xf32> to vector<1x128xf32>
    %22 = arith.maximumf %20, %21 : vector<1x128xf32>
    %23 = vector.extract_strided_slice %19 {offsets = [2, 0], sizes = [1, 128], strides = [1, 1]} : vector<16x128xf32> to vector<1x128xf32>
    %24 = vector.extract_strided_slice %19 {offsets = [3, 0], sizes = [1, 128], strides = [1, 1]} : vector<16x128xf32> to vector<1x128xf32>
    %25 = arith.maximumf %23, %24 : vector<1x128xf32>
    %26 = vector.extract_strided_slice %19 {offsets = [4, 0], sizes = [1, 128], strides = [1, 1]} : vector<16x128xf32> to vector<1x128xf32>
    %27 = vector.extract_strided_slice %19 {offsets = [5, 0], sizes = [1, 128], strides = [1, 1]} : vector<16x128xf32> to vector<1x128xf32>
    %28 = arith.maximumf %26, %27 : vector<1x128xf32>
    %29 = vector.extract_strided_slice %19 {offsets = [6, 0], sizes = [1, 128], strides = [1, 1]} : vector<16x128xf32> to vector<1x128xf32>
    %30 = vector.extract_strided_slice %19 {offsets = [7, 0], sizes = [1, 128], strides = [1, 1]} : vector<16x128xf32> to vector<1x128xf32>
    %31 = arith.maximumf %29, %30 : vector<1x128xf32>
    %32 = vector.extract_strided_slice %19 {offsets = [8, 0], sizes = [1, 128], strides = [1, 1]} : vector<16x128xf32> to vector<1x128xf32>
    %33 = vector.extract_strided_slice %19 {offsets = [9, 0], sizes = [1, 128], strides = [1, 1]} : vector<16x128xf32> to vector<1x128xf32>
    %34 = arith.maximumf %32, %33 : vector<1x128xf32>
    %35 = vector.extract_strided_slice %19 {offsets = [10, 0], sizes = [1, 128], strides = [1, 1]} : vector<16x128xf32> to vector<1x128xf32>
    %36 = vector.extract_strided_slice %19 {offsets = [11, 0], sizes = [1, 128], strides = [1, 1]} : vector<16x128xf32> to vector<1x128xf32>
    %37 = arith.maximumf %35, %36 : vector<1x128xf32>
    %38 = vector.extract_strided_slice %19 {offsets = [12, 0], sizes = [1, 128], strides = [1, 1]} : vector<16x128xf32> to vector<1x128xf32>
    %39 = vector.extract_strided_slice %19 {offsets = [13, 0], sizes = [1, 128], strides = [1, 1]} : vector<16x128xf32> to vector<1x128xf32>
    %40 = arith.maximumf %38, %39 : vector<1x128xf32>
    %41 = vector.extract_strided_slice %19 {offsets = [14, 0], sizes = [1, 128], strides = [1, 1]} : vector<16x128xf32> to vector<1x128xf32>
    %42 = vector.extract_strided_slice %19 {offsets = [15, 0], sizes = [1, 128], strides = [1, 1]} : vector<16x128xf32> to vector<1x128xf32>
    %43 = arith.maximumf %41, %42 : vector<1x128xf32>
    %44 = tpu.concatenate %9, %22, %25, %28, %31, %34, %37, %40, %43, %9 in 0 : vector<1x128xf32>, vector<1x128xf32>, vector<1x128xf32>, vector<1x128xf32>, vector<1x128xf32>, vector<1x128xf32>, vector<1x128xf32>, vector<1x128xf32>, vector<1x128xf32>, vector<1x128xf32> -> vector<10x128xf32>
    %c1 = arith.constant 1 : index
    %c0_15 = arith.constant 0 : index
    %c0_16 = arith.constant 0 : index
    %45 = vector.load %arg7[%c1, %c0_15, %c0_16] : memref<10x10x128xf32, #tpu.memory_space<vmem>>, vector<1x10x128xf32>
    %46 = vector.shape_cast %45 : vector<1x10x128xf32> to vector<10x128xf32>
    %47 = vector.shape_cast %44 : vector<10x128xf32> to vector<1x10x128xf32>
    tpu.vector_store %arg7[%c1, %c0_15, %c0_16], %47 {strides = array<i32>} : memref<10x10x128xf32, #tpu.memory_space<vmem>>, vector<1x10x128xf32>,
    %48 = vector.extract_strided_slice %8 {offsets = [32, 0], sizes = [16, 128], strides = [1, 1]} : vector<256x128xf32> to vector<16x128xf32>
    %49 = vector.extract_strided_slice %8 {offsets = [48, 0], sizes = [16, 128], strides = [1, 1]} : vector<256x128xf32> to vector<16x128xf32>
    %50 = arith.maximumf %48, %49 : vector<16x128xf32>
    %51 = vector.extract_strided_slice %50 {offsets = [0, 0], sizes = [1, 128], strides = [1, 1]} : vector<16x128xf32> to vector<1x128xf32>
    %52 = vector.extract_strided_slice %50 {offsets = [1, 0], sizes = [1, 128], strides = [1, 1]} : vector<16x128xf32> to vector<1x128xf32>
    %53 = arith.maximumf %51, %52 : vector<1x128xf32>
    %54 = vector.extract_strided_slice %50 {offsets = [2, 0], sizes = [1, 128], strides = [1, 1]} : vector<16x128xf32> to vector<1x128xf32>
    %55 = vector.extract_strided_slice %50 {offsets = [3, 0], sizes = [1, 128], strides = [1, 1]} : vector<16x128xf32> to vector<1x128xf32>
    %56 = arith.maximumf %54, %55 : vector<1x128xf32>
    %57 = vector.extract_strided_slice %50 {offsets = [4, 0], sizes = [1, 128], strides = [1, 1]} : vector<16x128xf32> to vector<1x128xf32>
    %58 = vector.extract_strided_slice %50 {offsets = [5, 0], sizes = [1, 128], strides = [1, 1]} : vector<16x128xf32> to vector<1x128xf32>
    %59 = arith.maximumf %57, %58 : vector<1x128xf32>
    %60 = vector.extract_strided_slice %50 {offsets = [6, 0], sizes = [1, 128], strides = [1, 1]} : vector<16x128xf32> to vector<1x128xf32>
    %61 = vector.extract_strided_slice %50 {offsets = [7, 0], sizes = [1, 128], strides = [1, 1]} : vector<16x128xf32> to vector<1x128xf32>
    %62 = arith.maximumf %60, %61 : vector<1x128xf32>
    %63 = vector.extract_strided_slice %50 {offsets = [8, 0], sizes = [1, 128], strides = [1, 1]} : vector<16x128xf32> to vector<1x128xf32>
    %64 = vector.extract_strided_slice %50 {offsets = [9, 0], sizes = [1, 128], strides = [1, 1]} : vector<16x128xf32> to vector<1x128xf32>
    %65 = arith.maximumf %63, %64 : vector<1x128xf32>
    %66 = vector.extract_strided_slice %50 {offsets = [10, 0], sizes = [1, 128], strides = [1, 1]} : vector<16x128xf32> to vector<1x128xf32>
    %67 = vector.extract_strided_slice %50 {offsets = [11, 0], sizes = [1, 128], strides = [1, 1]} : vector<16x128xf32> to vector<1x128xf32>
    %68 = arith.maximumf %66, %67 : vector<1x128xf32>
    %69 = vector.extract_strided_slice %50 {offsets = [12, 0], sizes = [1, 128], strides = [1, 1]} : vector<16x128xf32> to vector<1x128xf32>
    %70 = vector.extract_strided_slice %50 {offsets = [13, 0], sizes = [1, 128], strides = [1, 1]} : vector<16x128xf32> to vector<1x128xf32>
    %71 = arith.maximumf %69, %70 : vector<1x128xf32>
    %72 = vector.extract_strided_slice %50 {offsets = [14, 0], sizes = [1, 128], strides = [1, 1]} : vector<16x128xf32> to vector<1x128xf32>
    %73 = vector.extract_strided_slice %50 {offsets = [15, 0], sizes = [1, 128], strides = [1, 1]} : vector<16x128xf32> to vector<1x128xf32>
    %74 = arith.maximumf %72, %73 : vector<1x128xf32>
    %75 = tpu.concatenate %9, %53, %56, %59, %62, %65, %68, %71, %74, %9 in 0 : vector<1x128xf32>, vector<1x128xf32>, vector<1x128xf32>, vector<1x128xf32>, vector<1x128xf32>, vector<1x128xf32>, vector<1x128xf32>, vector<1x128xf32>, vector<1x128xf32>, vector<1x128xf32> -> vector<10x128xf32>
    %c2 = arith.constant 2 : index
    %c0_17 = arith.constant 0 : index
    %c0_18 = arith.constant 0 : index
    %76 = vector.load %arg7[%c2, %c0_17, %c0_18] : memref<10x10x128xf32, #tpu.memory_space<vmem>>, vector<1x10x128xf32>
    %77 = vector.shape_cast %76 : vector<1x10x128xf32> to vector<10x128xf32>
    %78 = vector.shape_cast %75 : vector<10x128xf32> to vector<1x10x128xf32>
    tpu.vector_store %arg7[%c2, %c0_17, %c0_18], %78 {strides = array<i32>} : memref<10x10x128xf32, #tpu.memory_space<vmem>>, vector<1x10x128xf32>,
    %79 = vector.extract_strided_slice %8 {offsets = [64, 0], sizes = [16, 128], strides = [1, 1]} : vector<256x128xf32> to vector<16x128xf32>
    %80 = vector.extract_strided_slice %8 {offsets = [80, 0], sizes = [16, 128], strides = [1, 1]} : vector<256x128xf32> to vector<16x128xf32>
    %81 = arith.maximumf %79, %80 : vector<16x128xf32>
    %82 = vector.extract_strided_slice %81 {offsets = [0, 0], sizes = [1, 128], strides = [1, 1]} : vector<16x128xf32> to vector<1x128xf32>
    %83 = vector.extract_strided_slice %81 {offsets = [1, 0], sizes = [1, 128], strides = [1, 1]} : vector<16x128xf32> to vector<1x128xf32>
    %84 = arith.maximumf %82, %83 : vector<1x128xf32>
    %85 = vector.extract_strided_slice %81 {offsets = [2, 0], sizes = [1, 128], strides = [1, 1]} : vector<16x128xf32> to vector<1x128xf32>
    %86 = vector.extract_strided_slice %81 {offsets = [3, 0], sizes = [1, 128], strides = [1, 1]} : vector<16x128xf32> to vector<1x128xf32>
    %87 = arith.maximumf %85, %86 : vector<1x128xf32>
    %88 = vector.extract_strided_slice %81 {offsets = [4, 0], sizes = [1, 128], strides = [1, 1]} : vector<16x128xf32> to vector<1x128xf32>
    %89 = vector.extract_strided_slice %81 {offsets = [5, 0], sizes = [1, 128], strides = [1, 1]} : vector<16x128xf32> to vector<1x128xf32>
    %90 = arith.maximumf %88, %89 : vector<1x128xf32>
    %91 = vector.extract_strided_slice %81 {offsets = [6, 0], sizes = [1, 128], strides = [1, 1]} : vector<16x128xf32> to vector<1x128xf32>
    %92 = vector.extract_strided_slice %81 {offsets = [7, 0], sizes = [1, 128], strides = [1, 1]} : vector<16x128xf32> to vector<1x128xf32>
    %93 = arith.maximumf %91, %92 : vector<1x128xf32>
    %94 = vector.extract_strided_slice %81 {offsets = [8, 0], sizes = [1, 128], strides = [1, 1]} : vector<16x128xf32> to vector<1x128xf32>
    %95 = vector.extract_strided_slice %81 {offsets = [9, 0], sizes = [1, 128], strides = [1, 1]} : vector<16x128xf32> to vector<1x128xf32>
    %96 = arith.maximumf %94, %95 : vector<1x128xf32>
    %97 = vector.extract_strided_slice %81 {offsets = [10, 0], sizes = [1, 128], strides = [1, 1]} : vector<16x128xf32> to vector<1x128xf32>
    %98 = vector.extract_strided_slice %81 {offsets = [11, 0], sizes = [1, 128], strides = [1, 1]} : vector<16x128xf32> to vector<1x128xf32>
    %99 = arith.maximumf %97, %98 : vector<1x128xf32>
    %100 = vector.extract_strided_slice %81 {offsets = [12, 0], sizes = [1, 128], strides = [1, 1]} : vector<16x128xf32> to vector<1x128xf32>
    %101 = vector.extract_strided_slice %81 {offsets = [13, 0], sizes = [1, 128], strides = [1, 1]} : vector<16x128xf32> to vector<1x128xf32>
    %102 = arith.maximumf %100, %101 : vector<1x128xf32>
    %103 = vector.extract_strided_slice %81 {offsets = [14, 0], sizes = [1, 128], strides = [1, 1]} : vector<16x128xf32> to vector<1x128xf32>
    %104 = vector.extract_strided_slice %81 {offsets = [15, 0], sizes = [1, 128], strides = [1, 1]} : vector<16x128xf32> to vector<1x128xf32>
    %105 = arith.maximumf %103, %104 : vector<1x128xf32>
    %106 = tpu.concatenate %9, %84, %87, %90, %93, %96, %99, %102, %105, %9 in 0 : vector<1x128xf32>, vector<1x128xf32>, vector<1x128xf32>, vector<1x128xf32>, vector<1x128xf32>, vector<1x128xf32>, vector<1x128xf32>, vector<1x128xf32>, vector<1x128xf32>, vector<1x128xf32> -> vector<10x128xf32>
    %c3 = arith.constant 3 : index
    %c0_19 = arith.constant 0 : index
    %c0_20 = arith.constant 0 : index
    %107 = vector.load %arg7[%c3, %c0_19, %c0_20] : memref<10x10x128xf32, #tpu.memory_space<vmem>>, vector<1x10x128xf32>
    %108 = vector.shape_cast %107 : vector<1x10x128xf32> to vector<10x128xf32>
    %109 = vector.shape_cast %106 : vector<10x128xf32> to vector<1x10x128xf32>
    tpu.vector_store %arg7[%c3, %c0_19, %c0_20], %109 {strides = array<i32>} : memref<10x10x128xf32, #tpu.memory_space<vmem>>, vector<1x10x128xf32>,
    %110 = vector.extract_strided_slice %8 {offsets = [96, 0], sizes = [16, 128], strides = [1, 1]} : vector<256x128xf32> to vector<16x128xf32>
    %111 = vector.extract_strided_slice %8 {offsets = [112, 0], sizes = [16, 128], strides = [1, 1]} : vector<256x128xf32> to vector<16x128xf32>
    %112 = arith.maximumf %110, %111 : vector<16x128xf32>
    %113 = vector.extract_strided_slice %112 {offsets = [0, 0], sizes = [1, 128], strides = [1, 1]} : vector<16x128xf32> to vector<1x128xf32>
    %114 = vector.extract_strided_slice %112 {offsets = [1, 0], sizes = [1, 128], strides = [1, 1]} : vector<16x128xf32> to vector<1x128xf32>
    %115 = arith.maximumf %113, %114 : vector<1x128xf32>
    %116 = vector.extract_strided_slice %112 {offsets = [2, 0], sizes = [1, 128], strides = [1, 1]} : vector<16x128xf32> to vector<1x128xf32>
    %117 = vector.extract_strided_slice %112 {offsets = [3, 0], sizes = [1, 128], strides = [1, 1]} : vector<16x128xf32> to vector<1x128xf32>
    %118 = arith.maximumf %116, %117 : vector<1x128xf32>
    %119 = vector.extract_strided_slice %112 {offsets = [4, 0], sizes = [1, 128], strides = [1, 1]} : vector<16x128xf32> to vector<1x128xf32>
    %120 = vector.extract_strided_slice %112 {offsets = [5, 0], sizes = [1, 128], strides = [1, 1]} : vector<16x128xf32> to vector<1x128xf32>
    %121 = arith.maximumf %119, %120 : vector<1x128xf32>
    %122 = vector.extract_strided_slice %112 {offsets = [6, 0], sizes = [1, 128], strides = [1, 1]} : vector<16x128xf32> to vector<1x128xf32>
    %123 = vector.extract_strided_slice %112 {offsets = [7, 0], sizes = [1, 128], strides = [1, 1]} : vector<16x128xf32> to vector<1x128xf32>
    %124 = arith.maximumf %122, %123 : vector<1x128xf32>
    %125 = vector.extract_strided_slice %112 {offsets = [8, 0], sizes = [1, 128], strides = [1, 1]} : vector<16x128xf32> to vector<1x128xf32>
    %126 = vector.extract_strided_slice %112 {offsets = [9, 0], sizes = [1, 128], strides = [1, 1]} : vector<16x128xf32> to vector<1x128xf32>
    %127 = arith.maximumf %125, %126 : vector<1x128xf32>
    %128 = vector.extract_strided_slice %112 {offsets = [10, 0], sizes = [1, 128], strides = [1, 1]} : vector<16x128xf32> to vector<1x128xf32>
    %129 = vector.extract_strided_slice %112 {offsets = [11, 0], sizes = [1, 128], strides = [1, 1]} : vector<16x128xf32> to vector<1x128xf32>
    %130 = arith.maximumf %128, %129 : vector<1x128xf32>
    %131 = vector.extract_strided_slice %112 {offsets = [12, 0], sizes = [1, 128], strides = [1, 1]} : vector<16x128xf32> to vector<1x128xf32>
    %132 = vector.extract_strided_slice %112 {offsets = [13, 0], sizes = [1, 128], strides = [1, 1]} : vector<16x128xf32> to vector<1x128xf32>
    %133 = arith.maximumf %131, %132 : vector<1x128xf32>
    %134 = vector.extract_strided_slice %112 {offsets = [14, 0], sizes = [1, 128], strides = [1, 1]} : vector<16x128xf32> to vector<1x128xf32>
    %135 = vector.extract_strided_slice %112 {offsets = [15, 0], sizes = [1, 128], strides = [1, 1]} : vector<16x128xf32> to vector<1x128xf32>
    %136 = arith.maximumf %134, %135 : vector<1x128xf32>
    %137 = tpu.concatenate %9, %115, %118, %121, %124, %127, %130, %133, %136, %9 in 0 : vector<1x128xf32>, vector<1x128xf32>, vector<1x128xf32>, vector<1x128xf32>, vector<1x128xf32>, vector<1x128xf32>, vector<1x128xf32>, vector<1x128xf32>, vector<1x128xf32>, vector<1x128xf32> -> vector<10x128xf32>
    %c4 = arith.constant 4 : index
    %c0_21 = arith.constant 0 : index
    %c0_22 = arith.constant 0 : index
    %138 = vector.load %arg7[%c4, %c0_21, %c0_22] : memref<10x10x128xf32, #tpu.memory_space<vmem>>, vector<1x10x128xf32>
    %139 = vector.shape_cast %138 : vector<1x10x128xf32> to vector<10x128xf32>
    %140 = vector.shape_cast %137 : vector<10x128xf32> to vector<1x10x128xf32>
    tpu.vector_store %arg7[%c4, %c0_21, %c0_22], %140 {strides = array<i32>} : memref<10x10x128xf32, #tpu.memory_space<vmem>>, vector<1x10x128xf32>,
    %141 = vector.extract_strided_slice %8 {offsets = [128, 0], sizes = [16, 128], strides = [1, 1]} : vector<256x128xf32> to vector<16x128xf32>
    %142 = vector.extract_strided_slice %8 {offsets = [144, 0], sizes = [16, 128], strides = [1, 1]} : vector<256x128xf32> to vector<16x128xf32>
    %143 = arith.maximumf %141, %142 : vector<16x128xf32>
    %144 = vector.extract_strided_slice %143 {offsets = [0, 0], sizes = [1, 128], strides = [1, 1]} : vector<16x128xf32> to vector<1x128xf32>
    %145 = vector.extract_strided_slice %143 {offsets = [1, 0], sizes = [1, 128], strides = [1, 1]} : vector<16x128xf32> to vector<1x128xf32>
    %146 = arith.maximumf %144, %145 : vector<1x128xf32>
    %147 = vector.extract_strided_slice %143 {offsets = [2, 0], sizes = [1, 128], strides = [1, 1]} : vector<16x128xf32> to vector<1x128xf32>
    %148 = vector.extract_strided_slice %143 {offsets = [3, 0], sizes = [1, 128], strides = [1, 1]} : vector<16x128xf32> to vector<1x128xf32>
    %149 = arith.maximumf %147, %148 : vector<1x128xf32>
    %150 = vector.extract_strided_slice %143 {offsets = [4, 0], sizes = [1, 128], strides = [1, 1]} : vector<16x128xf32> to vector<1x128xf32>
    %151 = vector.extract_strided_slice %143 {offsets = [5, 0], sizes = [1, 128], strides = [1, 1]} : vector<16x128xf32> to vector<1x128xf32>
    %152 = arith.maximumf %150, %151 : vector<1x128xf32>
    %153 = vector.extract_strided_slice %143 {offsets = [6, 0], sizes = [1, 128], strides = [1, 1]} : vector<16x128xf32> to vector<1x128xf32>
    %154 = vector.extract_strided_slice %143 {offsets = [7, 0], sizes = [1, 128], strides = [1, 1]} : vector<16x128xf32> to vector<1x128xf32>
    %155 = arith.maximumf %153, %154 : vector<1x128xf32>
    %156 = vector.extract_strided_slice %143 {offsets = [8, 0], sizes = [1, 128], strides = [1, 1]} : vector<16x128xf32> to vector<1x128xf32>
    %157 = vector.extract_strided_slice %143 {offsets = [9, 0], sizes = [1, 128], strides = [1, 1]} : vector<16x128xf32> to vector<1x128xf32>
    %158 = arith.maximumf %156, %157 : vector<1x128xf32>
    %159 = vector.extract_strided_slice %143 {offsets = [10, 0], sizes = [1, 128], strides = [1, 1]} : vector<16x128xf32> to vector<1x128xf32>
    %160 = vector.extract_strided_slice %143 {offsets = [11, 0], sizes = [1, 128], strides = [1, 1]} : vector<16x128xf32> to vector<1x128xf32>
    %161 = arith.maximumf %159, %160 : vector<1x128xf32>
    %162 = vector.extract_strided_slice %143 {offsets = [12, 0], sizes = [1, 128], strides = [1, 1]} : vector<16x128xf32> to vector<1x128xf32>
    %163 = vector.extract_strided_slice %143 {offsets = [13, 0], sizes = [1, 128], strides = [1, 1]} : vector<16x128xf32> to vector<1x128xf32>
    %164 = arith.maximumf %162, %163 : vector<1x128xf32>
    %165 = vector.extract_strided_slice %143 {offsets = [14, 0], sizes = [1, 128], strides = [1, 1]} : vector<16x128xf32> to vector<1x128xf32>
    %166 = vector.extract_strided_slice %143 {offsets = [15, 0], sizes = [1, 128], strides = [1, 1]} : vector<16x128xf32> to vector<1x128xf32>
    %167 = arith.maximumf %165, %166 : vector<1x128xf32>
    %168 = tpu.concatenate %9, %146, %149, %152, %155, %158, %161, %164, %167, %9 in 0 : vector<1x128xf32>, vector<1x128xf32>, vector<1x128xf32>, vector<1x128xf32>, vector<1x128xf32>, vector<1x128xf32>, vector<1x128xf32>, vector<1x128xf32>, vector<1x128xf32>, vector<1x128xf32> -> vector<10x128xf32>
    %c5 = arith.constant 5 : index
    %c0_23 = arith.constant 0 : index
    %c0_24 = arith.constant 0 : index
    %169 = vector.load %arg7[%c5, %c0_23, %c0_24] : memref<10x10x128xf32, #tpu.memory_space<vmem>>, vector<1x10x128xf32>
    %170 = vector.shape_cast %169 : vector<1x10x128xf32> to vector<10x128xf32>
    %171 = vector.shape_cast %168 : vector<10x128xf32> to vector<1x10x128xf32>
    tpu.vector_store %arg7[%c5, %c0_23, %c0_24], %171 {strides = array<i32>} : memref<10x10x128xf32, #tpu.memory_space<vmem>>, vector<1x10x128xf32>,
    %172 = vector.extract_strided_slice %8 {offsets = [160, 0], sizes = [16, 128], strides = [1, 1]} : vector<256x128xf32> to vector<16x128xf32>
    %173 = vector.extract_strided_slice %8 {offsets = [176, 0], sizes = [16, 128], strides = [1, 1]} : vector<256x128xf32> to vector<16x128xf32>
    %174 = arith.maximumf %172, %173 : vector<16x128xf32>
    %175 = vector.extract_strided_slice %174 {offsets = [0, 0], sizes = [1, 128], strides = [1, 1]} : vector<16x128xf32> to vector<1x128xf32>
    %176 = vector.extract_strided_slice %174 {offsets = [1, 0], sizes = [1, 128], strides = [1, 1]} : vector<16x128xf32> to vector<1x128xf32>
    %177 = arith.maximumf %175, %176 : vector<1x128xf32>
    %178 = vector.extract_strided_slice %174 {offsets = [2, 0], sizes = [1, 128], strides = [1, 1]} : vector<16x128xf32> to vector<1x128xf32>
    %179 = vector.extract_strided_slice %174 {offsets = [3, 0], sizes = [1, 128], strides = [1, 1]} : vector<16x128xf32> to vector<1x128xf32>
    %180 = arith.maximumf %178, %179 : vector<1x128xf32>
    %181 = vector.extract_strided_slice %174 {offsets = [4, 0], sizes = [1, 128], strides = [1, 1]} : vector<16x128xf32> to vector<1x128xf32>
    %182 = vector.extract_strided_slice %174 {offsets = [5, 0], sizes = [1, 128], strides = [1, 1]} : vector<16x128xf32> to vector<1x128xf32>
    %183 = arith.maximumf %181, %182 : vector<1x128xf32>
    %184 = vector.extract_strided_slice %174 {offsets = [6, 0], sizes = [1, 128], strides = [1, 1]} : vector<16x128xf32> to vector<1x128xf32>
    %185 = vector.extract_strided_slice %174 {offsets = [7, 0], sizes = [1, 128], strides = [1, 1]} : vector<16x128xf32> to vector<1x128xf32>
    %186 = arith.maximumf %184, %185 : vector<1x128xf32>
    %187 = vector.extract_strided_slice %174 {offsets = [8, 0], sizes = [1, 128], strides = [1, 1]} : vector<16x128xf32> to vector<1x128xf32>
    %188 = vector.extract_strided_slice %174 {offsets = [9, 0], sizes = [1, 128], strides = [1, 1]} : vector<16x128xf32> to vector<1x128xf32>
    %189 = arith.maximumf %187, %188 : vector<1x128xf32>
    %190 = vector.extract_strided_slice %174 {offsets = [10, 0], sizes = [1, 128], strides = [1, 1]} : vector<16x128xf32> to vector<1x128xf32>
    %191 = vector.extract_strided_slice %174 {offsets = [11, 0], sizes = [1, 128], strides = [1, 1]} : vector<16x128xf32> to vector<1x128xf32>
    %192 = arith.maximumf %190, %191 : vector<1x128xf32>
    %193 = vector.extract_strided_slice %174 {offsets = [12, 0], sizes = [1, 128], strides = [1, 1]} : vector<16x128xf32> to vector<1x128xf32>
    %194 = vector.extract_strided_slice %174 {offsets = [13, 0], sizes = [1, 128], strides = [1, 1]} : vector<16x128xf32> to vector<1x128xf32>
    %195 = arith.maximumf %193, %194 : vector<1x128xf32>
    %196 = vector.extract_strided_slice %174 {offsets = [14, 0], sizes = [1, 128], strides = [1, 1]} : vector<16x128xf32> to vector<1x128xf32>
    %197 = vector.extract_strided_slice %174 {offsets = [15, 0], sizes = [1, 128], strides = [1, 1]} : vector<16x128xf32> to vector<1x128xf32>
    %198 = arith.maximumf %196, %197 : vector<1x128xf32>
    %199 = tpu.concatenate %9, %177, %180, %183, %186, %189, %192, %195, %198, %9 in 0 : vector<1x128xf32>, vector<1x128xf32>, vector<1x128xf32>, vector<1x128xf32>, vector<1x128xf32>, vector<1x128xf32>, vector<1x128xf32>, vector<1x128xf32>, vector<1x128xf32>, vector<1x128xf32> -> vector<10x128xf32>
    %c6 = arith.constant 6 : index
    %c0_25 = arith.constant 0 : index
    %c0_26 = arith.constant 0 : index
    %200 = vector.load %arg7[%c6, %c0_25, %c0_26] : memref<10x10x128xf32, #tpu.memory_space<vmem>>, vector<1x10x128xf32>
    %201 = vector.shape_cast %200 : vector<1x10x128xf32> to vector<10x128xf32>
    %202 = vector.shape_cast %199 : vector<10x128xf32> to vector<1x10x128xf32>
    tpu.vector_store %arg7[%c6, %c0_25, %c0_26], %202 {strides = array<i32>} : memref<10x10x128xf32, #tpu.memory_space<vmem>>, vector<1x10x128xf32>,
    %203 = vector.extract_strided_slice %8 {offsets = [192, 0], sizes = [16, 128], strides = [1, 1]} : vector<256x128xf32> to vector<16x128xf32>
    %204 = vector.extract_strided_slice %8 {offsets = [208, 0], sizes = [16, 128], strides = [1, 1]} : vector<256x128xf32> to vector<16x128xf32>
    %205 = arith.maximumf %203, %204 : vector<16x128xf32>
    %206 = vector.extract_strided_slice %205 {offsets = [0, 0], sizes = [1, 128], strides = [1, 1]} : vector<16x128xf32> to vector<1x128xf32>
    %207 = vector.extract_strided_slice %205 {offsets = [1, 0], sizes = [1, 128], strides = [1, 1]} : vector<16x128xf32> to vector<1x128xf32>
    %208 = arith.maximumf %206, %207 : vector<1x128xf32>
    %209 = vector.extract_strided_slice %205 {offsets = [2, 0], sizes = [1, 128], strides = [1, 1]} : vector<16x128xf32> to vector<1x128xf32>
    %210 = vector.extract_strided_slice %205 {offsets = [3, 0], sizes = [1, 128], strides = [1, 1]} : vector<16x128xf32> to vector<1x128xf32>
    %211 = arith.maximumf %209, %210 : vector<1x128xf32>
    %212 = vector.extract_strided_slice %205 {offsets = [4, 0], sizes = [1, 128], strides = [1, 1]} : vector<16x128xf32> to vector<1x128xf32>
    %213 = vector.extract_strided_slice %205 {offsets = [5, 0], sizes = [1, 128], strides = [1, 1]} : vector<16x128xf32> to vector<1x128xf32>
    %214 = arith.maximumf %212, %213 : vector<1x128xf32>
    %215 = vector.extract_strided_slice %205 {offsets = [6, 0], sizes = [1, 128], strides = [1, 1]} : vector<16x128xf32> to vector<1x128xf32>
    %216 = vector.extract_strided_slice %205 {offsets = [7, 0], sizes = [1, 128], strides = [1, 1]} : vector<16x128xf32> to vector<1x128xf32>
    %217 = arith.maximumf %215, %216 : vector<1x128xf32>
    %218 = vector.extract_strided_slice %205 {offsets = [8, 0], sizes = [1, 128], strides = [1, 1]} : vector<16x128xf32> to vector<1x128xf32>
    %219 = vector.extract_strided_slice %205 {offsets = [9, 0], sizes = [1, 128], strides = [1, 1]} : vector<16x128xf32> to vector<1x128xf32>
    %220 = arith.maximumf %218, %219 : vector<1x128xf32>
    %221 = vector.extract_strided_slice %205 {offsets = [10, 0], sizes = [1, 128], strides = [1, 1]} : vector<16x128xf32> to vector<1x128xf32>
    %222 = vector.extract_strided_slice %205 {offsets = [11, 0], sizes = [1, 128], strides = [1, 1]} : vector<16x128xf32> to vector<1x128xf32>
    %223 = arith.maximumf %221, %222 : vector<1x128xf32>
    %224 = vector.extract_strided_slice %205 {offsets = [12, 0], sizes = [1, 128], strides = [1, 1]} : vector<16x128xf32> to vector<1x128xf32>
    %225 = vector.extract_strided_slice %205 {offsets = [13, 0], sizes = [1, 128], strides = [1, 1]} : vector<16x128xf32> to vector<1x128xf32>
    %226 = arith.maximumf %224, %225 : vector<1x128xf32>
    %227 = vector.extract_strided_slice %205 {offsets = [14, 0], sizes = [1, 128], strides = [1, 1]} : vector<16x128xf32> to vector<1x128xf32>
    %228 = vector.extract_strided_slice %205 {offsets = [15, 0], sizes = [1, 128], strides = [1, 1]} : vector<16x128xf32> to vector<1x128xf32>
    %229 = arith.maximumf %227, %228 : vector<1x128xf32>
    %230 = tpu.concatenate %9, %208, %211, %214, %217, %220, %223, %226, %229, %9 in 0 : vector<1x128xf32>, vector<1x128xf32>, vector<1x128xf32>, vector<1x128xf32>, vector<1x128xf32>, vector<1x128xf32>, vector<1x128xf32>, vector<1x128xf32>, vector<1x128xf32>, vector<1x128xf32> -> vector<10x128xf32>
    %c7 = arith.constant 7 : index
    %c0_27 = arith.constant 0 : index
    %c0_28 = arith.constant 0 : index
    %231 = vector.load %arg7[%c7, %c0_27, %c0_28] : memref<10x10x128xf32, #tpu.memory_space<vmem>>, vector<1x10x128xf32>
    %232 = vector.shape_cast %231 : vector<1x10x128xf32> to vector<10x128xf32>
    %233 = vector.shape_cast %230 : vector<10x128xf32> to vector<1x10x128xf32>
    tpu.vector_store %arg7[%c7, %c0_27, %c0_28], %233 {strides = array<i32>} : memref<10x10x128xf32, #tpu.memory_space<vmem>>, vector<1x10x128xf32>,
    %234 = vector.extract_strided_slice %8 {offsets = [224, 0], sizes = [16, 128], strides = [1, 1]} : vector<256x128xf32> to vector<16x128xf32>
    %235 = vector.extract_strided_slice %8 {offsets = [240, 0], sizes = [16, 128], strides = [1, 1]} : vector<256x128xf32> to vector<16x128xf32>
    %236 = arith.maximumf %234, %235 : vector<16x128xf32>
    %237 = vector.extract_strided_slice %236 {offsets = [0, 0], sizes = [1, 128], strides = [1, 1]} : vector<16x128xf32> to vector<1x128xf32>
    %238 = vector.extract_strided_slice %236 {offsets = [1, 0], sizes = [1, 128], strides = [1, 1]} : vector<16x128xf32> to vector<1x128xf32>
    %239 = arith.maximumf %237, %238 : vector<1x128xf32>
    %240 = vector.extract_strided_slice %236 {offsets = [2, 0], sizes = [1, 128], strides = [1, 1]} : vector<16x128xf32> to vector<1x128xf32>
    %241 = vector.extract_strided_slice %236 {offsets = [3, 0], sizes = [1, 128], strides = [1, 1]} : vector<16x128xf32> to vector<1x128xf32>
    %242 = arith.maximumf %240, %241 : vector<1x128xf32>
    %243 = vector.extract_strided_slice %236 {offsets = [4, 0], sizes = [1, 128], strides = [1, 1]} : vector<16x128xf32> to vector<1x128xf32>
    %244 = vector.extract_strided_slice %236 {offsets = [5, 0], sizes = [1, 128], strides = [1, 1]} : vector<16x128xf32> to vector<1x128xf32>
    %245 = arith.maximumf %243, %244 : vector<1x128xf32>
    %246 = vector.extract_strided_slice %236 {offsets = [6, 0], sizes = [1, 128], strides = [1, 1]} : vector<16x128xf32> to vector<1x128xf32>
    %247 = vector.extract_strided_slice %236 {offsets = [7, 0], sizes = [1, 128], strides = [1, 1]} : vector<16x128xf32> to vector<1x128xf32>
    %248 = arith.maximumf %246, %247 : vector<1x128xf32>
    %249 = vector.extract_strided_slice %236 {offsets = [8, 0], sizes = [1, 128], strides = [1, 1]} : vector<16x128xf32> to vector<1x128xf32>
    %250 = vector.extract_strided_slice %236 {offsets = [9, 0], sizes = [1, 128], strides = [1, 1]} : vector<16x128xf32> to vector<1x128xf32>
    %251 = arith.maximumf %249, %250 : vector<1x128xf32>
    %252 = vector.extract_strided_slice %236 {offsets = [10, 0], sizes = [1, 128], strides = [1, 1]} : vector<16x128xf32> to vector<1x128xf32>
    %253 = vector.extract_strided_slice %236 {offsets = [11, 0], sizes = [1, 128], strides = [1, 1]} : vector<16x128xf32> to vector<1x128xf32>
    %254 = arith.maximumf %252, %253 : vector<1x128xf32>
    %255 = vector.extract_strided_slice %236 {offsets = [12, 0], sizes = [1, 128], strides = [1, 1]} : vector<16x128xf32> to vector<1x128xf32>
    %256 = vector.extract_strided_slice %236 {offsets = [13, 0], sizes = [1, 128], strides = [1, 1]} : vector<16x128xf32> to vector<1x128xf32>
    %257 = arith.maximumf %255, %256 : vector<1x128xf32>
    %258 = vector.extract_strided_slice %236 {offsets = [14, 0], sizes = [1, 128], strides = [1, 1]} : vector<16x128xf32> to vector<1x128xf32>
    %259 = vector.extract_strided_slice %236 {offsets = [15, 0], sizes = [1, 128], strides = [1, 1]} : vector<16x128xf32> to vector<1x128xf32>
    %260 = arith.maximumf %258, %259 : vector<1x128xf32>
    %261 = tpu.concatenate %9, %239, %242, %245, %248, %251, %254, %257, %260, %9 in 0 : vector<1x128xf32>, vector<1x128xf32>, vector<1x128xf32>, vector<1x128xf32>, vector<1x128xf32>, vector<1x128xf32>, vector<1x128xf32>, vector<1x128xf32>, vector<1x128xf32>, vector<1x128xf32> -> vector<10x128xf32>
    %c8 = arith.constant 8 : index
    %c0_29 = arith.constant 0 : index
    %c0_30 = arith.constant 0 : index
    %262 = vector.load %arg7[%c8, %c0_29, %c0_30] : memref<10x10x128xf32, #tpu.memory_space<vmem>>, vector<1x10x128xf32>
    %263 = vector.shape_cast %262 : vector<1x10x128xf32> to vector<10x128xf32>
    %264 = vector.shape_cast %261 : vector<10x128xf32> to vector<1x10x128xf32>
    tpu.vector_store %arg7[%c8, %c0_29, %c0_30], %264 {strides = array<i32>} : memref<10x10x128xf32, #tpu.memory_space<vmem>>, vector<1x10x128xf32>,
    %c0_31 = arith.constant 0 : index
    %c0_32 = arith.constant 0 : index
    %c0_33 = arith.constant 0 : index
    %265 = vector.load %arg7[%c0_31, %c0_32, %c0_33] : memref<10x10x128xf32, #tpu.memory_space<vmem>>, vector<8x8x128xf32>
    %266 = vector.shape_cast %265 : vector<8x8x128xf32> to vector<64x128xf32>
    %267 = arith.truncf %266 : vector<64x128xf32> to vector<64x128xbf16>
    %c0_34 = arith.constant 0 : index
    %c0_35 = arith.constant 0 : index
    %c0_36 = arith.constant 0 : index
    %268 = vector.load %arg4[%c0_34, %c0_35, %c0_36] : memref<9x128x128xbf16, #tpu.memory_space<vmem>>, vector<1x128x128xbf16>
    %269 = vector.shape_cast %268 : vector<1x128x128xbf16> to vector<128x128xbf16>
    %cst_37 = arith.constant dense<0.000000e+00> : vector<64x128xf32>
    %270 = tpu.matmul %267, %269, %cst_37 {dimension_numbers = #tpu.dot_dimension_numbers<[1], [0], [0], [1], [0, 0, 1, 1], [], []>} : vector<64x128xbf16>, vector<128x128xbf16>, vector<64x128xf32> -> vector<64x128xf32>
    %c0_38 = arith.constant 0 : index
    %c1_39 = arith.constant 1 : index
    %c0_40 = arith.constant 0 : index
    %271 = vector.load %arg7[%c0_38, %c1_39, %c0_40] : memref<10x10x128xf32, #tpu.memory_space<vmem>>, vector<8x8x128xf32>
    %272 = vector.shape_cast %271 : vector<8x8x128xf32> to vector<64x128xf32>
    %273 = arith.truncf %272 : vector<64x128xf32> to vector<64x128xbf16>
    %c1_41 = arith.constant 1 : index
    %c0_42 = arith.constant 0 : index
    %c0_43 = arith.constant 0 : index
    %274 = vector.load %arg4[%c1_41, %c0_42, %c0_43] : memref<9x128x128xbf16, #tpu.memory_space<vmem>>, vector<1x128x128xbf16>
    %275 = vector.shape_cast %274 : vector<1x128x128xbf16> to vector<128x128xbf16>
    %cst_44 = arith.constant dense<0.000000e+00> : vector<64x128xf32>
    %276 = tpu.matmul %273, %275, %cst_44 {dimension_numbers = #tpu.dot_dimension_numbers<[1], [0], [0], [1], [0, 0, 1, 1], [], []>} : vector<64x128xbf16>, vector<128x128xbf16>, vector<64x128xf32> -> vector<64x128xf32>
    %277 = arith.addf %270, %276 : vector<64x128xf32>
    %c0_45 = arith.constant 0 : index
    %c2_46 = arith.constant 2 : index
    %c0_47 = arith.constant 0 : index
    %278 = vector.load %arg7[%c0_45, %c2_46, %c0_47] : memref<10x10x128xf32, #tpu.memory_space<vmem>>, vector<8x8x128xf32>
    %279 = vector.shape_cast %278 : vector<8x8x128xf32> to vector<64x128xf32>
    %280 = arith.truncf %279 : vector<64x128xf32> to vector<64x128xbf16>
    %c2_48 = arith.constant 2 : index
    %c0_49 = arith.constant 0 : index
    %c0_50 = arith.constant 0 : index
    %281 = vector.load %arg4[%c2_48, %c0_49, %c0_50] : memref<9x128x128xbf16, #tpu.memory_space<vmem>>, vector<1x128x128xbf16>
    %282 = vector.shape_cast %281 : vector<1x128x128xbf16> to vector<128x128xbf16>
    %cst_51 = arith.constant dense<0.000000e+00> : vector<64x128xf32>
    %283 = tpu.matmul %280, %282, %cst_51 {dimension_numbers = #tpu.dot_dimension_numbers<[1], [0], [0], [1], [0, 0, 1, 1], [], []>} : vector<64x128xbf16>, vector<128x128xbf16>, vector<64x128xf32> -> vector<64x128xf32>
    %284 = arith.addf %277, %283 : vector<64x128xf32>
    %c1_52 = arith.constant 1 : index
    %c0_53 = arith.constant 0 : index
    %c0_54 = arith.constant 0 : index
    %285 = vector.load %arg7[%c1_52, %c0_53, %c0_54] : memref<10x10x128xf32, #tpu.memory_space<vmem>>, vector<8x8x128xf32>
    %286 = vector.shape_cast %285 : vector<8x8x128xf32> to vector<64x128xf32>
    %287 = arith.truncf %286 : vector<64x128xf32> to vector<64x128xbf16>
    %c3_55 = arith.constant 3 : index
    %c0_56 = arith.constant 0 : index
    %c0_57 = arith.constant 0 : index
    %288 = vector.load %arg4[%c3_55, %c0_56, %c0_57] : memref<9x128x128xbf16, #tpu.memory_space<vmem>>, vector<1x128x128xbf16>
    %289 = vector.shape_cast %288 : vector<1x128x128xbf16> to vector<128x128xbf16>
    %cst_58 = arith.constant dense<0.000000e+00> : vector<64x128xf32>
    %290 = tpu.matmul %287, %289, %cst_58 {dimension_numbers = #tpu.dot_dimension_numbers<[1], [0], [0], [1], [0, 0, 1, 1], [], []>} : vector<64x128xbf16>, vector<128x128xbf16>, vector<64x128xf32> -> vector<64x128xf32>
    %291 = arith.addf %284, %290 : vector<64x128xf32>
    %c1_59 = arith.constant 1 : index
    %c1_60 = arith.constant 1 : index
    %c0_61 = arith.constant 0 : index
    %292 = vector.load %arg7[%c1_59, %c1_60, %c0_61] : memref<10x10x128xf32, #tpu.memory_space<vmem>>, vector<8x8x128xf32>
    %293 = vector.shape_cast %292 : vector<8x8x128xf32> to vector<64x128xf32>
    %294 = arith.truncf %293 : vector<64x128xf32> to vector<64x128xbf16>
    %c4_62 = arith.constant 4 : index
    %c0_63 = arith.constant 0 : index
    %c0_64 = arith.constant 0 : index
    %295 = vector.load %arg4[%c4_62, %c0_63, %c0_64] : memref<9x128x128xbf16, #tpu.memory_space<vmem>>, vector<1x128x128xbf16>
    %296 = vector.shape_cast %295 : vector<1x128x128xbf16> to vector<128x128xbf16>
    %cst_65 = arith.constant dense<0.000000e+00> : vector<64x128xf32>
    %297 = tpu.matmul %294, %296, %cst_65 {dimension_numbers = #tpu.dot_dimension_numbers<[1], [0], [0], [1], [0, 0, 1, 1], [], []>} : vector<64x128xbf16>, vector<128x128xbf16>, vector<64x128xf32> -> vector<64x128xf32>
    %298 = arith.addf %291, %297 : vector<64x128xf32>
    %c1_66 = arith.constant 1 : index
    %c2_67 = arith.constant 2 : index
    %c0_68 = arith.constant 0 : index
    %299 = vector.load %arg7[%c1_66, %c2_67, %c0_68] : memref<10x10x128xf32, #tpu.memory_space<vmem>>, vector<8x8x128xf32>
    %300 = vector.shape_cast %299 : vector<8x8x128xf32> to vector<64x128xf32>
    %301 = arith.truncf %300 : vector<64x128xf32> to vector<64x128xbf16>
    %c5_69 = arith.constant 5 : index
    %c0_70 = arith.constant 0 : index
    %c0_71 = arith.constant 0 : index
    %302 = vector.load %arg4[%c5_69, %c0_70, %c0_71] : memref<9x128x128xbf16, #tpu.memory_space<vmem>>, vector<1x128x128xbf16>
    %303 = vector.shape_cast %302 : vector<1x128x128xbf16> to vector<128x128xbf16>
    %cst_72 = arith.constant dense<0.000000e+00> : vector<64x128xf32>
    %304 = tpu.matmul %301, %303, %cst_72 {dimension_numbers = #tpu.dot_dimension_numbers<[1], [0], [0], [1], [0, 0, 1, 1], [], []>} : vector<64x128xbf16>, vector<128x128xbf16>, vector<64x128xf32> -> vector<64x128xf32>
    %305 = arith.addf %298, %304 : vector<64x128xf32>
    %c2_73 = arith.constant 2 : index
    %c0_74 = arith.constant 0 : index
    %c0_75 = arith.constant 0 : index
    %306 = vector.load %arg7[%c2_73, %c0_74, %c0_75] : memref<10x10x128xf32, #tpu.memory_space<vmem>>, vector<8x8x128xf32>
    %307 = vector.shape_cast %306 : vector<8x8x128xf32> to vector<64x128xf32>
    %308 = arith.truncf %307 : vector<64x128xf32> to vector<64x128xbf16>
    %c6_76 = arith.constant 6 : index
    %c0_77 = arith.constant 0 : index
    %c0_78 = arith.constant 0 : index
    %309 = vector.load %arg4[%c6_76, %c0_77, %c0_78] : memref<9x128x128xbf16, #tpu.memory_space<vmem>>, vector<1x128x128xbf16>
    %310 = vector.shape_cast %309 : vector<1x128x128xbf16> to vector<128x128xbf16>
    %cst_79 = arith.constant dense<0.000000e+00> : vector<64x128xf32>
    %311 = tpu.matmul %308, %310, %cst_79 {dimension_numbers = #tpu.dot_dimension_numbers<[1], [0], [0], [1], [0, 0, 1, 1], [], []>} : vector<64x128xbf16>, vector<128x128xbf16>, vector<64x128xf32> -> vector<64x128xf32>
    %312 = arith.addf %305, %311 : vector<64x128xf32>
    %c2_80 = arith.constant 2 : index
    %c1_81 = arith.constant 1 : index
    %c0_82 = arith.constant 0 : index
    %313 = vector.load %arg7[%c2_80, %c1_81, %c0_82] : memref<10x10x128xf32, #tpu.memory_space<vmem>>, vector<8x8x128xf32>
    %314 = vector.shape_cast %313 : vector<8x8x128xf32> to vector<64x128xf32>
    %315 = arith.truncf %314 : vector<64x128xf32> to vector<64x128xbf16>
    %c7_83 = arith.constant 7 : index
    %c0_84 = arith.constant 0 : index
    %c0_85 = arith.constant 0 : index
    %316 = vector.load %arg4[%c7_83, %c0_84, %c0_85] : memref<9x128x128xbf16, #tpu.memory_space<vmem>>, vector<1x128x128xbf16>
    %317 = vector.shape_cast %316 : vector<1x128x128xbf16> to vector<128x128xbf16>
    %cst_86 = arith.constant dense<0.000000e+00> : vector<64x128xf32>
    %318 = tpu.matmul %315, %317, %cst_86 {dimension_numbers = #tpu.dot_dimension_numbers<[1], [0], [0], [1], [0, 0, 1, 1], [], []>} : vector<64x128xbf16>, vector<128x128xbf16>, vector<64x128xf32> -> vector<64x128xf32>
    %319 = arith.addf %312, %318 : vector<64x128xf32>
    %c2_87 = arith.constant 2 : index
    %c2_88 = arith.constant 2 : index
    %c0_89 = arith.constant 0 : index
    %320 = vector.load %arg7[%c2_87, %c2_88, %c0_89] : memref<10x10x128xf32, #tpu.memory_space<vmem>>, vector<8x8x128xf32>
    %321 = vector.shape_cast %320 : vector<8x8x128xf32> to vector<64x128xf32>
    %322 = arith.truncf %321 : vector<64x128xf32> to vector<64x128xbf16>
    %c8_90 = arith.constant 8 : index
    %c0_91 = arith.constant 0 : index
    %c0_92 = arith.constant 0 : index
    %323 = vector.load %arg4[%c8_90, %c0_91, %c0_92] : memref<9x128x128xbf16, #tpu.memory_space<vmem>>, vector<1x128x128xbf16>
    %324 = vector.shape_cast %323 : vector<1x128x128xbf16> to vector<128x128xbf16>
    %cst_93 = arith.constant dense<0.000000e+00> : vector<64x128xf32>
    %325 = tpu.matmul %322, %324, %cst_93 {dimension_numbers = #tpu.dot_dimension_numbers<[1], [0], [0], [1], [0, 0, 1, 1], [], []>} : vector<64x128xbf16>, vector<128x128xbf16>, vector<64x128xf32> -> vector<64x128xf32>
    %326 = arith.addf %319, %325 : vector<64x128xf32>
    %c0_94 = arith.constant 0 : index
    %c0_95 = arith.constant 0 : index
    %327 = vector.load %arg5[%c0_94, %c0_95] : memref<1x128xf32, #tpu.memory_space<vmem>>, vector<1x128xf32>
    %328 = vector.broadcast %327 : vector<1x128xf32> to vector<64x128xf32>
    %329 = arith.addf %326, %328 : vector<64x128xf32>
    %cst_96 = arith.constant 0.000000e+00 : f32
    %330 = vector.broadcast %cst_96 : f32 to vector<64x128xf32>
    %331 = arith.maximumf %329, %330 : vector<64x128xf32>
    %332 = vector.extract_strided_slice %331 {offsets = [0, 0], sizes = [8, 128], strides = [1, 1]} : vector<64x128xf32> to vector<8x128xf32>
    %333 = vector.extract_strided_slice %331 {offsets = [8, 0], sizes = [8, 128], strides = [1, 1]} : vector<64x128xf32> to vector<8x128xf32>
    %334 = arith.maximumf %332, %333 : vector<8x128xf32>
    %335 = vector.extract_strided_slice %334 {offsets = [0, 0], sizes = [1, 128], strides = [1, 1]} : vector<8x128xf32> to vector<1x128xf32>
    %336 = vector.extract_strided_slice %334 {offsets = [1, 0], sizes = [1, 128], strides = [1, 1]} : vector<8x128xf32> to vector<1x128xf32>
    %337 = arith.maximumf %335, %336 : vector<1x128xf32>
    %338 = vector.extract_strided_slice %334 {offsets = [2, 0], sizes = [1, 128], strides = [1, 1]} : vector<8x128xf32> to vector<1x128xf32>
    %339 = vector.extract_strided_slice %334 {offsets = [3, 0], sizes = [1, 128], strides = [1, 1]} : vector<8x128xf32> to vector<1x128xf32>
    %340 = arith.maximumf %338, %339 : vector<1x128xf32>
    %341 = vector.extract_strided_slice %334 {offsets = [4, 0], sizes = [1, 128], strides = [1, 1]} : vector<8x128xf32> to vector<1x128xf32>
    %342 = vector.extract_strided_slice %334 {offsets = [5, 0], sizes = [1, 128], strides = [1, 1]} : vector<8x128xf32> to vector<1x128xf32>
    %343 = arith.maximumf %341, %342 : vector<1x128xf32>
    %344 = vector.extract_strided_slice %334 {offsets = [6, 0], sizes = [1, 128], strides = [1, 1]} : vector<8x128xf32> to vector<1x128xf32>
    %345 = vector.extract_strided_slice %334 {offsets = [7, 0], sizes = [1, 128], strides = [1, 1]} : vector<8x128xf32> to vector<1x128xf32>
    %346 = arith.maximumf %344, %345 : vector<1x128xf32>
    %347 = tpu.concatenate %337, %340, %343, %346 in 0 : vector<1x128xf32>, vector<1x128xf32>, vector<1x128xf32>, vector<1x128xf32> -> vector<4x128xf32>
    %c0_97 = arith.constant 0 : index
    %c0_98 = arith.constant 0 : index
    %c0_99 = arith.constant 0 : index
    %c0_100 = arith.constant 0 : index
    %348 = vector.load %arg6[%c0_97, %c0_98, %c0_99, %c0_100] : memref<1x4x4x128xf32, #tpu.memory_space<vmem>>, vector<1x1x4x128xf32>
    %349 = vector.shape_cast %348 : vector<1x1x4x128xf32> to vector<4x128xf32>
    %350 = vector.shape_cast %347 : vector<4x128xf32> to vector<1x1x4x128xf32>
    tpu.vector_store %arg6[%c0_97, %c0_98, %c0_99, %c0_100], %350 {strides = array<i32>} : memref<1x4x4x128xf32, #tpu.memory_space<vmem>>, vector<1x1x4x128xf32>,
    %351 = vector.extract_strided_slice %331 {offsets = [16, 0], sizes = [8, 128], strides = [1, 1]} : vector<64x128xf32> to vector<8x128xf32>
    %352 = vector.extract_strided_slice %331 {offsets = [24, 0], sizes = [8, 128], strides = [1, 1]} : vector<64x128xf32> to vector<8x128xf32>
    %353 = arith.maximumf %351, %352 : vector<8x128xf32>
    %354 = vector.extract_strided_slice %353 {offsets = [0, 0], sizes = [1, 128], strides = [1, 1]} : vector<8x128xf32> to vector<1x128xf32>
    %355 = vector.extract_strided_slice %353 {offsets = [1, 0], sizes = [1, 128], strides = [1, 1]} : vector<8x128xf32> to vector<1x128xf32>
    %356 = arith.maximumf %354, %355 : vector<1x128xf32>
    %357 = vector.extract_strided_slice %353 {offsets = [2, 0], sizes = [1, 128], strides = [1, 1]} : vector<8x128xf32> to vector<1x128xf32>
    %358 = vector.extract_strided_slice %353 {offsets = [3, 0], sizes = [1, 128], strides = [1, 1]} : vector<8x128xf32> to vector<1x128xf32>
    %359 = arith.maximumf %357, %358 : vector<1x128xf32>
    %360 = vector.extract_strided_slice %353 {offsets = [4, 0], sizes = [1, 128], strides = [1, 1]} : vector<8x128xf32> to vector<1x128xf32>
    %361 = vector.extract_strided_slice %353 {offsets = [5, 0], sizes = [1, 128], strides = [1, 1]} : vector<8x128xf32> to vector<1x128xf32>
    %362 = arith.maximumf %360, %361 : vector<1x128xf32>
    %363 = vector.extract_strided_slice %353 {offsets = [6, 0], sizes = [1, 128], strides = [1, 1]} : vector<8x128xf32> to vector<1x128xf32>
    %364 = vector.extract_strided_slice %353 {offsets = [7, 0], sizes = [1, 128], strides = [1, 1]} : vector<8x128xf32> to vector<1x128xf32>
    %365 = arith.maximumf %363, %364 : vector<1x128xf32>
    %366 = tpu.concatenate %356, %359, %362, %365 in 0 : vector<1x128xf32>, vector<1x128xf32>, vector<1x128xf32>, vector<1x128xf32> -> vector<4x128xf32>
    %c0_101 = arith.constant 0 : index
    %c1_102 = arith.constant 1 : index
    %c0_103 = arith.constant 0 : index
    %c0_104 = arith.constant 0 : index
    %367 = vector.load %arg6[%c0_101, %c1_102, %c0_103, %c0_104] : memref<1x4x4x128xf32, #tpu.memory_space<vmem>>, vector<1x1x4x128xf32>
    %368 = vector.shape_cast %367 : vector<1x1x4x128xf32> to vector<4x128xf32>
    %369 = vector.shape_cast %366 : vector<4x128xf32> to vector<1x1x4x128xf32>
    tpu.vector_store %arg6[%c0_101, %c1_102, %c0_103, %c0_104], %369 {strides = array<i32>} : memref<1x4x4x128xf32, #tpu.memory_space<vmem>>, vector<1x1x4x128xf32>,
    %370 = vector.extract_strided_slice %331 {offsets = [32, 0], sizes = [8, 128], strides = [1, 1]} : vector<64x128xf32> to vector<8x128xf32>
    %371 = vector.extract_strided_slice %331 {offsets = [40, 0], sizes = [8, 128], strides = [1, 1]} : vector<64x128xf32> to vector<8x128xf32>
    %372 = arith.maximumf %370, %371 : vector<8x128xf32>
    %373 = vector.extract_strided_slice %372 {offsets = [0, 0], sizes = [1, 128], strides = [1, 1]} : vector<8x128xf32> to vector<1x128xf32>
    %374 = vector.extract_strided_slice %372 {offsets = [1, 0], sizes = [1, 128], strides = [1, 1]} : vector<8x128xf32> to vector<1x128xf32>
    %375 = arith.maximumf %373, %374 : vector<1x128xf32>
    %376 = vector.extract_strided_slice %372 {offsets = [2, 0], sizes = [1, 128], strides = [1, 1]} : vector<8x128xf32> to vector<1x128xf32>
    %377 = vector.extract_strided_slice %372 {offsets = [3, 0], sizes = [1, 128], strides = [1, 1]} : vector<8x128xf32> to vector<1x128xf32>
    %378 = arith.maximumf %376, %377 : vector<1x128xf32>
    %379 = vector.extract_strided_slice %372 {offsets = [4, 0], sizes = [1, 128], strides = [1, 1]} : vector<8x128xf32> to vector<1x128xf32>
    %380 = vector.extract_strided_slice %372 {offsets = [5, 0], sizes = [1, 128], strides = [1, 1]} : vector<8x128xf32> to vector<1x128xf32>
    %381 = arith.maximumf %379, %380 : vector<1x128xf32>
    %382 = vector.extract_strided_slice %372 {offsets = [6, 0], sizes = [1, 128], strides = [1, 1]} : vector<8x128xf32> to vector<1x128xf32>
    %383 = vector.extract_strided_slice %372 {offsets = [7, 0], sizes = [1, 128], strides = [1, 1]} : vector<8x128xf32> to vector<1x128xf32>
    %384 = arith.maximumf %382, %383 : vector<1x128xf32>
    %385 = tpu.concatenate %375, %378, %381, %384 in 0 : vector<1x128xf32>, vector<1x128xf32>, vector<1x128xf32>, vector<1x128xf32> -> vector<4x128xf32>
    %c0_105 = arith.constant 0 : index
    %c2_106 = arith.constant 2 : index
    %c0_107 = arith.constant 0 : index
    %c0_108 = arith.constant 0 : index
    %386 = vector.load %arg6[%c0_105, %c2_106, %c0_107, %c0_108] : memref<1x4x4x128xf32, #tpu.memory_space<vmem>>, vector<1x1x4x128xf32>
    %387 = vector.shape_cast %386 : vector<1x1x4x128xf32> to vector<4x128xf32>
    %388 = vector.shape_cast %385 : vector<4x128xf32> to vector<1x1x4x128xf32>
    tpu.vector_store %arg6[%c0_105, %c2_106, %c0_107, %c0_108], %388 {strides = array<i32>} : memref<1x4x4x128xf32, #tpu.memory_space<vmem>>, vector<1x1x4x128xf32>,
    %389 = vector.extract_strided_slice %331 {offsets = [48, 0], sizes = [8, 128], strides = [1, 1]} : vector<64x128xf32> to vector<8x128xf32>
    %390 = vector.extract_strided_slice %331 {offsets = [56, 0], sizes = [8, 128], strides = [1, 1]} : vector<64x128xf32> to vector<8x128xf32>
    %391 = arith.maximumf %389, %390 : vector<8x128xf32>
    %392 = vector.extract_strided_slice %391 {offsets = [0, 0], sizes = [1, 128], strides = [1, 1]} : vector<8x128xf32> to vector<1x128xf32>
    %393 = vector.extract_strided_slice %391 {offsets = [1, 0], sizes = [1, 128], strides = [1, 1]} : vector<8x128xf32> to vector<1x128xf32>
    %394 = arith.maximumf %392, %393 : vector<1x128xf32>
    %395 = vector.extract_strided_slice %391 {offsets = [2, 0], sizes = [1, 128], strides = [1, 1]} : vector<8x128xf32> to vector<1x128xf32>
    %396 = vector.extract_strided_slice %391 {offsets = [3, 0], sizes = [1, 128], strides = [1, 1]} : vector<8x128xf32> to vector<1x128xf32>
    %397 = arith.maximumf %395, %396 : vector<1x128xf32>
    %398 = vector.extract_strided_slice %391 {offsets = [4, 0], sizes = [1, 128], strides = [1, 1]} : vector<8x128xf32> to vector<1x128xf32>
    %399 = vector.extract_strided_slice %391 {offsets = [5, 0], sizes = [1, 128], strides = [1, 1]} : vector<8x128xf32> to vector<1x128xf32>
    %400 = arith.maximumf %398, %399 : vector<1x128xf32>
    %401 = vector.extract_strided_slice %391 {offsets = [6, 0], sizes = [1, 128], strides = [1, 1]} : vector<8x128xf32> to vector<1x128xf32>
    %402 = vector.extract_strided_slice %391 {offsets = [7, 0], sizes = [1, 128], strides = [1, 1]} : vector<8x128xf32> to vector<1x128xf32>
    %403 = arith.maximumf %401, %402 : vector<1x128xf32>
    %404 = tpu.concatenate %394, %397, %400, %403 in 0 : vector<1x128xf32>, vector<1x128xf32>, vector<1x128xf32>, vector<1x128xf32> -> vector<4x128xf32>
    %c0_109 = arith.constant 0 : index
    %c3_110 = arith.constant 3 : index
    %c0_111 = arith.constant 0 : index
    %c0_112 = arith.constant 0 : index
    %405 = vector.load %arg6[%c0_109, %c3_110, %c0_111, %c0_112] : memref<1x4x4x128xf32, #tpu.memory_space<vmem>>, vector<1x1x4x128xf32>
    %406 = vector.shape_cast %405 : vector<1x1x4x128xf32> to vector<4x128xf32>
    %407 = vector.shape_cast %404 : vector<4x128xf32> to vector<1x1x4x128xf32>
    tpu.vector_store %arg6[%c0_109, %c3_110, %c0_111, %c0_112], %407 {strides = array<i32>} : memref<1x4x4x128xf32, #tpu.memory_space<vmem>>, vector<1x1x4x128xf32>,
    return
  }
  func.func @transform_0(%arg0: i32) -> (i32, i32, i32, i32) {
    %c0_i32 = arith.constant 0 : i32
    %c0_i32_0 = arith.constant 0 : i32
    %c0_i32_1 = arith.constant 0 : i32
    %c0_i32_2 = arith.constant 0 : i32
    return %arg0, %c0_i32, %c0_i32_0, %c0_i32_1 : i32, i32, i32, i32
  }
  func.func @transform_1(%arg0: i32) -> (i32, i32) {
    %c0_i32 = arith.constant 0 : i32
    %c0_i32_0 = arith.constant 0 : i32
    %c0_i32_1 = arith.constant 0 : i32
    return %c0_i32, %c0_i32_0 : i32, i32
  }
  func.func @transform_2(%arg0: i32) -> (i32, i32) {
    %c0_i32 = arith.constant 0 : i32
    %c0_i32_0 = arith.constant 0 : i32
    %c0_i32_1 = arith.constant 0 : i32
    return %c0_i32, %c0_i32_0 : i32, i32
  }
  func.func @transform_3(%arg0: i32) -> (i32, i32, i32) {
    %c0_i32 = arith.constant 0 : i32
    %c0_i32_0 = arith.constant 0 : i32
    %c0_i32_1 = arith.constant 0 : i32
    %c0_i32_2 = arith.constant 0 : i32
    return %c0_i32, %c0_i32_0, %c0_i32_1 : i32, i32, i32
  }
  func.func @transform_4(%arg0: i32) -> (i32, i32) {
    %c0_i32 = arith.constant 0 : i32
    %c0_i32_0 = arith.constant 0 : i32
    %c0_i32_1 = arith.constant 0 : i32
    return %c0_i32, %c0_i32_0 : i32, i32
  }
  func.func @transform_5(%arg0: i32) -> (i32, i32, i32, i32) {
    %c0_i32 = arith.constant 0 : i32
    %c0_i32_0 = arith.constant 0 : i32
    %c0_i32_1 = arith.constant 0 : i32
    %c0_i32_2 = arith.constant 0 : i32
    return %arg0, %c0_i32, %c0_i32_0, %c0_i32_1 : i32, i32, i32, i32
  }
}

</mosaic_0001>

<llo_original>
// kernel: simple_encoder_forward.1
$region0: #{simple_encoder_forward.1}
  #allocation0 [shape = 'u32[]', space=smem, size = 0x4, offset = 0x4, fixed_abs, tag = 'smem constant byte address 0x4 - core index']
  #allocation1 [shape = 'u32[144,128]{1,0:T(1,128)}', space=vmem, size = 0x12000, scoped, tag = 'internal scratch']
  #allocation2 [shape = 'f32[10,10,128]{2,1,0:T(8,128)}', space=vmem, size = 0x14000, scoped, tag = 'scratch operand']
  %s0 = inlined_call_operand.vmem [shape: bf16[2,16,16,128], index: 0, kind: input, shape index: {}]
  %s1 = inlined_call_operand.vmem [shape: bf16[128,128], index: 1, kind: input, shape index: {}]
  %s2 = inlined_call_operand.vmem [shape: f32[1,128], index: 2, kind: input, shape index: {}]
  %s3 = inlined_call_operand.vmem [shape: bf16[9,128,128], index: 3, kind: input, shape index: {}]
  %s4 = inlined_call_operand.vmem [shape: f32[1,128], index: 4, kind: input, shape index: {}]
  %s5 = inlined_call_operand.hbm [shape: f32[2,4,4,128], index: 5, kind: output, shape index: {}]
  %s6 = sld [smem:[#allocation0]]
  $region53: #{simple_encoder_forward.1} parent=0
    _
  %s8 = ssub.s32 1, %s6
  %s9 = scalar_select 0, %s8, %s6
  $region1: #{simple_encoder_forward.1} parent=0
    #allocation3 [shape = 'u8[16384]{0}', space=vmem, size = 0x4000, scoped, tag = 'output window, operand 0']
    #allocation4 [shape = 's32[2]{0}', space=sflag, size = 0x8, scoped, tag = 'scoped memory for simple_encoder_forward.1']
    %10 = vsyncpa [#allocation4], 0
    %s11 = scalar_lea.sflag [#allocation4], 1
    %12 = vsyncpa %s11, 0
    loop: start=0, step=1, limit=4
    $region2: #{simple_encoder_forward.1} parent=1 // loop_pre_header
      _
    $region3: #{simple_encoder_forward.1} parent=1 // loop_header
      %s14 = sphi 0, %s18
      %p15 = scmp.ge.s32.totalorder %s14, 4
      %s24 = sphi 0, %s26
      %s27 = sphi 0, %s24
      %s28 = sphi 0, %s27
      %s44 = sphi 0, %s28
      %s48 = sphi 0, %s48
      %s50 = sphi 0, %s48
      %s51 = sphi 0, %s50
      %s65 = sphi 0, %s51
      %s69 = sphi 0, %s69
      %s71 = sphi 0, %s69
      %s72 = sphi 0, %s71
      %s86 = sphi 0, %s72
      %s90 = sphi 0, %s90
      %s92 = sphi 0, %s90
      %s93 = sphi 0, %s92
      %s107 = sphi 0, %s93
      %s111 = sphi 0, %s111
      %s113 = sphi 0, %s111
      %s114 = sphi 0, %s113
      %s128 = sphi 0, %s114
      %s134 = sphi 0, %s136
      %s137 = sphi 0, %s134
      %s138 = sphi 0, %s137
      %s154 = sphi 0, %s138
    $region4: #{simple_encoder_forward.1} parent=1 // loop_header_branch
      %17 = sbr.rel (%p15) target = $region8
    $region5: #{simple_encoder_forward.1} parent=1 // loop_body
      %s19 = ssub.s32 %s14, 1
      %s20 = ssub.s32 %s14, 2
      %s21 = sadd.s32 %s14, 1
      %s22 = ssub.s32 %s14, %s21
      %p23 = scmp.eq.s32.totalorder %s22, 0
      %s25 = sadd.s32 %s24, 1
      %s26 = scalar_select %p23, %s24, %s25
      %p29 = pneg %p23
      %p30 = scmp.eq.s32.totalorder %s14, 1
      %p31 = por %p29, %p30
      %p32 = scmp.ne.s32.totalorder %s24, %s27
      %p33 = scmp.eq.s32.totalorder %s14, 0
      %p34 = por %p32, %p33
      %p35 = scmp.ne.s32.totalorder %s24, %s27
      %p36 = scmp.eq.s32.totalorder %s19, 1
      %p37 = por %p35, %p36
      %p38 = scmp.ne.s32.totalorder %s27, %s28
      %p39 = scmp.eq.s32.totalorder %s19, 0
      %p40 = por %p38, %p39
      %p41 = scmp.ne.s32.totalorder %s27, %s28
      %p42 = scmp.eq.s32.totalorder %s20, 1
      %p43 = por %p41, %p42
      %p45 = scmp.ne.s32.totalorder %s28, %s44
      %p46 = scmp.eq.s32.totalorder %s20, 0
      %p47 = por %p45, %p46
      %s49 = sadd.s32 %s48, 1
      %p52 = scmp.eq.s32.totalorder %s14, 1
      %p53 = scmp.ne.s32.totalorder %s48, %s50
      %p54 = scmp.eq.s32.totalorder %s14, 0
      %p55 = por %p53, %p54
      %p56 = scmp.ne.s32.totalorder %s48, %s50
      %p57 = scmp.eq.s32.totalorder %s19, 1
      %p58 = por %p56, %p57
      %p59 = scmp.ne.s32.totalorder %s50, %s51
      %p60 = scmp.eq.s32.totalorder %s19, 0
      %p61 = por %p59, %p60
      %p62 = scmp.ne.s32.totalorder %s50, %s51
      %p63 = scmp.eq.s32.totalorder %s20, 1
      %p64 = por %p62, %p63
      %p66 = scmp.ne.s32.totalorder %s51, %s65
      %p67 = scmp.eq.s32.totalorder %s20, 0
      %p68 = por %p66, %p67
      %s70 = sadd.s32 %s69, 1
      %p73 = scmp.eq.s32.totalorder %s14, 1
      %p74 = scmp.ne.s32.totalorder %s69, %s71
      %p75 = scmp.eq.s32.totalorder %s14, 0
      %p76 = por %p74, %p75
      %p77 = scmp.ne.s32.totalorder %s69, %s71
      %p78 = scmp.eq.s32.totalorder %s19, 1
      %p79 = por %p77, %p78
      %p80 = scmp.ne.s32.totalorder %s71, %s72
      %p81 = scmp.eq.s32.totalorder %s19, 0
      %p82 = por %p80, %p81
      %p83 = scmp.ne.s32.totalorder %s71, %s72
      %p84 = scmp.eq.s32.totalorder %s20, 1
      %p85 = por %p83, %p84
      %p87 = scmp.ne.s32.totalorder %s72, %s86
      %p88 = scmp.eq.s32.totalorder %s20, 0
      %p89 = por %p87, %p88
      %s91 = sadd.s32 %s90, 1
      %p94 = scmp.eq.s32.totalorder %s14, 1
      %p95 = scmp.ne.s32.totalorder %s90, %s92
      %p96 = scmp.eq.s32.totalorder %s14, 0
      %p97 = por %p95, %p96
      %p98 = scmp.ne.s32.totalorder %s90, %s92
      %p99 = scmp.eq.s32.totalorder %s19, 1
      %p100 = por %p98, %p99
      %p101 = scmp.ne.s32.totalorder %s92, %s93
      %p102 = scmp.eq.s32.totalorder %s19, 0
      %p103 = por %p101, %p102
      %p104 = scmp.ne.s32.totalorder %s92, %s93
      %p105 = scmp.eq.s32.totalorder %s20, 1
      %p106 = por %p104, %p105
      %p108 = scmp.ne.s32.totalorder %s93, %s107
      %p109 = scmp.eq.s32.totalorder %s20, 0
      %p110 = por %p108, %p109
      %s112 = sadd.s32 %s111, 1
      %p115 = scmp.eq.s32.totalorder %s14, 1
      %p116 = scmp.ne.s32.totalorder %s111, %s113
      %p117 = scmp.eq.s32.totalorder %s14, 0
      %p118 = por %p116, %p117
      %p119 = scmp.ne.s32.totalorder %s111, %s113
      %p120 = scmp.eq.s32.totalorder %s19, 1
      %p121 = por %p119, %p120
      %p122 = scmp.ne.s32.totalorder %s113, %s114
      %p123 = scmp.eq.s32.totalorder %s19, 0
      %p124 = por %p122, %p123
      %p125 = scmp.ne.s32.totalorder %s113, %s114
      %p126 = scmp.eq.s32.totalorder %s20, 1
      %p127 = por %p125, %p126
      %p129 = scmp.ne.s32.totalorder %s114, %s128
      %p130 = scmp.eq.s32.totalorder %s20, 0
      %p131 = por %p129, %p130
      %s132 = ssub.s32 %s14, %s21
      %p133 = scmp.eq.s32.totalorder %s132, 0
      %s135 = sadd.s32 %s134, 1
      %s136 = scalar_select %p133, %s134, %s135
      %p139 = pneg %p133
      %p140 = scmp.eq.s32.totalorder %s14, 1
      %p141 = por %p139, %p140
      %p142 = scmp.ne.s32.totalorder %s134, %s137
      %p143 = scmp.eq.s32.totalorder %s14, 0
      %p144 = por %p142, %p143
      %p145 = scmp.ne.s32.totalorder %s134, %s137
      %p146 = scmp.eq.s32.totalorder %s19, 1
      %p147 = por %p145, %p146
      %p148 = scmp.ne.s32.totalorder %s137, %s138
      %p149 = scmp.eq.s32.totalorder %s19, 0
      %p150 = por %p148, %p149
      %p151 = scmp.ne.s32.totalorder %s137, %s138
      %p152 = scmp.eq.s32.totalorder %s20, 1
      %p153 = por %p151, %p152
      %p155 = scmp.ne.s32.totalorder %s138, %s154
      %p156 = scmp.eq.s32.totalorder %s20, 0
      %p157 = por %p155, %p156
      %p158 = scmp.le.s32.totalorder 1, %s14
      %p159 = scmp.lt.s32.totalorder %s14, 3
      %p160 = pnand %p158, %p159
      %p161 = pneg %p160
      // Predicated region
      $region9: #{simple_encoder_forward.1} parent=5 // pred_check
        _
      $region10: #{simple_encoder_forward.1} parent=5 // pred_check_branch
        %163 = sbr.rel (%p160) target = $region12
      $region11: #{simple_encoder_forward.1} parent=5 // pred_region
        %s164 = ssub.s32 %s14, 1
        // Predicated region
        $region13: #{simple_encoder_forward.1} parent=11 // pred_check
          %p165 = pneg %p61
        $region14: #{simple_encoder_forward.1} parent=11 // pred_check_branch
          %167 = sbr.rel (%p165) target = $region16
        $region15: #{simple_encoder_forward.1} parent=11 // pred_region
          _
        $region16: #{simple_encoder_forward.1} parent=11 // pred_fallthru
          _
        // Predicated region
        $region17: #{simple_encoder_forward.1} parent=11 // pred_check
          %p168 = pneg %p82
        $region18: #{simple_encoder_forward.1} parent=11 // pred_check_branch
          %170 = sbr.rel (%p168) target = $region20
        $region19: #{simple_encoder_forward.1} parent=11 // pred_region
          _
        $region20: #{simple_encoder_forward.1} parent=11 // pred_fallthru
          _
        // Predicated region
        $region21: #{simple_encoder_forward.1} parent=11 // pred_check
          %p171 = pneg %p103
        $region22: #{simple_encoder_forward.1} parent=11 // pred_check_branch
          %173 = sbr.rel (%p171) target = $region24
        $region23: #{simple_encoder_forward.1} parent=11 // pred_region
          _
        $region24: #{simple_encoder_forward.1} parent=11 // pred_fallthru
          _
        // Predicated region
        $region25: #{simple_encoder_forward.1} parent=11 // pred_check
          %p174 = pneg %p124
        $region26: #{simple_encoder_forward.1} parent=11 // pred_check_branch
          %176 = sbr.rel (%p174) target = $region28
        $region27: #{simple_encoder_forward.1} parent=11 // pred_region
          _
        $region28: #{simple_encoder_forward.1} parent=11 // pred_fallthru
          _
      $region12: #{simple_encoder_forward.1} parent=5 // pred_fallthru
        _
      %p177 = scmp.lt.s32.totalorder %s14, 2
      // Predicated region
      $region29: #{simple_encoder_forward.1} parent=5 // pred_check
        %p178 = pneg %p177
      $region30: #{simple_encoder_forward.1} parent=5 // pred_check_branch
        %180 = sbr.rel (%p178) target = $region32
      $region31: #{simple_encoder_forward.1} parent=5 // pred_region
        // Predicated region
        $region33: #{simple_encoder_forward.1} parent=31 // pred_check
          %p181 = pneg %p34
        $region34: #{simple_encoder_forward.1} parent=31 // pred_check_branch
          %183 = sbr.rel (%p181) target = $region36
        $region35: #{simple_encoder_forward.1} parent=31 // pred_region
          %p184 = scmp.lt.s32.totalorder %s14, 1
          %s185 = scalar_select %p184, %s14, 1
          %s186 = smul.addr %s185, 32
          %s187 = smul.addr %s186, 4
          %s188 = scalar_lea.vmem %s0, %s187
        $region36: #{simple_encoder_forward.1} parent=31 // pred_fallthru
          _
      $region32: #{simple_encoder_forward.1} parent=5 // pred_fallthru
        _
      %p189 = scmp.le.s32.totalorder 1, %s14
      %p190 = scmp.lt.s32.totalorder %s14, 3
      %p191 = pnand %p189, %p190
      %p192 = pneg %p191
      // Predicated region
      $region37: #{simple_encoder_forward.1} parent=5 // pred_check
        _
      $region38: #{simple_encoder_forward.1} parent=5 // pred_check_branch
        %194 = sbr.rel (%p191) target = $region40
      $region39: #{simple_encoder_forward.1} parent=5 // pred_region
        %s195 = ssub.s32 %s14, 1
        %p196 = scmp.lt.s32.totalorder %s19, 1
        %s197 = scalar_select %p196, %s19, 1
        %s198 = smul.addr %s197, 32
        %s199 = smul.addr %s198, 4
        %s200 = scalar_lea.vmem %s0, %s199
        %p201 = pneg %p40
        %p202 = pneg %p37
        %p203 = pneg %p61
        %p204 = pneg %p58
        %p205 = pneg %p82
        %p206 = pneg %p79
        %p207 = pneg %p103
        %p208 = pneg %p100
        %p209 = pneg %p124
        %p210 = pneg %p121
        %p211 = pneg %p150
        %p212 = pneg %p147
        %s213 = sand.u32 %s137, 1
        %s214 = scalar_lea.sflag [#allocation4], %s213
        %s215 = sand.u32 %s137, 1
        %s216 = smul.addr %s215, 16
        %s217 = scalar_lea.vmem [#allocation3], %s216
        %p218 = scmp.lt.s32.totalorder %s19, 1
        %s219 = scalar_select %p218, %s19, 1
        %s220 = smul.addr %s219, 32
        %s221 = smul.addr %s220, 4
        %s222 = scalar_lea.vmem %s0, %s221
        %v224 = vld [vmem:[%s222] sm:$0xf]
        %v225 = vld [vmem:[%s222 + $0x4] sm:$0xf]
        %v226 = vld [vmem:[%s222 + $0x8] sm:$0xf]
        %v227 = vld [vmem:[%s222 + $0xc] sm:$0xf]
        %v228 = vld [vmem:[%s222 + $0x10] sm:$0xf]
        %v229 = vld [vmem:[%s222 + $0x14] sm:$0xf]
        %v230 = vld [vmem:[%s222 + $0x18] sm:$0xf]
        %v231 = vld [vmem:[%s222 + $0x1c] sm:$0xf]
        %v232 = vld [vmem:[%s222 + $0x20] sm:$0xf]
        %v233 = vld [vmem:[%s222 + $0x24] sm:$0xf]
        %v234 = vld [vmem:[%s222 + $0x28] sm:$0xf]
        %v235 = vld [vmem:[%s222 + $0x2c] sm:$0xf]
        %v236 = vld [vmem:[%s222 + $0x30] sm:$0xf]
        %v237 = vld [vmem:[%s222 + $0x34] sm:$0xf]
        %v238 = vld [vmem:[%s222 + $0x38] sm:$0xf]
        %v239 = vld [vmem:[%s222 + $0x3c] sm:$0xf]
        %v240 = vld [vmem:[%s222 + $0x40] sm:$0xf]
        %v241 = vld [vmem:[%s222 + $0x44] sm:$0xf]
        %v242 = vld [vmem:[%s222 + $0x48] sm:$0xf]
        %v243 = vld [vmem:[%s222 + $0x4c] sm:$0xf]
        %v244 = vld [vmem:[%s222 + $0x50] sm:$0xf]
        %v245 = vld [vmem:[%s222 + $0x54] sm:$0xf]
        %v246 = vld [vmem:[%s222 + $0x58] sm:$0xf]
        %v247 = vld [vmem:[%s222 + $0x5c] sm:$0xf]
        %v248 = vld [vmem:[%s222 + $0x60] sm:$0xf]
        %v249 = vld [vmem:[%s222 + $0x64] sm:$0xf]
        %v250 = vld [vmem:[%s222 + $0x68] sm:$0xf]
        %v251 = vld [vmem:[%s222 + $0x6c] sm:$0xf]
        %v252 = vld [vmem:[%s222 + $0x70] sm:$0xf]
        %v253 = vld [vmem:[%s222 + $0x74] sm:$0xf]
        %v254 = vld [vmem:[%s222 + $0x78] sm:$0xf]
        %v255 = vld [vmem:[%s222 + $0x7c] sm:$0xf]
        %v256 = vld [vmem:[%s1] sm:$0xf]
        %v257 = vld [vmem:[%s1 + $0x4] sm:$0xf]
        %v258 = vld [vmem:[%s1 + $0x8] sm:$0xf]
        %v259 = vld [vmem:[%s1 + $0xc] sm:$0xf]
        %v260 = vld [vmem:[%s1 + $0x10] sm:$0xf]
        %v261 = vld [vmem:[%s1 + $0x14] sm:$0xf]
        %v262 = vld [vmem:[%s1 + $0x18] sm:$0xf]
        %v263 = vld [vmem:[%s1 + $0x1c] sm:$0xf]
        %v264 = vld [vmem:[%s1 + $0x20] sm:$0xf]
        %v265 = vld [vmem:[%s1 + $0x24] sm:$0xf]
        %v266 = vld [vmem:[%s1 + $0x28] sm:$0xf]
        %v267 = vld [vmem:[%s1 + $0x2c] sm:$0xf]
        %v268 = vld [vmem:[%s1 + $0x30] sm:$0xf]
        %v269 = vld [vmem:[%s1 + $0x34] sm:$0xf]
        %v270 = vld [vmem:[%s1 + $0x38] sm:$0xf]
        %v271 = vld [vmem:[%s1 + $0x3c] sm:$0xf]
        %v272 = vld [vmem:[%s2] sm:$0x1]
        %v274 = vlaneseq
        %v275 = vshrl.u32 %v274, 7
        %v276 = vsub.s32 0, %v275
        %v277 = vrot.slane %v272, %v276
        %v311 = vunpack.c.l.b16 %v224
        %v312 = vunpack.c.l.b16 %v225
        %v313 = vunpack.c.l.b16 %v226
        %v314 = vunpack.c.l.b16 %v227
        %v315 = vunpack.c.l.b16 %v228
        %v316 = vunpack.c.l.b16 %v229
        %v317 = vunpack.c.l.b16 %v230
        %v318 = vunpack.c.l.b16 %v231
        %v319 = vunpack.c.l.b16 %v232
        %v320 = vunpack.c.l.b16 %v233
        %v321 = vunpack.c.l.b16 %v234
        %v322 = vunpack.c.l.b16 %v235
        %v323 = vunpack.c.l.b16 %v236
        %v324 = vunpack.c.l.b16 %v237
        %v325 = vunpack.c.l.b16 %v238
        %v326 = vunpack.c.l.b16 %v239
        %v327 = vunpack.c.l.b16 %v240
        %v328 = vunpack.c.l.b16 %v241
        %v329 = vunpack.c.l.b16 %v242
        %v330 = vunpack.c.l.b16 %v243
        %v331 = vunpack.c.l.b16 %v244
        %v332 = vunpack.c.l.b16 %v245
        %v333 = vunpack.c.l.b16 %v246
        %v334 = vunpack.c.l.b16 %v247
        %v335 = vunpack.c.l.b16 %v248
        %v336 = vunpack.c.l.b16 %v249
        %v337 = vunpack.c.l.b16 %v250
        %v338 = vunpack.c.l.b16 %v251
        %v339 = vunpack.c.l.b16 %v252
        %v340 = vunpack.c.l.b16 %v253
        %v341 = vunpack.c.l.b16 %v254
        %v342 = vunpack.c.l.b16 %v255
        %v343 = vpack.c.b16 %v312, %v311
        %v344 = vpack.c.b16 %v314, %v313
        %v345 = vpack.c.b16 %v316, %v315
        %v346 = vpack.c.b16 %v318, %v317
        %v347 = vpack.c.b16 %v320, %v319
        %v348 = vpack.c.b16 %v322, %v321
        %v349 = vpack.c.b16 %v324, %v323
        %v350 = vpack.c.b16 %v326, %v325
        %v351 = vpack.c.b16 %v328, %v327
        %v352 = vpack.c.b16 %v330, %v329
        %v353 = vpack.c.b16 %v332, %v331
        %v354 = vpack.c.b16 %v334, %v333
        %v355 = vpack.c.b16 %v336, %v335
        %v356 = vpack.c.b16 %v338, %v337
        %v357 = vpack.c.b16 %v340, %v339
        %v358 = vpack.c.b16 %v342, %v341
        %v391 = vunpack.c.l.b16 %v256
        %v392 = vunpack.c.l.b16 %v257
        %v393 = vunpack.c.l.b16 %v258
        %v394 = vunpack.c.l.b16 %v259
        %v395 = vunpack.c.l.b16 %v260
        %v396 = vunpack.c.l.b16 %v261
        %v397 = vunpack.c.l.b16 %v262
        %v398 = vunpack.c.l.b16 %v263
        %v399 = vunpack.c.l.b16 %v264
        %v400 = vunpack.c.l.b16 %v265
        %v401 = vunpack.c.l.b16 %v266
        %v402 = vunpack.c.l.b16 %v267
        %v403 = vunpack.c.l.b16 %v268
        %v404 = vunpack.c.l.b16 %v269
        %v405 = vunpack.c.l.b16 %v270
        %v406 = vunpack.c.l.b16 %v271
        %v407 = vpack.c.b16 %v392, %v391
        %v408 = vpack.c.b16 %v394, %v393
        %v409 = vpack.c.b16 %v396, %v395
        %v410 = vpack.c.b16 %v398, %v397
        %v411 = vpack.c.b16 %v400, %v399
        %v412 = vpack.c.b16 %v402, %v401
        %v413 = vpack.c.b16 %v404, %v403
        %v414 = vpack.c.b16 %v406, %v405
        %423 = vmatprep.subr.bf16.mxu0 0
        %424 = vmatpush1.bf16.msra.mxu0 %v414
        %425 = vmatprep.subr.bf16.mxu0 0
        %426 = vmatpush1.bf16.msra.mxu0 %v413
        %427 = vmatprep.subr.bf16.mxu0 0
        %428 = vmatpush1.bf16.msra.mxu0 %v412
        %429 = vmatprep.subr.bf16.mxu0 0
        %430 = vmatpush1.bf16.msra.mxu0 %v411
        %431 = vmatprep.subr.bf16.mxu0 0
        %432 = vmatpush1.bf16.msra.mxu0 %v410
        %433 = vmatprep.subr.bf16.mxu0 0
        %434 = vmatpush1.bf16.msra.mxu0 %v409
        %435 = vmatprep.subr.bf16.mxu0 0
        %436 = vmatpush1.bf16.msra.mxu0 %v408
        %437 = vmatprep.subr.bf16.mxu0 0
        %438 = vmatpush1.bf16.msra.mxu0 %v407
        %439 = vmatprep.subr.bf16.mxu0 0
        %440 = vmatpush2.bf16.msra.mxu0 0
        %441 = vmatprep.subr.bf16.mxu0 0
        %442 = vmatpush2.bf16.msra.mxu0 0
        %443 = vmatprep.subr.bf16.mxu0 0
        %444 = vmatpush2.bf16.msra.mxu0 0
        %445 = vmatprep.subr.bf16.mxu0 0
        %446 = vmatpush2.bf16.msra.mxu0 0
        %447 = vmatprep.subr.bf16.mxu0 0
        %448 = vmatpush2.bf16.msra.mxu0 0
        %449 = vmatprep.subr.bf16.mxu0 0
        %450 = vmatpush2.bf16.msra.mxu0 0
        %451 = vmatprep.subr.bf16.mxu0 0
        %452 = vmatpush2.bf16.msra.mxu0 0
        %453 = vmatprep.subr.bf16.mxu0 0
        %454 = vmatpush2.bf16.msra.mxu0 0
        %455 = vmatprep.mubr.bf16.mxu0 0
        %456 = vmatmul.mubr.bf16.gmra.mxu0 %v343
        %v457 = vpop.f32.mrf.mxu0
        %v458 = vadd.f32 %v277, %v457
        %v459 = vpop.f32.mrf.mxu0
        %v460 = vpop.f32.mrf.mxu0
        %v461 = vadd.f32 %v277, %v460
        %v462 = vpop.f32.mrf.mxu0
        %463 = vmatprep.mubr.bf16.mxu0 0
        %464 = vmatmul.mubr.bf16.gmra.mxu0 %v344
        %v465 = vpop.f32.mrf.mxu0
        %v466 = vadd.f32 %v277, %v465
        %v467 = vpop.f32.mrf.mxu0
        %v468 = vpop.f32.mrf.mxu0
        %v469 = vadd.f32 %v277, %v468
        %v470 = vpop.f32.mrf.mxu0
        %471 = vmatprep.mubr.bf16.mxu0 0
        %472 = vmatmul.mubr.bf16.gmra.mxu0 %v345
        %v473 = vpop.f32.mrf.mxu0
        %v474 = vadd.f32 %v277, %v473
        %v475 = vpop.f32.mrf.mxu0
        %v476 = vpop.f32.mrf.mxu0
        %v477 = vadd.f32 %v277, %v476
        %v478 = vpop.f32.mrf.mxu0
        %479 = vmatprep.mubr.bf16.mxu0 0
        %480 = vmatmul.mubr.bf16.gmra.mxu0 %v346
        %v481 = vpop.f32.mrf.mxu0
        %v482 = vadd.f32 %v277, %v481
        %v483 = vpop.f32.mrf.mxu0
        %v484 = vpop.f32.mrf.mxu0
        %v485 = vadd.f32 %v277, %v484
        %v486 = vpop.f32.mrf.mxu0
        %487 = vmatprep.mubr.bf16.mxu0 0
        %488 = vmatmul.mubr.bf16.gmra.mxu0 %v347
        %v489 = vpop.f32.mrf.mxu0
        %v490 = vadd.f32 %v277, %v489
        %v491 = vpop.f32.mrf.mxu0
        %v492 = vpop.f32.mrf.mxu0
        %v493 = vadd.f32 %v277, %v492
        %v494 = vpop.f32.mrf.mxu0
        %495 = vmatprep.mubr.bf16.mxu0 0
        %496 = vmatmul.mubr.bf16.gmra.mxu0 %v348
        %v497 = vpop.f32.mrf.mxu0
        %v498 = vadd.f32 %v277, %v497
        %v499 = vpop.f32.mrf.mxu0
        %v500 = vpop.f32.mrf.mxu0
        %v501 = vadd.f32 %v277, %v500
        %v502 = vpop.f32.mrf.mxu0
        %503 = vmatprep.mubr.bf16.mxu0 0
        %504 = vmatmul.mubr.bf16.gmra.mxu0 %v349
        %v505 = vpop.f32.mrf.mxu0
        %v506 = vadd.f32 %v277, %v505
        %v507 = vpop.f32.mrf.mxu0
        %v508 = vpop.f32.mrf.mxu0
        %v509 = vadd.f32 %v277, %v508
        %v510 = vpop.f32.mrf.mxu0
        %511 = vmatprep.mubr.bf16.mxu0 0
        %512 = vmatmul.mubr.bf16.gmra.mxu0 %v350
        %v513 = vpop.f32.mrf.mxu0
        %v514 = vadd.f32 %v277, %v513
        %v515 = vpop.f32.mrf.mxu0
        %v516 = vpop.f32.mrf.mxu0
        %v517 = vadd.f32 %v277, %v516
        %v518 = vpop.f32.mrf.mxu0
        %519 = vmatprep.mubr.bf16.mxu0 0
        %520 = vmatmul.mubr.bf16.gmra.mxu0 %v351
        %v521 = vpop.f32.mrf.mxu0
        %v522 = vadd.f32 %v277, %v521
        %v523 = vpop.f32.mrf.mxu0
        %v524 = vpop.f32.mrf.mxu0
        %v525 = vadd.f32 %v277, %v524
        %v526 = vpop.f32.mrf.mxu0
        %527 = vmatprep.mubr.bf16.mxu0 0
        %528 = vmatmul.mubr.bf16.gmra.mxu0 %v352
        %v529 = vpop.f32.mrf.mxu0
        %v530 = vadd.f32 %v277, %v529
        %v531 = vpop.f32.mrf.mxu0
        %v532 = vpop.f32.mrf.mxu0
        %v533 = vadd.f32 %v277, %v532
        %v534 = vpop.f32.mrf.mxu0
        %535 = vmatprep.mubr.bf16.mxu0 0
        %536 = vmatmul.mubr.bf16.gmra.mxu0 %v353
        %v537 = vpop.f32.mrf.mxu0
        %v538 = vadd.f32 %v277, %v537
        %v539 = vpop.f32.mrf.mxu0
        %v540 = vpop.f32.mrf.mxu0
        %v541 = vadd.f32 %v277, %v540
        %v542 = vpop.f32.mrf.mxu0
        %543 = vmatprep.mubr.bf16.mxu0 0
        %544 = vmatmul.mubr.bf16.gmra.mxu0 %v354
        %v545 = vpop.f32.mrf.mxu0
        %v546 = vadd.f32 %v277, %v545
        %v547 = vpop.f32.mrf.mxu0
        %v548 = vpop.f32.mrf.mxu0
        %v549 = vadd.f32 %v277, %v548
        %v550 = vpop.f32.mrf.mxu0
        %551 = vmatprep.mubr.bf16.mxu0 0
        %552 = vmatmul.mubr.bf16.gmra.mxu0 %v355
        %v553 = vpop.f32.mrf.mxu0
        %v554 = vadd.f32 %v277, %v553
        %v555 = vpop.f32.mrf.mxu0
        %v556 = vpop.f32.mrf.mxu0
        %v557 = vadd.f32 %v277, %v556
        %v558 = vpop.f32.mrf.mxu0
        %559 = vmatprep.mubr.bf16.mxu0 0
        %560 = vmatmul.mubr.bf16.gmra.mxu0 %v356
        %v561 = vpop.f32.mrf.mxu0
        %v562 = vadd.f32 %v277, %v561
        %v563 = vpop.f32.mrf.mxu0
        %v564 = vpop.f32.mrf.mxu0
        %v565 = vadd.f32 %v277, %v564
        %v566 = vpop.f32.mrf.mxu0
        %567 = vmatprep.mubr.bf16.mxu0 0
        %568 = vmatmul.mubr.bf16.gmra.mxu0 %v357
        %v569 = vpop.f32.mrf.mxu0
        %v570 = vadd.f32 %v277, %v569
        %v571 = vpop.f32.mrf.mxu0
        %v572 = vpop.f32.mrf.mxu0
        %v573 = vadd.f32 %v277, %v572
        %v574 = vpop.f32.mrf.mxu0
        %575 = vmatprep.mubr.bf16.mxu0 0
        %576 = vmatmul.mubr.bf16.gmra.mxu0 %v358
        %v577 = vpop.f32.mrf.mxu0
        %v578 = vadd.f32 %v277, %v577
        %v579 = vpop.f32.mrf.mxu0
        %v580 = vpop.f32.mrf.mxu0
        %v581 = vadd.f32 %v277, %v580
        %v582 = vpop.f32.mrf.mxu0
        %583 = vdwg.mxu0
        %v584 = vmax.f32 %v458, 0.0
        %v585 = vmax.f32 %v461, 0.0
        %v586 = vmax.f32 %v466, 0.0
        %v587 = vmax.f32 %v469, 0.0
        %v588 = vmax.f32 %v474, 0.0
        %v589 = vmax.f32 %v477, 0.0
        %v590 = vmax.f32 %v482, 0.0
        %v591 = vmax.f32 %v485, 0.0
        %v592 = vmax.f32 %v490, 0.0
        %v593 = vmax.f32 %v493, 0.0
        %v594 = vmax.f32 %v498, 0.0
        %v595 = vmax.f32 %v501, 0.0
        %v596 = vmax.f32 %v506, 0.0
        %v597 = vmax.f32 %v509, 0.0
        %v598 = vmax.f32 %v514, 0.0
        %v599 = vmax.f32 %v517, 0.0
        %v600 = vmax.f32 %v522, 0.0
        %v601 = vmax.f32 %v525, 0.0
        %v602 = vmax.f32 %v530, 0.0
        %v603 = vmax.f32 %v533, 0.0
        %v604 = vmax.f32 %v538, 0.0
        %v605 = vmax.f32 %v541, 0.0
        %v606 = vmax.f32 %v546, 0.0
        %v607 = vmax.f32 %v549, 0.0
        %v608 = vmax.f32 %v554, 0.0
        %v609 = vmax.f32 %v557, 0.0
        %v610 = vmax.f32 %v562, 0.0
        %v611 = vmax.f32 %v565, 0.0
        %v612 = vmax.f32 %v570, 0.0
        %v613 = vmax.f32 %v573, 0.0
        %v614 = vmax.f32 %v578, 0.0
        %v615 = vmax.f32 %v581, 0.0
        %616 = vst [vmem:[#allocation2] sm:$0xff] 0.0
        %617 = vst [vmem:[#allocation2 + $0x8] sm:$0x3] 0.0
        %s618 = scalar_lea.vmem [#allocation2], 144
        %619 = vst [vmem:[%s618] sm:$0xff] 0.0
        %620 = vst [vmem:[%s618 + $0x8] sm:$0x3] 0.0
        %v621 = vmax.f32 %v584, %v586
        %v622 = vmax.f32 %v585, %v587
        %v624 = vrot.slane %v621, 1
        %v626 = vmax.f32 %v621, %v624
        %v628 = vrot.slane %v622, 1
        %v630 = vmax.f32 %v622, %v628
        %v632 = vrot.slane %v626, 7
        %v634 = vrot.slane %v626, 1
        %v636 = vrot.slane %v626, 2
        %v639 = vrot.slane %v630, 3
        %v641 = vrot.slane %v630, 4
        %v643 = vrot.slane %v630, 5
        %v645 = vrot.slane %v630, 6
        %vm647 = vcmask 1040384
        %v648 = vsel %vm647, 0.0, %v632
        %vm649 = vcmask 1041408
        %v650 = vsel %vm649, %v648, %v626
        %vm651 = vcmask 1042432
        %v652 = vsel %vm651, %v650, %v634
        %vm653 = vcmask 1043456
        %v654 = vsel %vm653, %v652, %v636
        %vm655 = vcmask 1044480
        %v656 = vsel %vm655, %v654, %v639
        %vm657 = vcmask 1045504
        %v658 = vsel %vm657, %v656, %v641
        %vm659 = vcmask 1046528
        %v660 = vsel %vm659, %v658, %v643
        %v661 = vsel %vm647, %v645, 0.0
        %s662 = scalar_lea.vmem [#allocation2], 16
        %663 = vst [vmem:[%s662] sm:$0xff] %v660
        %664 = vst [vmem:[%s662 + $0x8] sm:$0x3] %v661
        %v665 = vmax.f32 %v588, %v590
        %v666 = vmax.f32 %v589, %v591
        %v668 = vrot.slane %v665, 1
        %v670 = vmax.f32 %v665, %v668
        %v672 = vrot.slane %v666, 1
        %v674 = vmax.f32 %v666, %v672
        %v676 = vrot.slane %v670, 7
        %v678 = vrot.slane %v670, 1
        %v680 = vrot.slane %v670, 2
        %v683 = vrot.slane %v674, 3
        %v685 = vrot.slane %v674, 4
        %v687 = vrot.slane %v674, 5
        %v689 = vrot.slane %v674, 6
        %v691 = vsel %vm647, 0.0, %v676
        %v692 = vsel %vm649, %v691, %v670
        %v693 = vsel %vm651, %v692, %v678
        %v694 = vsel %vm653, %v693, %v680
        %v695 = vsel %vm655, %v694, %v683
        %v696 = vsel %vm657, %v695, %v685
        %v697 = vsel %vm659, %v696, %v687
        %v698 = vsel %vm647, %v689, 0.0
        %s699 = scalar_lea.vmem [#allocation2], 32
        %700 = vst [vmem:[%s699] sm:$0xff] %v697
        %701 = vst [vmem:[%s699 + $0x8] sm:$0x3] %v698
        %v702 = vmax.f32 %v592, %v594
        %v703 = vmax.f32 %v593, %v595
        %v705 = vrot.slane %v702, 1
        %v707 = vmax.f32 %v702, %v705
        %v709 = vrot.slane %v703, 1
        %v711 = vmax.f32 %v703, %v709
        %v713 = vrot.slane %v707, 7
        %v715 = vrot.slane %v707, 1
        %v717 = vrot.slane %v707, 2
        %v720 = vrot.slane %v711, 3
        %v722 = vrot.slane %v711, 4
        %v724 = vrot.slane %v711, 5
        %v726 = vrot.slane %v711, 6
        %v728 = vsel %vm647, 0.0, %v713
        %v729 = vsel %vm649, %v728, %v707
        %v730 = vsel %vm651, %v729, %v715
        %v731 = vsel %vm653, %v730, %v717
        %v732 = vsel %vm655, %v731, %v720
        %v733 = vsel %vm657, %v732, %v722
        %v734 = vsel %vm659, %v733, %v724
        %v735 = vsel %vm647, %v726, 0.0
        %s736 = scalar_lea.vmem [#allocation2], 48
        %737 = vst [vmem:[%s736] sm:$0xff] %v734
        %738 = vst [vmem:[%s736 + $0x8] sm:$0x3] %v735
        %v739 = vmax.f32 %v596, %v598
        %v740 = vmax.f32 %v597, %v599
        %v742 = vrot.slane %v739, 1
        %v744 = vmax.f32 %v739, %v742
        %v746 = vrot.slane %v740, 1
        %v748 = vmax.f32 %v740, %v746
        %v750 = vrot.slane %v744, 7
        %v752 = vrot.slane %v744, 1
        %v754 = vrot.slane %v744, 2
        %v757 = vrot.slane %v748, 3
        %v759 = vrot.slane %v748, 4
        %v761 = vrot.slane %v748, 5
        %v763 = vrot.slane %v748, 6
        %v765 = vsel %vm647, 0.0, %v750
        %v766 = vsel %vm649, %v765, %v744
        %v767 = vsel %vm651, %v766, %v752
        %v768 = vsel %vm653, %v767, %v754
        %v769 = vsel %vm655, %v768, %v757
        %v770 = vsel %vm657, %v769, %v759
        %v771 = vsel %vm659, %v770, %v761
        %v772 = vsel %vm647, %v763, 0.0
        %s773 = scalar_lea.vmem [#allocation2], 64
        %774 = vst [vmem:[%s773] sm:$0xff] %v771
        %775 = vst [vmem:[%s773 + $0x8] sm:$0x3] %v772
        %v776 = vmax.f32 %v600, %v602
        %v777 = vmax.f32 %v601, %v603
        %v779 = vrot.slane %v776, 1
        %v781 = vmax.f32 %v776, %v779
        %v783 = vrot.slane %v777, 1
        %v785 = vmax.f32 %v777, %v783
        %v787 = vrot.slane %v781, 7
        %v789 = vrot.slane %v781, 1
        %v791 = vrot.slane %v781, 2
        %v794 = vrot.slane %v785, 3
        %v796 = vrot.slane %v785, 4
        %v798 = vrot.slane %v785, 5
        %v800 = vrot.slane %v785, 6
        %v802 = vsel %vm647, 0.0, %v787
        %v803 = vsel %vm649, %v802, %v781
        %v804 = vsel %vm651, %v803, %v789
        %v805 = vsel %vm653, %v804, %v791
        %v806 = vsel %vm655, %v805, %v794
        %v807 = vsel %vm657, %v806, %v796
        %v808 = vsel %vm659, %v807, %v798
        %v809 = vsel %vm647, %v800, 0.0
        %s810 = scalar_lea.vmem [#allocation2], 80
        %811 = vst [vmem:[%s810] sm:$0xff] %v808
        %812 = vst [vmem:[%s810 + $0x8] sm:$0x3] %v809
        %v813 = vmax.f32 %v604, %v606
        %v814 = vmax.f32 %v605, %v607
        %v816 = vrot.slane %v813, 1
        %v818 = vmax.f32 %v813, %v816
        %v820 = vrot.slane %v814, 1
        %v822 = vmax.f32 %v814, %v820
        %v824 = vrot.slane %v818, 7
        %v826 = vrot.slane %v818, 1
        %v828 = vrot.slane %v818, 2
        %v831 = vrot.slane %v822, 3
        %v833 = vrot.slane %v822, 4
        %v835 = vrot.slane %v822, 5
        %v837 = vrot.slane %v822, 6
        %v839 = vsel %vm647, 0.0, %v824
        %v840 = vsel %vm649, %v839, %v818
        %v841 = vsel %vm651, %v840, %v826
        %v842 = vsel %vm653, %v841, %v828
        %v843 = vsel %vm655, %v842, %v831
        %v844 = vsel %vm657, %v843, %v833
        %v845 = vsel %vm659, %v844, %v835
        %v846 = vsel %vm647, %v837, 0.0
        %s847 = scalar_lea.vmem [#allocation2], 96
        %848 = vst [vmem:[%s847] sm:$0xff] %v845
        %849 = vst [vmem:[%s847 + $0x8] sm:$0x3] %v846
        %v850 = vmax.f32 %v608, %v610
        %v851 = vmax.f32 %v609, %v611
        %v853 = vrot.slane %v850, 1
        %v855 = vmax.f32 %v850, %v853
        %v857 = vrot.slane %v851, 1
        %v859 = vmax.f32 %v851, %v857
        %v861 = vrot.slane %v855, 7
        %v863 = vrot.slane %v855, 1
        %v865 = vrot.slane %v855, 2
        %v868 = vrot.slane %v859, 3
        %v870 = vrot.slane %v859, 4
        %v872 = vrot.slane %v859, 5
        %v874 = vrot.slane %v859, 6
        %v876 = vsel %vm647, 0.0, %v861
        %v877 = vsel %vm649, %v876, %v855
        %v878 = vsel %vm651, %v877, %v863
        %v879 = vsel %vm653, %v878, %v865
        %v880 = vsel %vm655, %v879, %v868
        %v881 = vsel %vm657, %v880, %v870
        %v882 = vsel %vm659, %v881, %v872
        %v883 = vsel %vm647, %v874, 0.0
        %s884 = scalar_lea.vmem [#allocation2], 112
        %885 = vst [vmem:[%s884] sm:$0xff] %v882
        %886 = vst [vmem:[%s884 + $0x8] sm:$0x3] %v883
        %v887 = vmax.f32 %v612, %v614
        %v888 = vmax.f32 %v613, %v615
        %v890 = vrot.slane %v887, 1
        %v892 = vmax.f32 %v887, %v890
        %v894 = vrot.slane %v888, 1
        %v896 = vmax.f32 %v888, %v894
        %v898 = vrot.slane %v892, 7
        %v900 = vrot.slane %v892, 1
        %v902 = vrot.slane %v892, 2
        %v905 = vrot.slane %v896, 3
        %v907 = vrot.slane %v896, 4
        %v909 = vrot.slane %v896, 5
        %v911 = vrot.slane %v896, 6
        %v913 = vsel %vm647, 0.0, %v898
        %v914 = vsel %vm649, %v913, %v892
        %v915 = vsel %vm651, %v914, %v900
        %v916 = vsel %vm653, %v915, %v902
        %v917 = vsel %vm655, %v916, %v905
        %v918 = vsel %vm657, %v917, %v907
        %v919 = vsel %vm659, %v918, %v909
        %v920 = vsel %vm647, %v911, 0.0
        %s921 = scalar_lea.vmem [#allocation2], 128
        %922 = vst [vmem:[%s921] sm:$0xff] %v919
        %923 = vst [vmem:[%s921 + $0x8] sm:$0x3] %v920
        %v924 = vld [vmem:[#allocation2] sm:$0xff]
        %v925 = vld [vmem:[#allocation2 + $0x10] sm:$0xff]
        %v926 = vld [vmem:[#allocation2 + $0x20] sm:$0xff]
        %v927 = vld [vmem:[#allocation2 + $0x30] sm:$0xff]
        %v928 = vld [vmem:[#allocation2 + $0x40] sm:$0xff]
        %v929 = vld [vmem:[#allocation2 + $0x50] sm:$0xff]
        %v930 = vld [vmem:[#allocation2 + $0x60] sm:$0xff]
        %v931 = vld [vmem:[#allocation2 + $0x70] sm:$0xff]
        %v932 = vpack.c.bf16 %v925, %v924
        %v933 = vpack.c.bf16 %v927, %v926
        %v934 = vpack.c.bf16 %v929, %v928
        %v935 = vpack.c.bf16 %v931, %v930
        %v936 = vld [vmem:[%s3] sm:$0xf]
        %v937 = vld [vmem:[%s3 + $0x4] sm:$0xf]
        %v938 = vld [vmem:[%s3 + $0x8] sm:$0xf]
        %v939 = vld [vmem:[%s3 + $0xc] sm:$0xf]
        %v940 = vld [vmem:[%s3 + $0x10] sm:$0xf]
        %v941 = vld [vmem:[%s3 + $0x14] sm:$0xf]
        %v942 = vld [vmem:[%s3 + $0x18] sm:$0xf]
        %v943 = vld [vmem:[%s3 + $0x1c] sm:$0xf]
        %v944 = vld [vmem:[%s3 + $0x20] sm:$0xf]
        %v945 = vld [vmem:[%s3 + $0x24] sm:$0xf]
        %v946 = vld [vmem:[%s3 + $0x28] sm:$0xf]
        %v947 = vld [vmem:[%s3 + $0x2c] sm:$0xf]
        %v948 = vld [vmem:[%s3 + $0x30] sm:$0xf]
        %v949 = vld [vmem:[%s3 + $0x34] sm:$0xf]
        %v950 = vld [vmem:[%s3 + $0x38] sm:$0xf]
        %v951 = vld [vmem:[%s3 + $0x3c] sm:$0xf]
        %v952 = vld [vmem:[#allocation2 + $0x1] sm:$0xff]
        %v953 = vld [vmem:[#allocation2 + $0x11] sm:$0xff]
        %v954 = vld [vmem:[#allocation2 + $0x21] sm:$0xff]
        %v955 = vld [vmem:[#allocation2 + $0x31] sm:$0xff]
        %v956 = vld [vmem:[#allocation2 + $0x41] sm:$0xff]
        %v957 = vld [vmem:[#allocation2 + $0x51] sm:$0xff]
        %v958 = vld [vmem:[#allocation2 + $0x61] sm:$0xff]
        %v959 = vld [vmem:[#allocation2 + $0x71] sm:$0xff]
        %v960 = vpack.c.bf16 %v953, %v952
        %v961 = vpack.c.bf16 %v955, %v954
        %v962 = vpack.c.bf16 %v957, %v956
        %v963 = vpack.c.bf16 %v959, %v958
        %s964 = scalar_lea.vmem %s3, 64
        %v965 = vld [vmem:[%s964] sm:$0xf]
        %v966 = vld [vmem:[%s964 + $0x4] sm:$0xf]
        %v967 = vld [vmem:[%s964 + $0x8] sm:$0xf]
        %v968 = vld [vmem:[%s964 + $0xc] sm:$0xf]
        %v969 = vld [vmem:[%s964 + $0x10] sm:$0xf]
        %v970 = vld [vmem:[%s964 + $0x14] sm:$0xf]
        %v971 = vld [vmem:[%s964 + $0x18] sm:$0xf]
        %v972 = vld [vmem:[%s964 + $0x1c] sm:$0xf]
        %v973 = vld [vmem:[%s964 + $0x20] sm:$0xf]
        %v974 = vld [vmem:[%s964 + $0x24] sm:$0xf]
        %v975 = vld [vmem:[%s964 + $0x28] sm:$0xf]
        %v976 = vld [vmem:[%s964 + $0x2c] sm:$0xf]
        %v977 = vld [vmem:[%s964 + $0x30] sm:$0xf]
        %v978 = vld [vmem:[%s964 + $0x34] sm:$0xf]
        %v979 = vld [vmem:[%s964 + $0x38] sm:$0xf]
        %v980 = vld [vmem:[%s964 + $0x3c] sm:$0xf]
        %v997 = vunpack.c.l.b16 %v965
        %v998 = vunpack.c.l.b16 %v966
        %v999 = vunpack.c.l.b16 %v967
        %v1000 = vunpack.c.l.b16 %v968
        %v1001 = vunpack.c.l.b16 %v969
        %v1002 = vunpack.c.l.b16 %v970
        %v1003 = vunpack.c.l.b16 %v971
        %v1004 = vunpack.c.l.b16 %v972
        %v1005 = vunpack.c.l.b16 %v973
        %v1006 = vunpack.c.l.b16 %v974
        %v1007 = vunpack.c.l.b16 %v975
        %v1008 = vunpack.c.l.b16 %v976
        %v1009 = vunpack.c.l.b16 %v977
        %v1010 = vunpack.c.l.b16 %v978
        %v1011 = vunpack.c.l.b16 %v979
        %v1012 = vunpack.c.l.b16 %v980
        %v1013 = vpack.c.b16 %v998, %v997
        %v1014 = vpack.c.b16 %v1000, %v999
        %v1015 = vpack.c.b16 %v1002, %v1001
        %v1016 = vpack.c.b16 %v1004, %v1003
        %v1017 = vpack.c.b16 %v1006, %v1005
        %v1018 = vpack.c.b16 %v1008, %v1007
        %v1019 = vpack.c.b16 %v1010, %v1009
        %v1020 = vpack.c.b16 %v1012, %v1011
        %1029 = vmatprep.subr.bf16.mxu0 0
        %1030 = vmatpush1.bf16.msra.mxu0 %v1020
        %1031 = vmatprep.subr.bf16.mxu0 0
        %1032 = vmatpush1.bf16.msra.mxu0 %v1019
        %1033 = vmatprep.subr.bf16.mxu0 0
        %1034 = vmatpush1.bf16.msra.mxu0 %v1018
        %1035 = vmatprep.subr.bf16.mxu0 0
        %1036 = vmatpush1.bf16.msra.mxu0 %v1017
        %1037 = vmatprep.subr.bf16.mxu0 0
        %1038 = vmatpush1.bf16.msra.mxu0 %v1016
        %1039 = vmatprep.subr.bf16.mxu0 0
        %1040 = vmatpush1.bf16.msra.mxu0 %v1015
        %1041 = vmatprep.subr.bf16.mxu0 0
        %1042 = vmatpush1.bf16.msra.mxu0 %v1014
        %1043 = vmatprep.subr.bf16.mxu0 0
        %1044 = vmatpush1.bf16.msra.mxu0 %v1013
        %1045 = vmatprep.subr.bf16.mxu0 0
        %1046 = vmatpush2.bf16.msra.mxu0 0
        %1047 = vmatprep.subr.bf16.mxu0 0
        %1048 = vmatpush2.bf16.msra.mxu0 0
        %1049 = vmatprep.subr.bf16.mxu0 0
        %1050 = vmatpush2.bf16.msra.mxu0 0
        %1051 = vmatprep.subr.bf16.mxu0 0
        %1052 = vmatpush2.bf16.msra.mxu0 0
        %1053 = vmatprep.subr.bf16.mxu0 0
        %1054 = vmatpush2.bf16.msra.mxu0 0
        %1055 = vmatprep.subr.bf16.mxu0 0
        %1056 = vmatpush2.bf16.msra.mxu0 0
        %1057 = vmatprep.subr.bf16.mxu0 0
        %1058 = vmatpush2.bf16.msra.mxu0 0
        %1059 = vmatprep.subr.bf16.mxu0 0
        %1060 = vmatpush2.bf16.msra.mxu0 0
        %1061 = vmatprep.mubr.bf16.mxu0 0
        %1062 = vmatmul.mubr.bf16.gmra.mxu0 %v960
        %v1063 = vpop.f32.mrf.mxu0
        %v1064 = vadd.f32 0.0, %v1063
        %v1065 = vpop.f32.mrf.mxu0
        %v1066 = vpop.f32.mrf.mxu0
        %v1067 = vadd.f32 0.0, %v1066
        %v1068 = vpop.f32.mrf.mxu0
        %1069 = vmatprep.mubr.bf16.mxu0 0
        %1070 = vmatmul.mubr.bf16.gmra.mxu0 %v961
        %v1071 = vpop.f32.mrf.mxu0
        %v1072 = vadd.f32 0.0, %v1071
        %v1073 = vpop.f32.mrf.mxu0
        %v1074 = vpop.f32.mrf.mxu0
        %v1075 = vadd.f32 0.0, %v1074
        %v1076 = vpop.f32.mrf.mxu0
        %1077 = vmatprep.mubr.bf16.mxu0 0
        %1078 = vmatmul.mubr.bf16.gmra.mxu0 %v962
        %v1079 = vpop.f32.mrf.mxu0
        %v1080 = vadd.f32 0.0, %v1079
        %v1081 = vpop.f32.mrf.mxu0
        %v1082 = vpop.f32.mrf.mxu0
        %v1083 = vadd.f32 0.0, %v1082
        %v1084 = vpop.f32.mrf.mxu0
        %1085 = vmatprep.mubr.bf16.mxu0 0
        %1086 = vmatmul.mubr.bf16.gmra.mxu0 %v963
        %v1087 = vpop.f32.mrf.mxu0
        %v1088 = vadd.f32 0.0, %v1087
        %v1089 = vpop.f32.mrf.mxu0
        %v1090 = vpop.f32.mrf.mxu0
        %v1091 = vadd.f32 0.0, %v1090
        %v1092 = vpop.f32.mrf.mxu0
        %1093 = vdwg.mxu0
        %v1110 = vunpack.c.l.b16 %v936
        %v1111 = vunpack.c.l.b16 %v937
        %v1112 = vunpack.c.l.b16 %v938
        %v1113 = vunpack.c.l.b16 %v939
        %v1114 = vunpack.c.l.b16 %v940
        %v1115 = vunpack.c.l.b16 %v941
        %v1116 = vunpack.c.l.b16 %v942
        %v1117 = vunpack.c.l.b16 %v943
        %v1118 = vunpack.c.l.b16 %v944
        %v1119 = vunpack.c.l.b16 %v945
        %v1120 = vunpack.c.l.b16 %v946
        %v1121 = vunpack.c.l.b16 %v947
        %v1122 = vunpack.c.l.b16 %v948
        %v1123 = vunpack.c.l.b16 %v949
        %v1124 = vunpack.c.l.b16 %v950
        %v1125 = vunpack.c.l.b16 %v951
        %v1126 = vpack.c.b16 %v1111, %v1110
        %v1127 = vpack.c.b16 %v1113, %v1112
        %v1128 = vpack.c.b16 %v1115, %v1114
        %v1129 = vpack.c.b16 %v1117, %v1116
        %v1130 = vpack.c.b16 %v1119, %v1118
        %v1131 = vpack.c.b16 %v1121, %v1120
        %v1132 = vpack.c.b16 %v1123, %v1122
        %v1133 = vpack.c.b16 %v1125, %v1124
        %1142 = vmatprep.subr.bf16.mxu0 0
        %1143 = vmatpush1.bf16.msra.mxu0 %v1133
        %1144 = vmatprep.subr.bf16.mxu0 0
        %1145 = vmatpush1.bf16.msra.mxu0 %v1132
        %1146 = vmatprep.subr.bf16.mxu0 0
        %1147 = vmatpush1.bf16.msra.mxu0 %v1131
        %1148 = vmatprep.subr.bf16.mxu0 0
        %1149 = vmatpush1.bf16.msra.mxu0 %v1130
        %1150 = vmatprep.subr.bf16.mxu0 0
        %1151 = vmatpush1.bf16.msra.mxu0 %v1129
        %1152 = vmatprep.subr.bf16.mxu0 0
        %1153 = vmatpush1.bf16.msra.mxu0 %v1128
        %1154 = vmatprep.subr.bf16.mxu0 0
        %1155 = vmatpush1.bf16.msra.mxu0 %v1127
        %1156 = vmatprep.subr.bf16.mxu0 0
        %1157 = vmatpush1.bf16.msra.mxu0 %v1126
        %1158 = vmatprep.subr.bf16.mxu0 0
        %1159 = vmatpush2.bf16.msra.mxu0 0
        %1160 = vmatprep.subr.bf16.mxu0 0
        %1161 = vmatpush2.bf16.msra.mxu0 0
        %1162 = vmatprep.subr.bf16.mxu0 0
        %1163 = vmatpush2.bf16.msra.mxu0 0
        %1164 = vmatprep.subr.bf16.mxu0 0
        %1165 = vmatpush2.bf16.msra.mxu0 0
        %1166 = vmatprep.subr.bf16.mxu0 0
        %1167 = vmatpush2.bf16.msra.mxu0 0
        %1168 = vmatprep.subr.bf16.mxu0 0
        %1169 = vmatpush2.bf16.msra.mxu0 0
        %1170 = vmatprep.subr.bf16.mxu0 0
        %1171 = vmatpush2.bf16.msra.mxu0 0
        %1172 = vmatprep.subr.bf16.mxu0 0
        %1173 = vmatpush2.bf16.msra.mxu0 0
        %1174 = vmatprep.mubr.bf16.mxu0 0
        %1175 = vmatmul.mubr.bf16.gmra.mxu0 %v932
        %v1176 = vpop.f32.mrf.mxu0
        %v1177 = vadd.f32 %v1064, %v1176
        %v1178 = vpop.f32.mrf.mxu0
        %v1179 = vpop.f32.mrf.mxu0
        %v1180 = vadd.f32 %v1067, %v1179
        %v1181 = vpop.f32.mrf.mxu0
        %1182 = vmatprep.mubr.bf16.mxu0 0
        %1183 = vmatmul.mubr.bf16.gmra.mxu0 %v933
        %v1184 = vpop.f32.mrf.mxu0
        %v1185 = vadd.f32 %v1072, %v1184
        %v1186 = vpop.f32.mrf.mxu0
        %v1187 = vpop.f32.mrf.mxu0
        %v1188 = vadd.f32 %v1075, %v1187
        %v1189 = vpop.f32.mrf.mxu0
        %1190 = vmatprep.mubr.bf16.mxu0 0
        %1191 = vmatmul.mubr.bf16.gmra.mxu0 %v934
        %v1192 = vpop.f32.mrf.mxu0
        %v1193 = vadd.f32 %v1080, %v1192
        %v1194 = vpop.f32.mrf.mxu0
        %v1195 = vpop.f32.mrf.mxu0
        %v1196 = vadd.f32 %v1083, %v1195
        %v1197 = vpop.f32.mrf.mxu0
        %1198 = vmatprep.mubr.bf16.mxu0 0
        %1199 = vmatmul.mubr.bf16.gmra.mxu0 %v935
        %v1200 = vpop.f32.mrf.mxu0
        %v1201 = vadd.f32 %v1088, %v1200
        %v1202 = vpop.f32.mrf.mxu0
        %v1203 = vpop.f32.mrf.mxu0
        %v1204 = vadd.f32 %v1091, %v1203
        %v1205 = vpop.f32.mrf.mxu0
        %1206 = vdwg.mxu0
        %v1207 = vld [vmem:[#allocation2 + $0x2] sm:$0xff]
        %v1208 = vld [vmem:[#allocation2 + $0x12] sm:$0xff]
        %v1209 = vld [vmem:[#allocation2 + $0x22] sm:$0xff]
        %v1210 = vld [vmem:[#allocation2 + $0x32] sm:$0xff]
        %v1211 = vld [vmem:[#allocation2 + $0x42] sm:$0xff]
        %v1212 = vld [vmem:[#allocation2 + $0x52] sm:$0xff]
        %v1213 = vld [vmem:[#allocation2 + $0x62] sm:$0xff]
        %v1214 = vld [vmem:[#allocation2 + $0x72] sm:$0xff]
        %v1215 = vpack.c.bf16 %v1208, %v1207
        %v1216 = vpack.c.bf16 %v1210, %v1209
        %v1217 = vpack.c.bf16 %v1212, %v1211
        %v1218 = vpack.c.bf16 %v1214, %v1213
        %s1219 = scalar_lea.vmem %s3, 128
        %v1220 = vld [vmem:[%s1219] sm:$0xf]
        %v1221 = vld [vmem:[%s1219 + $0x4] sm:$0xf]
        %v1222 = vld [vmem:[%s1219 + $0x8] sm:$0xf]
        %v1223 = vld [vmem:[%s1219 + $0xc] sm:$0xf]
        %v1224 = vld [vmem:[%s1219 + $0x10] sm:$0xf]
        %v1225 = vld [vmem:[%s1219 + $0x14] sm:$0xf]
        %v1226 = vld [vmem:[%s1219 + $0x18] sm:$0xf]
        %v1227 = vld [vmem:[%s1219 + $0x1c] sm:$0xf]
        %v1228 = vld [vmem:[%s1219 + $0x20] sm:$0xf]
        %v1229 = vld [vmem:[%s1219 + $0x24] sm:$0xf]
        %v1230 = vld [vmem:[%s1219 + $0x28] sm:$0xf]
        %v1231 = vld [vmem:[%s1219 + $0x2c] sm:$0xf]
        %v1232 = vld [vmem:[%s1219 + $0x30] sm:$0xf]
        %v1233 = vld [vmem:[%s1219 + $0x34] sm:$0xf]
        %v1234 = vld [vmem:[%s1219 + $0x38] sm:$0xf]
        %v1235 = vld [vmem:[%s1219 + $0x3c] sm:$0xf]
        %v1252 = vunpack.c.l.b16 %v1220
        %v1253 = vunpack.c.l.b16 %v1221
        %v1254 = vunpack.c.l.b16 %v1222
        %v1255 = vunpack.c.l.b16 %v1223
        %v1256 = vunpack.c.l.b16 %v1224
        %v1257 = vunpack.c.l.b16 %v1225
        %v1258 = vunpack.c.l.b16 %v1226
        %v1259 = vunpack.c.l.b16 %v1227
        %v1260 = vunpack.c.l.b16 %v1228
        %v1261 = vunpack.c.l.b16 %v1229
        %v1262 = vunpack.c.l.b16 %v1230
        %v1263 = vunpack.c.l.b16 %v1231
        %v1264 = vunpack.c.l.b16 %v1232
        %v1265 = vunpack.c.l.b16 %v1233
        %v1266 = vunpack.c.l.b16 %v1234
        %v1267 = vunpack.c.l.b16 %v1235
        %v1268 = vpack.c.b16 %v1253, %v1252
        %v1269 = vpack.c.b16 %v1255, %v1254
        %v1270 = vpack.c.b16 %v1257, %v1256
        %v1271 = vpack.c.b16 %v1259, %v1258
        %v1272 = vpack.c.b16 %v1261, %v1260
        %v1273 = vpack.c.b16 %v1263, %v1262
        %v1274 = vpack.c.b16 %v1265, %v1264
        %v1275 = vpack.c.b16 %v1267, %v1266
        %1284 = vmatprep.subr.bf16.mxu0 0
        %1285 = vmatpush1.bf16.msra.mxu0 %v1275
        %1286 = vmatprep.subr.bf16.mxu0 0
        %1287 = vmatpush1.bf16.msra.mxu0 %v1274
        %1288 = vmatprep.subr.bf16.mxu0 0
        %1289 = vmatpush1.bf16.msra.mxu0 %v1273
        %1290 = vmatprep.subr.bf16.mxu0 0
        %1291 = vmatpush1.bf16.msra.mxu0 %v1272
        %1292 = vmatprep.subr.bf16.mxu0 0
        %1293 = vmatpush1.bf16.msra.mxu0 %v1271
        %1294 = vmatprep.subr.bf16.mxu0 0
        %1295 = vmatpush1.bf16.msra.mxu0 %v1270
        %1296 = vmatprep.subr.bf16.mxu0 0
        %1297 = vmatpush1.bf16.msra.mxu0 %v1269
        %1298 = vmatprep.subr.bf16.mxu0 0
        %1299 = vmatpush1.bf16.msra.mxu0 %v1268
        %1300 = vmatprep.subr.bf16.mxu0 0
        %1301 = vmatpush2.bf16.msra.mxu0 0
        %1302 = vmatprep.subr.bf16.mxu0 0
        %1303 = vmatpush2.bf16.msra.mxu0 0
        %1304 = vmatprep.subr.bf16.mxu0 0
        %1305 = vmatpush2.bf16.msra.mxu0 0
        %1306 = vmatprep.subr.bf16.mxu0 0
        %1307 = vmatpush2.bf16.msra.mxu0 0
        %1308 = vmatprep.subr.bf16.mxu0 0
        %1309 = vmatpush2.bf16.msra.mxu0 0
        %1310 = vmatprep.subr.bf16.mxu0 0
        %1311 = vmatpush2.bf16.msra.mxu0 0
        %1312 = vmatprep.subr.bf16.mxu0 0
        %1313 = vmatpush2.bf16.msra.mxu0 0
        %1314 = vmatprep.subr.bf16.mxu0 0
        %1315 = vmatpush2.bf16.msra.mxu0 0
        %1316 = vmatprep.mubr.bf16.mxu0 0
        %1317 = vmatmul.mubr.bf16.gmra.mxu0 %v1215
        %v1318 = vpop.f32.mrf.mxu0
        %v1319 = vadd.f32 0.0, %v1318
        %v1320 = vpop.f32.mrf.mxu0
        %v1321 = vpop.f32.mrf.mxu0
        %v1322 = vadd.f32 0.0, %v1321
        %v1323 = vpop.f32.mrf.mxu0
        %1324 = vmatprep.mubr.bf16.mxu0 0
        %1325 = vmatmul.mubr.bf16.gmra.mxu0 %v1216
        %v1326 = vpop.f32.mrf.mxu0
        %v1327 = vadd.f32 0.0, %v1326
        %v1328 = vpop.f32.mrf.mxu0
        %v1329 = vpop.f32.mrf.mxu0
        %v1330 = vadd.f32 0.0, %v1329
        %v1331 = vpop.f32.mrf.mxu0
        %1332 = vmatprep.mubr.bf16.mxu0 0
        %1333 = vmatmul.mubr.bf16.gmra.mxu0 %v1217
        %v1334 = vpop.f32.mrf.mxu0
        %v1335 = vadd.f32 0.0, %v1334
        %v1336 = vpop.f32.mrf.mxu0
        %v1337 = vpop.f32.mrf.mxu0
        %v1338 = vadd.f32 0.0, %v1337
        %v1339 = vpop.f32.mrf.mxu0
        %1340 = vmatprep.mubr.bf16.mxu0 0
        %1341 = vmatmul.mubr.bf16.gmra.mxu0 %v1218
        %v1342 = vpop.f32.mrf.mxu0
        %v1343 = vadd.f32 0.0, %v1342
        %v1344 = vpop.f32.mrf.mxu0
        %v1345 = vpop.f32.mrf.mxu0
        %v1346 = vadd.f32 0.0, %v1345
        %v1347 = vpop.f32.mrf.mxu0
        %1348 = vdwg.mxu0
        %v1349 = vadd.f32 %v1177, %v1319
        %v1350 = vadd.f32 %v1180, %v1322
        %v1351 = vadd.f32 %v1185, %v1327
        %v1352 = vadd.f32 %v1188, %v1330
        %v1353 = vadd.f32 %v1193, %v1335
        %v1354 = vadd.f32 %v1196, %v1338
        %v1355 = vadd.f32 %v1201, %v1343
        %v1356 = vadd.f32 %v1204, %v1346
        %v1357 = vld [vmem:[%s662] sm:$0xff]
        %v1358 = vld [vmem:[%s662 + $0x10] sm:$0xff]
        %v1359 = vld [vmem:[%s662 + $0x20] sm:$0xff]
        %v1360 = vld [vmem:[%s662 + $0x30] sm:$0xff]
        %v1361 = vld [vmem:[%s662 + $0x40] sm:$0xff]
        %v1362 = vld [vmem:[%s662 + $0x50] sm:$0xff]
        %v1363 = vld [vmem:[%s662 + $0x60] sm:$0xff]
        %v1364 = vld [vmem:[%s662 + $0x70] sm:$0xff]
        %v1365 = vpack.c.bf16 %v1358, %v1357
        %v1366 = vpack.c.bf16 %v1360, %v1359
        %v1367 = vpack.c.bf16 %v1362, %v1361
        %v1368 = vpack.c.bf16 %v1364, %v1363
        %s1369 = scalar_lea.vmem %s3, 192
        %v1370 = vld [vmem:[%s1369] sm:$0xf]
        %v1371 = vld [vmem:[%s1369 + $0x4] sm:$0xf]
        %v1372 = vld [vmem:[%s1369 + $0x8] sm:$0xf]
        %v1373 = vld [vmem:[%s1369 + $0xc] sm:$0xf]
        %v1374 = vld [vmem:[%s1369 + $0x10] sm:$0xf]
        %v1375 = vld [vmem:[%s1369 + $0x14] sm:$0xf]
        %v1376 = vld [vmem:[%s1369 + $0x18] sm:$0xf]
        %v1377 = vld [vmem:[%s1369 + $0x1c] sm:$0xf]
        %v1378 = vld [vmem:[%s1369 + $0x20] sm:$0xf]
        %v1379 = vld [vmem:[%s1369 + $0x24] sm:$0xf]
        %v1380 = vld [vmem:[%s1369 + $0x28] sm:$0xf]
        %v1381 = vld [vmem:[%s1369 + $0x2c] sm:$0xf]
        %v1382 = vld [vmem:[%s1369 + $0x30] sm:$0xf]
        %v1383 = vld [vmem:[%s1369 + $0x34] sm:$0xf]
        %v1384 = vld [vmem:[%s1369 + $0x38] sm:$0xf]
        %v1385 = vld [vmem:[%s1369 + $0x3c] sm:$0xf]
        %v1402 = vunpack.c.l.b16 %v1370
        %v1403 = vunpack.c.l.b16 %v1371
        %v1404 = vunpack.c.l.b16 %v1372
        %v1405 = vunpack.c.l.b16 %v1373
        %v1406 = vunpack.c.l.b16 %v1374
        %v1407 = vunpack.c.l.b16 %v1375
        %v1408 = vunpack.c.l.b16 %v1376
        %v1409 = vunpack.c.l.b16 %v1377
        %v1410 = vunpack.c.l.b16 %v1378
        %v1411 = vunpack.c.l.b16 %v1379
        %v1412 = vunpack.c.l.b16 %v1380
        %v1413 = vunpack.c.l.b16 %v1381
        %v1414 = vunpack.c.l.b16 %v1382
        %v1415 = vunpack.c.l.b16 %v1383
        %v1416 = vunpack.c.l.b16 %v1384
        %v1417 = vunpack.c.l.b16 %v1385
        %v1418 = vpack.c.b16 %v1403, %v1402
        %v1419 = vpack.c.b16 %v1405, %v1404
        %v1420 = vpack.c.b16 %v1407, %v1406
        %v1421 = vpack.c.b16 %v1409, %v1408
        %v1422 = vpack.c.b16 %v1411, %v1410
        %v1423 = vpack.c.b16 %v1413, %v1412
        %v1424 = vpack.c.b16 %v1415, %v1414
        %v1425 = vpack.c.b16 %v1417, %v1416
        %1434 = vmatprep.subr.bf16.mxu0 0
        %1435 = vmatpush1.bf16.msra.mxu0 %v1425
        %1436 = vmatprep.subr.bf16.mxu0 0
        %1437 = vmatpush1.bf16.msra.mxu0 %v1424
        %1438 = vmatprep.subr.bf16.mxu0 0
        %1439 = vmatpush1.bf16.msra.mxu0 %v1423
        %1440 = vmatprep.subr.bf16.mxu0 0
        %1441 = vmatpush1.bf16.msra.mxu0 %v1422
        %1442 = vmatprep.subr.bf16.mxu0 0
        %1443 = vmatpush1.bf16.msra.mxu0 %v1421
        %1444 = vmatprep.subr.bf16.mxu0 0
        %1445 = vmatpush1.bf16.msra.mxu0 %v1420
        %1446 = vmatprep.subr.bf16.mxu0 0
        %1447 = vmatpush1.bf16.msra.mxu0 %v1419
        %1448 = vmatprep.subr.bf16.mxu0 0
        %1449 = vmatpush1.bf16.msra.mxu0 %v1418
        %1450 = vmatprep.subr.bf16.mxu0 0
        %1451 = vmatpush2.bf16.msra.mxu0 0
        %1452 = vmatprep.subr.bf16.mxu0 0
        %1453 = vmatpush2.bf16.msra.mxu0 0
        %1454 = vmatprep.subr.bf16.mxu0 0
        %1455 = vmatpush2.bf16.msra.mxu0 0
        %1456 = vmatprep.subr.bf16.mxu0 0
        %1457 = vmatpush2.bf16.msra.mxu0 0
        %1458 = vmatprep.subr.bf16.mxu0 0
        %1459 = vmatpush2.bf16.msra.mxu0 0
        %1460 = vmatprep.subr.bf16.mxu0 0
        %1461 = vmatpush2.bf16.msra.mxu0 0
        %1462 = vmatprep.subr.bf16.mxu0 0
        %1463 = vmatpush2.bf16.msra.mxu0 0
        %1464 = vmatprep.subr.bf16.mxu0 0
        %1465 = vmatpush2.bf16.msra.mxu0 0
        %1466 = vmatprep.mubr.bf16.mxu0 0
        %1467 = vmatmul.mubr.bf16.gmra.mxu0 %v1365
        %v1468 = vpop.f32.mrf.mxu0
        %v1469 = vadd.f32 0.0, %v1468
        %v1470 = vpop.f32.mrf.mxu0
        %v1471 = vpop.f32.mrf.mxu0
        %v1472 = vadd.f32 0.0, %v1471
        %v1473 = vpop.f32.mrf.mxu0
        %1474 = vmatprep.mubr.bf16.mxu0 0
        %1475 = vmatmul.mubr.bf16.gmra.mxu0 %v1366
        %v1476 = vpop.f32.mrf.mxu0
        %v1477 = vadd.f32 0.0, %v1476
        %v1478 = vpop.f32.mrf.mxu0
        %v1479 = vpop.f32.mrf.mxu0
        %v1480 = vadd.f32 0.0, %v1479
        %v1481 = vpop.f32.mrf.mxu0
        %1482 = vmatprep.mubr.bf16.mxu0 0
        %1483 = vmatmul.mubr.bf16.gmra.mxu0 %v1367
        %v1484 = vpop.f32.mrf.mxu0
        %v1485 = vadd.f32 0.0, %v1484
        %v1486 = vpop.f32.mrf.mxu0
        %v1487 = vpop.f32.mrf.mxu0
        %v1488 = vadd.f32 0.0, %v1487
        %v1489 = vpop.f32.mrf.mxu0
        %1490 = vmatprep.mubr.bf16.mxu0 0
        %1491 = vmatmul.mubr.bf16.gmra.mxu0 %v1368
        %v1492 = vpop.f32.mrf.mxu0
        %v1493 = vadd.f32 0.0, %v1492
        %v1494 = vpop.f32.mrf.mxu0
        %v1495 = vpop.f32.mrf.mxu0
        %v1496 = vadd.f32 0.0, %v1495
        %v1497 = vpop.f32.mrf.mxu0
        %1498 = vdwg.mxu0
        %v1499 = vadd.f32 %v1349, %v1469
        %v1500 = vadd.f32 %v1350, %v1472
        %v1501 = vadd.f32 %v1351, %v1477
        %v1502 = vadd.f32 %v1352, %v1480
        %v1503 = vadd.f32 %v1353, %v1485
        %v1504 = vadd.f32 %v1354, %v1488
        %v1505 = vadd.f32 %v1355, %v1493
        %v1506 = vadd.f32 %v1356, %v1496
        %v1507 = vld [vmem:[%s662 + $0x1] sm:$0xff]
        %v1508 = vld [vmem:[%s662 + $0x11] sm:$0xff]
        %v1509 = vld [vmem:[%s662 + $0x21] sm:$0xff]
        %v1510 = vld [vmem:[%s662 + $0x31] sm:$0xff]
        %v1511 = vld [vmem:[%s662 + $0x41] sm:$0xff]
        %v1512 = vld [vmem:[%s662 + $0x51] sm:$0xff]
        %v1513 = vld [vmem:[%s662 + $0x61] sm:$0xff]
        %v1514 = vld [vmem:[%s662 + $0x71] sm:$0xff]
        %v1515 = vpack.c.bf16 %v1508, %v1507
        %v1516 = vpack.c.bf16 %v1510, %v1509
        %v1517 = vpack.c.bf16 %v1512, %v1511
        %v1518 = vpack.c.bf16 %v1514, %v1513
        %s1519 = scalar_lea.vmem %s3, 256
        %v1520 = vld [vmem:[%s1519] sm:$0xf]
        %v1521 = vld [vmem:[%s1519 + $0x4] sm:$0xf]
        %v1522 = vld [vmem:[%s1519 + $0x8] sm:$0xf]
        %v1523 = vld [vmem:[%s1519 + $0xc] sm:$0xf]
        %v1524 = vld [vmem:[%s1519 + $0x10] sm:$0xf]
        %v1525 = vld [vmem:[%s1519 + $0x14] sm:$0xf]
        %v1526 = vld [vmem:[%s1519 + $0x18] sm:$0xf]
        %v1527 = vld [vmem:[%s1519 + $0x1c] sm:$0xf]
        %v1528 = vld [vmem:[%s1519 + $0x20] sm:$0xf]
        %v1529 = vld [vmem:[%s1519 + $0x24] sm:$0xf]
        %v1530 = vld [vmem:[%s1519 + $0x28] sm:$0xf]
        %v1531 = vld [vmem:[%s1519 + $0x2c] sm:$0xf]
        %v1532 = vld [vmem:[%s1519 + $0x30] sm:$0xf]
        %v1533 = vld [vmem:[%s1519 + $0x34] sm:$0xf]
        %v1534 = vld [vmem:[%s1519 + $0x38] sm:$0xf]
        %v1535 = vld [vmem:[%s1519 + $0x3c] sm:$0xf]
        %v1552 = vunpack.c.l.b16 %v1520
        %v1553 = vunpack.c.l.b16 %v1521
        %v1554 = vunpack.c.l.b16 %v1522
        %v1555 = vunpack.c.l.b16 %v1523
        %v1556 = vunpack.c.l.b16 %v1524
        %v1557 = vunpack.c.l.b16 %v1525
        %v1558 = vunpack.c.l.b16 %v1526
        %v1559 = vunpack.c.l.b16 %v1527
        %v1560 = vunpack.c.l.b16 %v1528
        %v1561 = vunpack.c.l.b16 %v1529
        %v1562 = vunpack.c.l.b16 %v1530
        %v1563 = vunpack.c.l.b16 %v1531
        %v1564 = vunpack.c.l.b16 %v1532
        %v1565 = vunpack.c.l.b16 %v1533
        %v1566 = vunpack.c.l.b16 %v1534
        %v1567 = vunpack.c.l.b16 %v1535
        %v1568 = vpack.c.b16 %v1553, %v1552
        %v1569 = vpack.c.b16 %v1555, %v1554
        %v1570 = vpack.c.b16 %v1557, %v1556
        %v1571 = vpack.c.b16 %v1559, %v1558
        %v1572 = vpack.c.b16 %v1561, %v1560
        %v1573 = vpack.c.b16 %v1563, %v1562
        %v1574 = vpack.c.b16 %v1565, %v1564
        %v1575 = vpack.c.b16 %v1567, %v1566
        %1584 = vmatprep.subr.bf16.mxu0 0
        %1585 = vmatpush1.bf16.msra.mxu0 %v1575
        %1586 = vmatprep.subr.bf16.mxu0 0
        %1587 = vmatpush1.bf16.msra.mxu0 %v1574
        %1588 = vmatprep.subr.bf16.mxu0 0
        %1589 = vmatpush1.bf16.msra.mxu0 %v1573
        %1590 = vmatprep.subr.bf16.mxu0 0
        %1591 = vmatpush1.bf16.msra.mxu0 %v1572
        %1592 = vmatprep.subr.bf16.mxu0 0
        %1593 = vmatpush1.bf16.msra.mxu0 %v1571
        %1594 = vmatprep.subr.bf16.mxu0 0
        %1595 = vmatpush1.bf16.msra.mxu0 %v1570
        %1596 = vmatprep.subr.bf16.mxu0 0
        %1597 = vmatpush1.bf16.msra.mxu0 %v1569
        %1598 = vmatprep.subr.bf16.mxu0 0
        %1599 = vmatpush1.bf16.msra.mxu0 %v1568
        %1600 = vmatprep.subr.bf16.mxu0 0
        %1601 = vmatpush2.bf16.msra.mxu0 0
        %1602 = vmatprep.subr.bf16.mxu0 0
        %1603 = vmatpush2.bf16.msra.mxu0 0
        %1604 = vmatprep.subr.bf16.mxu0 0
        %1605 = vmatpush2.bf16.msra.mxu0 0
        %1606 = vmatprep.subr.bf16.mxu0 0
        %1607 = vmatpush2.bf16.msra.mxu0 0
        %1608 = vmatprep.subr.bf16.mxu0 0
        %1609 = vmatpush2.bf16.msra.mxu0 0
        %1610 = vmatprep.subr.bf16.mxu0 0
        %1611 = vmatpush2.bf16.msra.mxu0 0
        %1612 = vmatprep.subr.bf16.mxu0 0
        %1613 = vmatpush2.bf16.msra.mxu0 0
        %1614 = vmatprep.subr.bf16.mxu0 0
        %1615 = vmatpush2.bf16.msra.mxu0 0
        %1616 = vmatprep.mubr.bf16.mxu0 0
        %1617 = vmatmul.mubr.bf16.gmra.mxu0 %v1515
        %v1618 = vpop.f32.mrf.mxu0
        %v1619 = vadd.f32 0.0, %v1618
        %v1620 = vpop.f32.mrf.mxu0
        %v1621 = vpop.f32.mrf.mxu0
        %v1622 = vadd.f32 0.0, %v1621
        %v1623 = vpop.f32.mrf.mxu0
        %1624 = vmatprep.mubr.bf16.mxu0 0
        %1625 = vmatmul.mubr.bf16.gmra.mxu0 %v1516
        %v1626 = vpop.f32.mrf.mxu0
        %v1627 = vadd.f32 0.0, %v1626
        %v1628 = vpop.f32.mrf.mxu0
        %v1629 = vpop.f32.mrf.mxu0
        %v1630 = vadd.f32 0.0, %v1629
        %v1631 = vpop.f32.mrf.mxu0
        %1632 = vmatprep.mubr.bf16.mxu0 0
        %1633 = vmatmul.mubr.bf16.gmra.mxu0 %v1517
        %v1634 = vpop.f32.mrf.mxu0
        %v1635 = vadd.f32 0.0, %v1634
        %v1636 = vpop.f32.mrf.mxu0
        %v1637 = vpop.f32.mrf.mxu0
        %v1638 = vadd.f32 0.0, %v1637
        %v1639 = vpop.f32.mrf.mxu0
        %1640 = vmatprep.mubr.bf16.mxu0 0
        %1641 = vmatmul.mubr.bf16.gmra.mxu0 %v1518
        %v1642 = vpop.f32.mrf.mxu0
        %v1643 = vadd.f32 0.0, %v1642
        %v1644 = vpop.f32.mrf.mxu0
        %v1645 = vpop.f32.mrf.mxu0
        %v1646 = vadd.f32 0.0, %v1645
        %v1647 = vpop.f32.mrf.mxu0
        %1648 = vdwg.mxu0
        %v1649 = vadd.f32 %v1499, %v1619
        %v1650 = vadd.f32 %v1500, %v1622
        %v1651 = vadd.f32 %v1501, %v1627
        %v1652 = vadd.f32 %v1502, %v1630
        %v1653 = vadd.f32 %v1503, %v1635
        %v1654 = vadd.f32 %v1504, %v1638
        %v1655 = vadd.f32 %v1505, %v1643
        %v1656 = vadd.f32 %v1506, %v1646
        %v1657 = vld [vmem:[%s662 + $0x2] sm:$0xff]
        %v1658 = vld [vmem:[%s662 + $0x12] sm:$0xff]
        %v1659 = vld [vmem:[%s662 + $0x22] sm:$0xff]
        %v1660 = vld [vmem:[%s662 + $0x32] sm:$0xff]
        %v1661 = vld [vmem:[%s662 + $0x42] sm:$0xff]
        %v1662 = vld [vmem:[%s662 + $0x52] sm:$0xff]
        %v1663 = vld [vmem:[%s662 + $0x62] sm:$0xff]
        %v1664 = vld [vmem:[%s662 + $0x72] sm:$0xff]
        %v1665 = vpack.c.bf16 %v1658, %v1657
        %v1666 = vpack.c.bf16 %v1660, %v1659
        %v1667 = vpack.c.bf16 %v1662, %v1661
        %v1668 = vpack.c.bf16 %v1664, %v1663
        %s1669 = scalar_lea.vmem %s3, 320
        %v1670 = vld [vmem:[%s1669] sm:$0xf]
        %v1671 = vld [vmem:[%s1669 + $0x4] sm:$0xf]
        %v1672 = vld [vmem:[%s1669 + $0x8] sm:$0xf]
        %v1673 = vld [vmem:[%s1669 + $0xc] sm:$0xf]
        %v1674 = vld [vmem:[%s1669 + $0x10] sm:$0xf]
        %v1675 = vld [vmem:[%s1669 + $0x14] sm:$0xf]
        %v1676 = vld [vmem:[%s1669 + $0x18] sm:$0xf]
        %v1677 = vld [vmem:[%s1669 + $0x1c] sm:$0xf]
        %v1678 = vld [vmem:[%s1669 + $0x20] sm:$0xf]
        %v1679 = vld [vmem:[%s1669 + $0x24] sm:$0xf]
        %v1680 = vld [vmem:[%s1669 + $0x28] sm:$0xf]
        %v1681 = vld [vmem:[%s1669 + $0x2c] sm:$0xf]
        %v1682 = vld [vmem:[%s1669 + $0x30] sm:$0xf]
        %v1683 = vld [vmem:[%s1669 + $0x34] sm:$0xf]
        %v1684 = vld [vmem:[%s1669 + $0x38] sm:$0xf]
        %v1685 = vld [vmem:[%s1669 + $0x3c] sm:$0xf]
        %v1702 = vunpack.c.l.b16 %v1670
        %v1703 = vunpack.c.l.b16 %v1671
        %v1704 = vunpack.c.l.b16 %v1672
        %v1705 = vunpack.c.l.b16 %v1673
        %v1706 = vunpack.c.l.b16 %v1674
        %v1707 = vunpack.c.l.b16 %v1675
        %v1708 = vunpack.c.l.b16 %v1676
        %v1709 = vunpack.c.l.b16 %v1677
        %v1710 = vunpack.c.l.b16 %v1678
        %v1711 = vunpack.c.l.b16 %v1679
        %v1712 = vunpack.c.l.b16 %v1680
        %v1713 = vunpack.c.l.b16 %v1681
        %v1714 = vunpack.c.l.b16 %v1682
        %v1715 = vunpack.c.l.b16 %v1683
        %v1716 = vunpack.c.l.b16 %v1684
        %v1717 = vunpack.c.l.b16 %v1685
        %v1718 = vpack.c.b16 %v1703, %v1702
        %v1719 = vpack.c.b16 %v1705, %v1704
        %v1720 = vpack.c.b16 %v1707, %v1706
        %v1721 = vpack.c.b16 %v1709, %v1708
        %v1722 = vpack.c.b16 %v1711, %v1710
        %v1723 = vpack.c.b16 %v1713, %v1712
        %v1724 = vpack.c.b16 %v1715, %v1714
        %v1725 = vpack.c.b16 %v1717, %v1716
        %1734 = vmatprep.subr.bf16.mxu0 0
        %1735 = vmatpush1.bf16.msra.mxu0 %v1725
        %1736 = vmatprep.subr.bf16.mxu0 0
        %1737 = vmatpush1.bf16.msra.mxu0 %v1724
        %1738 = vmatprep.subr.bf16.mxu0 0
        %1739 = vmatpush1.bf16.msra.mxu0 %v1723
        %1740 = vmatprep.subr.bf16.mxu0 0
        %1741 = vmatpush1.bf16.msra.mxu0 %v1722
        %1742 = vmatprep.subr.bf16.mxu0 0
        %1743 = vmatpush1.bf16.msra.mxu0 %v1721
        %1744 = vmatprep.subr.bf16.mxu0 0
        %1745 = vmatpush1.bf16.msra.mxu0 %v1720
        %1746 = vmatprep.subr.bf16.mxu0 0
        %1747 = vmatpush1.bf16.msra.mxu0 %v1719
        %1748 = vmatprep.subr.bf16.mxu0 0
        %1749 = vmatpush1.bf16.msra.mxu0 %v1718
        %1750 = vmatprep.subr.bf16.mxu0 0
        %1751 = vmatpush2.bf16.msra.mxu0 0
        %1752 = vmatprep.subr.bf16.mxu0 0
        %1753 = vmatpush2.bf16.msra.mxu0 0
        %1754 = vmatprep.subr.bf16.mxu0 0
        %1755 = vmatpush2.bf16.msra.mxu0 0
        %1756 = vmatprep.subr.bf16.mxu0 0
        %1757 = vmatpush2.bf16.msra.mxu0 0
        %1758 = vmatprep.subr.bf16.mxu0 0
        %1759 = vmatpush2.bf16.msra.mxu0 0
        %1760 = vmatprep.subr.bf16.mxu0 0
        %1761 = vmatpush2.bf16.msra.mxu0 0
        %1762 = vmatprep.subr.bf16.mxu0 0
        %1763 = vmatpush2.bf16.msra.mxu0 0
        %1764 = vmatprep.subr.bf16.mxu0 0
        %1765 = vmatpush2.bf16.msra.mxu0 0
        %1766 = vmatprep.mubr.bf16.mxu0 0
        %1767 = vmatmul.mubr.bf16.gmra.mxu0 %v1665
        %v1768 = vpop.f32.mrf.mxu0
        %v1769 = vadd.f32 0.0, %v1768
        %v1770 = vpop.f32.mrf.mxu0
        %v1771 = vpop.f32.mrf.mxu0
        %v1772 = vadd.f32 0.0, %v1771
        %v1773 = vpop.f32.mrf.mxu0
        %1774 = vmatprep.mubr.bf16.mxu0 0
        %1775 = vmatmul.mubr.bf16.gmra.mxu0 %v1666
        %v1776 = vpop.f32.mrf.mxu0
        %v1777 = vadd.f32 0.0, %v1776
        %v1778 = vpop.f32.mrf.mxu0
        %v1779 = vpop.f32.mrf.mxu0
        %v1780 = vadd.f32 0.0, %v1779
        %v1781 = vpop.f32.mrf.mxu0
        %1782 = vmatprep.mubr.bf16.mxu0 0
        %1783 = vmatmul.mubr.bf16.gmra.mxu0 %v1667
        %v1784 = vpop.f32.mrf.mxu0
        %v1785 = vadd.f32 0.0, %v1784
        %v1786 = vpop.f32.mrf.mxu0
        %v1787 = vpop.f32.mrf.mxu0
        %v1788 = vadd.f32 0.0, %v1787
        %v1789 = vpop.f32.mrf.mxu0
        %1790 = vmatprep.mubr.bf16.mxu0 0
        %1791 = vmatmul.mubr.bf16.gmra.mxu0 %v1668
        %v1792 = vpop.f32.mrf.mxu0
        %v1793 = vadd.f32 0.0, %v1792
        %v1794 = vpop.f32.mrf.mxu0
        %v1795 = vpop.f32.mrf.mxu0
        %v1796 = vadd.f32 0.0, %v1795
        %v1797 = vpop.f32.mrf.mxu0
        %1798 = vdwg.mxu0
        %v1799 = vadd.f32 %v1649, %v1769
        %v1800 = vadd.f32 %v1650, %v1772
        %v1801 = vadd.f32 %v1651, %v1777
        %v1802 = vadd.f32 %v1652, %v1780
        %v1803 = vadd.f32 %v1653, %v1785
        %v1804 = vadd.f32 %v1654, %v1788
        %v1805 = vadd.f32 %v1655, %v1793
        %v1806 = vadd.f32 %v1656, %v1796
        %v1807 = vld [vmem:[%s699] sm:$0xff]
        %v1808 = vld [vmem:[%s699 + $0x10] sm:$0xff]
        %v1809 = vld [vmem:[%s699 + $0x20] sm:$0xff]
        %v1810 = vld [vmem:[%s699 + $0x30] sm:$0xff]
        %v1811 = vld [vmem:[%s699 + $0x40] sm:$0xff]
        %v1812 = vld [vmem:[%s699 + $0x50] sm:$0xff]
        %v1813 = vld [vmem:[%s699 + $0x60] sm:$0xff]
        %v1814 = vld [vmem:[%s699 + $0x70] sm:$0xff]
        %v1815 = vpack.c.bf16 %v1808, %v1807
        %v1816 = vpack.c.bf16 %v1810, %v1809
        %v1817 = vpack.c.bf16 %v1812, %v1811
        %v1818 = vpack.c.bf16 %v1814, %v1813
        %s1819 = scalar_lea.vmem %s3, 384
        %v1820 = vld [vmem:[%s1819] sm:$0xf]
        %v1821 = vld [vmem:[%s1819 + $0x4] sm:$0xf]
        %v1822 = vld [vmem:[%s1819 + $0x8] sm:$0xf]
        %v1823 = vld [vmem:[%s1819 + $0xc] sm:$0xf]
        %v1824 = vld [vmem:[%s1819 + $0x10] sm:$0xf]
        %v1825 = vld [vmem:[%s1819 + $0x14] sm:$0xf]
        %v1826 = vld [vmem:[%s1819 + $0x18] sm:$0xf]
        %v1827 = vld [vmem:[%s1819 + $0x1c] sm:$0xf]
        %v1828 = vld [vmem:[%s1819 + $0x20] sm:$0xf]
        %v1829 = vld [vmem:[%s1819 + $0x24] sm:$0xf]
        %v1830 = vld [vmem:[%s1819 + $0x28] sm:$0xf]
        %v1831 = vld [vmem:[%s1819 + $0x2c] sm:$0xf]
        %v1832 = vld [vmem:[%s1819 + $0x30] sm:$0xf]
        %v1833 = vld [vmem:[%s1819 + $0x34] sm:$0xf]
        %v1834 = vld [vmem:[%s1819 + $0x38] sm:$0xf]
        %v1835 = vld [vmem:[%s1819 + $0x3c] sm:$0xf]
        %v1852 = vunpack.c.l.b16 %v1820
        %v1853 = vunpack.c.l.b16 %v1821
        %v1854 = vunpack.c.l.b16 %v1822
        %v1855 = vunpack.c.l.b16 %v1823
        %v1856 = vunpack.c.l.b16 %v1824
        %v1857 = vunpack.c.l.b16 %v1825
        %v1858 = vunpack.c.l.b16 %v1826
        %v1859 = vunpack.c.l.b16 %v1827
        %v1860 = vunpack.c.l.b16 %v1828
        %v1861 = vunpack.c.l.b16 %v1829
        %v1862 = vunpack.c.l.b16 %v1830
        %v1863 = vunpack.c.l.b16 %v1831
        %v1864 = vunpack.c.l.b16 %v1832
        %v1865 = vunpack.c.l.b16 %v1833
        %v1866 = vunpack.c.l.b16 %v1834
        %v1867 = vunpack.c.l.b16 %v1835
        %v1868 = vpack.c.b16 %v1853, %v1852
        %v1869 = vpack.c.b16 %v1855, %v1854
        %v1870 = vpack.c.b16 %v1857, %v1856
        %v1871 = vpack.c.b16 %v1859, %v1858
        %v1872 = vpack.c.b16 %v1861, %v1860
        %v1873 = vpack.c.b16 %v1863, %v1862
        %v1874 = vpack.c.b16 %v1865, %v1864
        %v1875 = vpack.c.b16 %v1867, %v1866
        %1884 = vmatprep.subr.bf16.mxu0 0
        %1885 = vmatpush1.bf16.msra.mxu0 %v1875
        %1886 = vmatprep.subr.bf16.mxu0 0
        %1887 = vmatpush1.bf16.msra.mxu0 %v1874
        %1888 = vmatprep.subr.bf16.mxu0 0
        %1889 = vmatpush1.bf16.msra.mxu0 %v1873
        %1890 = vmatprep.subr.bf16.mxu0 0
        %1891 = vmatpush1.bf16.msra.mxu0 %v1872
        %1892 = vmatprep.subr.bf16.mxu0 0
        %1893 = vmatpush1.bf16.msra.mxu0 %v1871
        %1894 = vmatprep.subr.bf16.mxu0 0
        %1895 = vmatpush1.bf16.msra.mxu0 %v1870
        %1896 = vmatprep.subr.bf16.mxu0 0
        %1897 = vmatpush1.bf16.msra.mxu0 %v1869
        %1898 = vmatprep.subr.bf16.mxu0 0
        %1899 = vmatpush1.bf16.msra.mxu0 %v1868
        %1900 = vmatprep.subr.bf16.mxu0 0
        %1901 = vmatpush2.bf16.msra.mxu0 0
        %1902 = vmatprep.subr.bf16.mxu0 0
        %1903 = vmatpush2.bf16.msra.mxu0 0
        %1904 = vmatprep.subr.bf16.mxu0 0
        %1905 = vmatpush2.bf16.msra.mxu0 0
        %1906 = vmatprep.subr.bf16.mxu0 0
        %1907 = vmatpush2.bf16.msra.mxu0 0
        %1908 = vmatprep.subr.bf16.mxu0 0
        %1909 = vmatpush2.bf16.msra.mxu0 0
        %1910 = vmatprep.subr.bf16.mxu0 0
        %1911 = vmatpush2.bf16.msra.mxu0 0
        %1912 = vmatprep.subr.bf16.mxu0 0
        %1913 = vmatpush2.bf16.msra.mxu0 0
        %1914 = vmatprep.subr.bf16.mxu0 0
        %1915 = vmatpush2.bf16.msra.mxu0 0
        %1916 = vmatprep.mubr.bf16.mxu0 0
        %1917 = vmatmul.mubr.bf16.gmra.mxu0 %v1815
        %v1918 = vpop.f32.mrf.mxu0
        %v1919 = vadd.f32 0.0, %v1918
        %v1920 = vpop.f32.mrf.mxu0
        %v1921 = vpop.f32.mrf.mxu0
        %v1922 = vadd.f32 0.0, %v1921
        %v1923 = vpop.f32.mrf.mxu0
        %1924 = vmatprep.mubr.bf16.mxu0 0
        %1925 = vmatmul.mubr.bf16.gmra.mxu0 %v1816
        %v1926 = vpop.f32.mrf.mxu0
        %v1927 = vadd.f32 0.0, %v1926
        %v1928 = vpop.f32.mrf.mxu0
        %v1929 = vpop.f32.mrf.mxu0
        %v1930 = vadd.f32 0.0, %v1929
        %v1931 = vpop.f32.mrf.mxu0
        %1932 = vmatprep.mubr.bf16.mxu0 0
        %1933 = vmatmul.mubr.bf16.gmra.mxu0 %v1817
        %v1934 = vpop.f32.mrf.mxu0
        %v1935 = vadd.f32 0.0, %v1934
        %v1936 = vpop.f32.mrf.mxu0
        %v1937 = vpop.f32.mrf.mxu0
        %v1938 = vadd.f32 0.0, %v1937
        %v1939 = vpop.f32.mrf.mxu0
        %1940 = vmatprep.mubr.bf16.mxu0 0
        %1941 = vmatmul.mubr.bf16.gmra.mxu0 %v1818
        %v1942 = vpop.f32.mrf.mxu0
        %v1943 = vadd.f32 0.0, %v1942
        %v1944 = vpop.f32.mrf.mxu0
        %v1945 = vpop.f32.mrf.mxu0
        %v1946 = vadd.f32 0.0, %v1945
        %v1947 = vpop.f32.mrf.mxu0
        %1948 = vdwg.mxu0
        %v1949 = vadd.f32 %v1799, %v1919
        %v1950 = vadd.f32 %v1800, %v1922
        %v1951 = vadd.f32 %v1801, %v1927
        %v1952 = vadd.f32 %v1802, %v1930
        %v1953 = vadd.f32 %v1803, %v1935
        %v1954 = vadd.f32 %v1804, %v1938
        %v1955 = vadd.f32 %v1805, %v1943
        %v1956 = vadd.f32 %v1806, %v1946
        %v1957 = vld [vmem:[%s699 + $0x1] sm:$0xff]
        %v1958 = vld [vmem:[%s699 + $0x11] sm:$0xff]
        %v1959 = vld [vmem:[%s699 + $0x21] sm:$0xff]
        %v1960 = vld [vmem:[%s699 + $0x31] sm:$0xff]
        %v1961 = vld [vmem:[%s699 + $0x41] sm:$0xff]
        %v1962 = vld [vmem:[%s699 + $0x51] sm:$0xff]
        %v1963 = vld [vmem:[%s699 + $0x61] sm:$0xff]
        %v1964 = vld [vmem:[%s699 + $0x71] sm:$0xff]
        %v1965 = vpack.c.bf16 %v1958, %v1957
        %v1966 = vpack.c.bf16 %v1960, %v1959
        %v1967 = vpack.c.bf16 %v1962, %v1961
        %v1968 = vpack.c.bf16 %v1964, %v1963
        %s1969 = scalar_lea.vmem %s3, 448
        %v1970 = vld [vmem:[%s1969] sm:$0xf]
        %v1971 = vld [vmem:[%s1969 + $0x4] sm:$0xf]
        %v1972 = vld [vmem:[%s1969 + $0x8] sm:$0xf]
        %v1973 = vld [vmem:[%s1969 + $0xc] sm:$0xf]
        %v1974 = vld [vmem:[%s1969 + $0x10] sm:$0xf]
        %v1975 = vld [vmem:[%s1969 + $0x14] sm:$0xf]
        %v1976 = vld [vmem:[%s1969 + $0x18] sm:$0xf]
        %v1977 = vld [vmem:[%s1969 + $0x1c] sm:$0xf]
        %v1978 = vld [vmem:[%s1969 + $0x20] sm:$0xf]
        %v1979 = vld [vmem:[%s1969 + $0x24] sm:$0xf]
        %v1980 = vld [vmem:[%s1969 + $0x28] sm:$0xf]
        %v1981 = vld [vmem:[%s1969 + $0x2c] sm:$0xf]
        %v1982 = vld [vmem:[%s1969 + $0x30] sm:$0xf]
        %v1983 = vld [vmem:[%s1969 + $0x34] sm:$0xf]
        %v1984 = vld [vmem:[%s1969 + $0x38] sm:$0xf]
        %v1985 = vld [vmem:[%s1969 + $0x3c] sm:$0xf]
        %v2002 = vunpack.c.l.b16 %v1970
        %v2003 = vunpack.c.l.b16 %v1971
        %v2004 = vunpack.c.l.b16 %v1972
        %v2005 = vunpack.c.l.b16 %v1973
        %v2006 = vunpack.c.l.b16 %v1974
        %v2007 = vunpack.c.l.b16 %v1975
        %v2008 = vunpack.c.l.b16 %v1976
        %v2009 = vunpack.c.l.b16 %v1977
        %v2010 = vunpack.c.l.b16 %v1978
        %v2011 = vunpack.c.l.b16 %v1979
        %v2012 = vunpack.c.l.b16 %v1980
        %v2013 = vunpack.c.l.b16 %v1981
        %v2014 = vunpack.c.l.b16 %v1982
        %v2015 = vunpack.c.l.b16 %v1983
        %v2016 = vunpack.c.l.b16 %v1984
        %v2017 = vunpack.c.l.b16 %v1985
        %v2018 = vpack.c.b16 %v2003, %v2002
        %v2019 = vpack.c.b16 %v2005, %v2004
        %v2020 = vpack.c.b16 %v2007, %v2006
        %v2021 = vpack.c.b16 %v2009, %v2008
        %v2022 = vpack.c.b16 %v2011, %v2010
        %v2023 = vpack.c.b16 %v2013, %v2012
        %v2024 = vpack.c.b16 %v2015, %v2014
        %v2025 = vpack.c.b16 %v2017, %v2016
        %2034 = vmatprep.subr.bf16.mxu0 0
        %2035 = vmatpush1.bf16.msra.mxu0 %v2025
        %2036 = vmatprep.subr.bf16.mxu0 0
        %2037 = vmatpush1.bf16.msra.mxu0 %v2024
        %2038 = vmatprep.subr.bf16.mxu0 0
        %2039 = vmatpush1.bf16.msra.mxu0 %v2023
        %2040 = vmatprep.subr.bf16.mxu0 0
        %2041 = vmatpush1.bf16.msra.mxu0 %v2022
        %2042 = vmatprep.subr.bf16.mxu0 0
        %2043 = vmatpush1.bf16.msra.mxu0 %v2021
        %2044 = vmatprep.subr.bf16.mxu0 0
        %2045 = vmatpush1.bf16.msra.mxu0 %v2020
        %2046 = vmatprep.subr.bf16.mxu0 0
        %2047 = vmatpush1.bf16.msra.mxu0 %v2019
        %2048 = vmatprep.subr.bf16.mxu0 0
        %2049 = vmatpush1.bf16.msra.mxu0 %v2018
        %2050 = vmatprep.subr.bf16.mxu0 0
        %2051 = vmatpush2.bf16.msra.mxu0 0
        %2052 = vmatprep.subr.bf16.mxu0 0
        %2053 = vmatpush2.bf16.msra.mxu0 0
        %2054 = vmatprep.subr.bf16.mxu0 0
        %2055 = vmatpush2.bf16.msra.mxu0 0
        %2056 = vmatprep.subr.bf16.mxu0 0
        %2057 = vmatpush2.bf16.msra.mxu0 0
        %2058 = vmatprep.subr.bf16.mxu0 0
        %2059 = vmatpush2.bf16.msra.mxu0 0
        %2060 = vmatprep.subr.bf16.mxu0 0
        %2061 = vmatpush2.bf16.msra.mxu0 0
        %2062 = vmatprep.subr.bf16.mxu0 0
        %2063 = vmatpush2.bf16.msra.mxu0 0
        %2064 = vmatprep.subr.bf16.mxu0 0
        %2065 = vmatpush2.bf16.msra.mxu0 0
        %2066 = vmatprep.mubr.bf16.mxu0 0
        %2067 = vmatmul.mubr.bf16.gmra.mxu0 %v1965
        %v2068 = vpop.f32.mrf.mxu0
        %v2069 = vadd.f32 0.0, %v2068
        %v2070 = vpop.f32.mrf.mxu0
        %v2071 = vpop.f32.mrf.mxu0
        %v2072 = vadd.f32 0.0, %v2071
        %v2073 = vpop.f32.mrf.mxu0
        %2074 = vmatprep.mubr.bf16.mxu0 0
        %2075 = vmatmul.mubr.bf16.gmra.mxu0 %v1966
        %v2076 = vpop.f32.mrf.mxu0
        %v2077 = vadd.f32 0.0, %v2076
        %v2078 = vpop.f32.mrf.mxu0
        %v2079 = vpop.f32.mrf.mxu0
        %v2080 = vadd.f32 0.0, %v2079
        %v2081 = vpop.f32.mrf.mxu0
        %2082 = vmatprep.mubr.bf16.mxu0 0
        %2083 = vmatmul.mubr.bf16.gmra.mxu0 %v1967
        %v2084 = vpop.f32.mrf.mxu0
        %v2085 = vadd.f32 0.0, %v2084
        %v2086 = vpop.f32.mrf.mxu0
        %v2087 = vpop.f32.mrf.mxu0
        %v2088 = vadd.f32 0.0, %v2087
        %v2089 = vpop.f32.mrf.mxu0
        %2090 = vmatprep.mubr.bf16.mxu0 0
        %2091 = vmatmul.mubr.bf16.gmra.mxu0 %v1968
        %v2092 = vpop.f32.mrf.mxu0
        %v2093 = vadd.f32 0.0, %v2092
        %v2094 = vpop.f32.mrf.mxu0
        %v2095 = vpop.f32.mrf.mxu0
        %v2096 = vadd.f32 0.0, %v2095
        %v2097 = vpop.f32.mrf.mxu0
        %2098 = vdwg.mxu0
        %v2099 = vadd.f32 %v1949, %v2069
        %v2100 = vadd.f32 %v1950, %v2072
        %v2101 = vadd.f32 %v1951, %v2077
        %v2102 = vadd.f32 %v1952, %v2080
        %v2103 = vadd.f32 %v1953, %v2085
        %v2104 = vadd.f32 %v1954, %v2088
        %v2105 = vadd.f32 %v1955, %v2093
        %v2106 = vadd.f32 %v1956, %v2096
        %v2107 = vld [vmem:[%s699 + $0x2] sm:$0xff]
        %v2108 = vld [vmem:[%s699 + $0x12] sm:$0xff]
        %v2109 = vld [vmem:[%s699 + $0x22] sm:$0xff]
        %v2110 = vld [vmem:[%s699 + $0x32] sm:$0xff]
        %v2111 = vld [vmem:[%s699 + $0x42] sm:$0xff]
        %v2112 = vld [vmem:[%s699 + $0x52] sm:$0xff]
        %v2113 = vld [vmem:[%s699 + $0x62] sm:$0xff]
        %v2114 = vld [vmem:[%s699 + $0x72] sm:$0xff]
        %v2115 = vpack.c.bf16 %v2108, %v2107
        %v2116 = vpack.c.bf16 %v2110, %v2109
        %v2117 = vpack.c.bf16 %v2112, %v2111
        %v2118 = vpack.c.bf16 %v2114, %v2113
        %s2119 = scalar_lea.vmem %s3, 512
        %v2120 = vld [vmem:[%s2119] sm:$0xf]
        %v2121 = vld [vmem:[%s2119 + $0x4] sm:$0xf]
        %v2122 = vld [vmem:[%s2119 + $0x8] sm:$0xf]
        %v2123 = vld [vmem:[%s2119 + $0xc] sm:$0xf]
        %v2124 = vld [vmem:[%s2119 + $0x10] sm:$0xf]
        %v2125 = vld [vmem:[%s2119 + $0x14] sm:$0xf]
        %v2126 = vld [vmem:[%s2119 + $0x18] sm:$0xf]
        %v2127 = vld [vmem:[%s2119 + $0x1c] sm:$0xf]
        %v2128 = vld [vmem:[%s2119 + $0x20] sm:$0xf]
        %v2129 = vld [vmem:[%s2119 + $0x24] sm:$0xf]
        %v2130 = vld [vmem:[%s2119 + $0x28] sm:$0xf]
        %v2131 = vld [vmem:[%s2119 + $0x2c] sm:$0xf]
        %v2132 = vld [vmem:[%s2119 + $0x30] sm:$0xf]
        %v2133 = vld [vmem:[%s2119 + $0x34] sm:$0xf]
        %v2134 = vld [vmem:[%s2119 + $0x38] sm:$0xf]
        %v2135 = vld [vmem:[%s2119 + $0x3c] sm:$0xf]
        %v2152 = vunpack.c.l.b16 %v2120
        %v2153 = vunpack.c.l.b16 %v2121
        %v2154 = vunpack.c.l.b16 %v2122
        %v2155 = vunpack.c.l.b16 %v2123
        %v2156 = vunpack.c.l.b16 %v2124
        %v2157 = vunpack.c.l.b16 %v2125
        %v2158 = vunpack.c.l.b16 %v2126
        %v2159 = vunpack.c.l.b16 %v2127
        %v2160 = vunpack.c.l.b16 %v2128
        %v2161 = vunpack.c.l.b16 %v2129
        %v2162 = vunpack.c.l.b16 %v2130
        %v2163 = vunpack.c.l.b16 %v2131
        %v2164 = vunpack.c.l.b16 %v2132
        %v2165 = vunpack.c.l.b16 %v2133
        %v2166 = vunpack.c.l.b16 %v2134
        %v2167 = vunpack.c.l.b16 %v2135
        %v2168 = vpack.c.b16 %v2153, %v2152
        %v2169 = vpack.c.b16 %v2155, %v2154
        %v2170 = vpack.c.b16 %v2157, %v2156
        %v2171 = vpack.c.b16 %v2159, %v2158
        %v2172 = vpack.c.b16 %v2161, %v2160
        %v2173 = vpack.c.b16 %v2163, %v2162
        %v2174 = vpack.c.b16 %v2165, %v2164
        %v2175 = vpack.c.b16 %v2167, %v2166
        %2184 = vmatprep.subr.bf16.mxu0 0
        %2185 = vmatpush1.bf16.msra.mxu0 %v2175
        %2186 = vmatprep.subr.bf16.mxu0 0
        %2187 = vmatpush1.bf16.msra.mxu0 %v2174
        %2188 = vmatprep.subr.bf16.mxu0 0
        %2189 = vmatpush1.bf16.msra.mxu0 %v2173
        %2190 = vmatprep.subr.bf16.mxu0 0
        %2191 = vmatpush1.bf16.msra.mxu0 %v2172
        %2192 = vmatprep.subr.bf16.mxu0 0
        %2193 = vmatpush1.bf16.msra.mxu0 %v2171
        %2194 = vmatprep.subr.bf16.mxu0 0
        %2195 = vmatpush1.bf16.msra.mxu0 %v2170
        %2196 = vmatprep.subr.bf16.mxu0 0
        %2197 = vmatpush1.bf16.msra.mxu0 %v2169
        %2198 = vmatprep.subr.bf16.mxu0 0
        %2199 = vmatpush1.bf16.msra.mxu0 %v2168
        %2200 = vmatprep.subr.bf16.mxu0 0
        %2201 = vmatpush2.bf16.msra.mxu0 0
        %2202 = vmatprep.subr.bf16.mxu0 0
        %2203 = vmatpush2.bf16.msra.mxu0 0
        %2204 = vmatprep.subr.bf16.mxu0 0
        %2205 = vmatpush2.bf16.msra.mxu0 0
        %2206 = vmatprep.subr.bf16.mxu0 0
        %2207 = vmatpush2.bf16.msra.mxu0 0
        %2208 = vmatprep.subr.bf16.mxu0 0
        %2209 = vmatpush2.bf16.msra.mxu0 0
        %2210 = vmatprep.subr.bf16.mxu0 0
        %2211 = vmatpush2.bf16.msra.mxu0 0
        %2212 = vmatprep.subr.bf16.mxu0 0
        %2213 = vmatpush2.bf16.msra.mxu0 0
        %2214 = vmatprep.subr.bf16.mxu0 0
        %2215 = vmatpush2.bf16.msra.mxu0 0
        %2216 = vmatprep.mubr.bf16.mxu0 0
        %2217 = vmatmul.mubr.bf16.gmra.mxu0 %v2115
        %v2218 = vpop.f32.mrf.mxu0
        %v2219 = vadd.f32 0.0, %v2218
        %v2220 = vpop.f32.mrf.mxu0
        %v2221 = vpop.f32.mrf.mxu0
        %v2222 = vadd.f32 0.0, %v2221
        %v2223 = vpop.f32.mrf.mxu0
        %2224 = vmatprep.mubr.bf16.mxu0 0
        %2225 = vmatmul.mubr.bf16.gmra.mxu0 %v2116
        %v2226 = vpop.f32.mrf.mxu0
        %v2227 = vadd.f32 0.0, %v2226
        %v2228 = vpop.f32.mrf.mxu0
        %v2229 = vpop.f32.mrf.mxu0
        %v2230 = vadd.f32 0.0, %v2229
        %v2231 = vpop.f32.mrf.mxu0
        %2232 = vmatprep.mubr.bf16.mxu0 0
        %2233 = vmatmul.mubr.bf16.gmra.mxu0 %v2117
        %v2234 = vpop.f32.mrf.mxu0
        %v2235 = vadd.f32 0.0, %v2234
        %v2236 = vpop.f32.mrf.mxu0
        %v2237 = vpop.f32.mrf.mxu0
        %v2238 = vadd.f32 0.0, %v2237
        %v2239 = vpop.f32.mrf.mxu0
        %2240 = vmatprep.mubr.bf16.mxu0 0
        %2241 = vmatmul.mubr.bf16.gmra.mxu0 %v2118
        %v2242 = vpop.f32.mrf.mxu0
        %v2243 = vadd.f32 0.0, %v2242
        %v2244 = vpop.f32.mrf.mxu0
        %v2245 = vpop.f32.mrf.mxu0
        %v2246 = vadd.f32 0.0, %v2245
        %v2247 = vpop.f32.mrf.mxu0
        %2248 = vdwg.mxu0
        %v2249 = vadd.f32 %v2099, %v2219
        %v2250 = vadd.f32 %v2100, %v2222
        %v2251 = vadd.f32 %v2101, %v2227
        %v2252 = vadd.f32 %v2102, %v2230
        %v2253 = vadd.f32 %v2103, %v2235
        %v2254 = vadd.f32 %v2104, %v2238
        %v2255 = vadd.f32 %v2105, %v2243
        %v2256 = vadd.f32 %v2106, %v2246
        %v2257 = vld [vmem:[%s4] sm:$0x1]
        %v2259 = vlaneseq
        %v2260 = vshrl.u32 %v2259, 7
        %v2261 = vsub.s32 0, %v2260
        %v2262 = vrot.slane %v2257, %v2261
        %v2264 = vadd.f32 %v2249, %v2262
        %v2265 = vadd.f32 %v2250, %v2262
        %v2266 = vadd.f32 %v2251, %v2262
        %v2267 = vadd.f32 %v2252, %v2262
        %v2268 = vadd.f32 %v2253, %v2262
        %v2269 = vadd.f32 %v2254, %v2262
        %v2270 = vadd.f32 %v2255, %v2262
        %v2271 = vadd.f32 %v2256, %v2262
        %v2272 = vmax.f32 %v2264, 0.0
        %v2273 = vmax.f32 %v2265, 0.0
        %v2274 = vmax.f32 %v2266, 0.0
        %v2275 = vmax.f32 %v2267, 0.0
        %v2276 = vmax.f32 %v2268, 0.0
        %v2277 = vmax.f32 %v2269, 0.0
        %v2278 = vmax.f32 %v2270, 0.0
        %v2279 = vmax.f32 %v2271, 0.0
        %v2280 = vmax.f32 %v2272, %v2273
        %v2282 = vrot.slane %v2280, 1
        %v2284 = vmax.f32 %v2280, %v2282
        %v2286 = vrot.slane %v2284, 1
        %v2288 = vrot.slane %v2284, 2
        %v2290 = vrot.slane %v2284, 3
        %v2292 = vsel %vm647, %v2284, %v2286
        %v2293 = vsel %vm649, %v2292, %v2288
        %v2294 = vsel %vm651, %v2293, %v2290
        %2295 = vst [vmem:[%s217] sm:$0xf] %v2294
        %v2296 = vmax.f32 %v2274, %v2275
        %v2298 = vrot.slane %v2296, 1
        %v2300 = vmax.f32 %v2296, %v2298
        %v2302 = vrot.slane %v2300, 1
        %v2304 = vrot.slane %v2300, 2
        %v2306 = vrot.slane %v2300, 3
        %v2308 = vsel %vm647, %v2300, %v2302
        %v2309 = vsel %vm649, %v2308, %v2304
        %v2310 = vsel %vm651, %v2309, %v2306
        %s2311 = scalar_lea.vmem %s217, 4 [#allocation3]
        %2312 = vst [vmem:[%s2311] sm:$0xf] %v2310
        %v2313 = vmax.f32 %v2276, %v2277
        %v2315 = vrot.slane %v2313, 1
        %v2317 = vmax.f32 %v2313, %v2315
        %v2319 = vrot.slane %v2317, 1
        %v2321 = vrot.slane %v2317, 2
        %v2323 = vrot.slane %v2317, 3
        %v2325 = vsel %vm647, %v2317, %v2319
        %v2326 = vsel %vm649, %v2325, %v2321
        %v2327 = vsel %vm651, %v2326, %v2323
        %s2328 = scalar_lea.vmem %s217, 8 [#allocation3]
        %2329 = vst [vmem:[%s2328] sm:$0xf] %v2327
        %v2330 = vmax.f32 %v2278, %v2279
        %v2332 = vrot.slane %v2330, 1
        %v2334 = vmax.f32 %v2330, %v2332
        %v2336 = vrot.slane %v2334, 1
        %v2338 = vrot.slane %v2334, 2
        %v2340 = vrot.slane %v2334, 3
        %v2342 = vsel %vm647, %v2334, %v2336
        %v2343 = vsel %vm649, %v2342, %v2338
        %v2344 = vsel %vm651, %v2343, %v2340
        %s2345 = scalar_lea.vmem %s217, 12 [#allocation3]
        %2346 = vst [vmem:[%s2345] sm:$0xf] %v2344
        %s2347 = sand.u32 %s137, 1
        %s2348 = scalar_lea.sflag [#allocation4], %s2347
        %s2349 = sand.u32 %s137, 1
        %s2350 = smul.addr %s2349, 16
        %s2351 = scalar_lea.vmem [#allocation3], %s2350
        // Predicated region
        $region41: #{simple_encoder_forward.1} parent=39 // pred_check
          %p2352 = pneg %p147
        $region42: #{simple_encoder_forward.1} parent=39 // pred_check_branch
          %2354 = sbr.rel (%p2352) target = $region44
        $region43: #{simple_encoder_forward.1} parent=39 // pred_region
          %s2356 = ssub.s32 256, 256
          %2357 = vsyncadd %s2348, %s2356
          %s2358 = smul.addr %s19, 4
          %s2359 = smul.addr %s2358, 64
          %s2360 = scalar_lea.hbm %s5, %s2359
          %s2361 = sshll.u32 %s2351, 4
          %s2362 = int_to_ptr.vmem [resolvable:$true] %s2361
          %2367 = dma.vmem_to_hbm [thread:$0]  %s2362, 256, %s2360, %s2348, 64, 64, 4
        $region44: #{simple_encoder_forward.1} parent=39 // pred_fallthru
          _
      $region40: #{simple_encoder_forward.1} parent=5 // pred_fallthru
        _
      %p2368 = scmp.le.s32.totalorder 2, %s14
      // Predicated region
      $region45: #{simple_encoder_forward.1} parent=5 // pred_check
        %p2369 = pneg %p2368
      $region46: #{simple_encoder_forward.1} parent=5 // pred_check_branch
        %2371 = sbr.rel (%p2369) target = $region48
      $region47: #{simple_encoder_forward.1} parent=5 // pred_region
        %s2372 = ssub.s32 %s14, 2
        // Predicated region
        $region49: #{simple_encoder_forward.1} parent=47 // pred_check
          %p2373 = pneg %p153
        $region50: #{simple_encoder_forward.1} parent=47 // pred_check_branch
          %2375 = sbr.rel (%p2373) target = $region52
        $region51: #{simple_encoder_forward.1} parent=47 // pred_region
          %s2376 = sand.u32 %s138, 1
          %s2377 = scalar_lea.sflag [#allocation4], %s2376
          %s2378 = sand.u32 %s138, 1
          %s2379 = smul.addr %s2378, 16
          %s2380 = scalar_lea.vmem [#allocation3], %s2379
          %2381 = dma.done %s2377, 256
        $region52: #{simple_encoder_forward.1} parent=47 // pred_fallthru
          _
      $region48: #{simple_encoder_forward.1} parent=5 // pred_fallthru
        _
    $region6: #{simple_encoder_forward.1} parent=1 // loop_footer
      %s18 = sadd.s32 1, %s14
    $region7: #{simple_encoder_forward.1} parent=1 // loop_footer_branch
      %13 = sbr.rel target = $region3
    $region8: #{simple_encoder_forward.1} parent=1 // loop_exit
      _
    %2382 = vsyncpa [#allocation4], 1
    %s2383 = scalar_lea.sflag [#allocation4], 1
    %2384 = vsyncpa %s2383, 1

</llo_original>
